<compile_context>
chip_gen: v7x
topology: tpu7x:2x2x1
jax: 0.10.0
libtpu: 0.0.40
codegen_flags: <defaults>
</compile_context>

<pallas_src>
import functools

import numpy as np
import jax
import jax.numpy as jnp
from jax import lax
from jax.experimental import pallas as pl
from jax.experimental.pallas import tpu as pltpu


NCLS_PAD = 128  # lane-dense logits width; sliced to num_classes in the wrapper


def _early_exit_kernel(x_ref, convw_ref, bnbias_ref, fcw_ref, fcb_ref, out_ref,
                       *, B, H, W, C, num_blocks):
    """Processes `B` images per grid step.

    x_ref:      (B*H, W*C) bf16   activations, lane-dense
    convw_ref:  (2*num_blocks*3, W*C, W*C) bf16 per-tap banded conv weights
                (BN scale already folded in)
    bnbias_ref: (2*num_blocks, 1, W*C) f32 folded BN bias (tiled over W)
    fcw_ref:    (W*C, NCLS_PAD) bf16  fused avgpool+fc weight (includes 1/(H*W))
    fcb_ref:    (1, NCLS_PAD) f32
    out_ref:    (B, NCLS_PAD) f32
    """
    WC = W * C
    BH = B * H

    # Row-validity masks for the dh = -1 / +1 taps, hoisted out of the conv
    # calls (JAX does not CSE broadcast_in_dim).  Rolling the (B*H) axis by one
    # crosses image boundaries exactly where the conv needs zero padding.
    row = lax.broadcasted_iota(jnp.int32, (BH, 1), 0)
    h_in_img = row % H
    top_ok = jnp.broadcast_to(h_in_img != 0, (BH, WC))        # row h-1 exists
    bot_ok = jnp.broadcast_to(h_in_img != (H - 1), (BH, WC))  # row h+1 exists

    def conv_bn(act, idx):
        # act: (BH, WC) f32.  Build the dh = -1/0/+1 taps (roll in f32, cast
        # each tap to bf16) and run three accumulated K=128 MXU dots.  The BN
        # scale lives in the weights, so only the bias add remains.
        act_b = act.astype(jnp.bfloat16)
        xm = jnp.where(top_ok, jnp.roll(act, 1, axis=0), 0.0).astype(jnp.bfloat16)
        xp = jnp.where(bot_ok, jnp.roll(act, -1, axis=0), 0.0).astype(jnp.bfloat16)
        y = jnp.dot(xm, convw_ref[3 * idx + 0], preferred_element_type=jnp.float32)
        y += jnp.dot(act_b, convw_ref[3 * idx + 1], preferred_element_type=jnp.float32)
        y += jnp.dot(xp, convw_ref[3 * idx + 2], preferred_element_type=jnp.float32)
        return y + bnbias_ref[idx]

    h = x_ref[...].astype(jnp.float32)                        # (BH, WC) f32 residual
    for b in range(num_blocks):
        y = jnp.maximum(conv_bn(h, 2 * b), 0.0)               # conv1 + bn1 + relu
        y = conv_bn(y, 2 * b + 1)                             # conv2 + bn2
        h = jnp.maximum(y + h, 0.0)                           # identity shortcut + relu

    # Fused AdaptiveAvgPool2d(1) + Linear: pool over H first (FC is linear),
    # the W pooling and the 1/(H*W) factor live inside fcw.
    pooled = h.reshape(B, H, WC).sum(axis=1)                  # (B, WC) f32
    logits = jnp.dot(pooled.astype(jnp.bfloat16), fcw_ref[...],
                     preferred_element_type=jnp.float32) + fcb_ref[...]
    out_ref[...] = logits


def _build_band_weights(conv_w, bn_scale, W):
    """conv_w: (num_conv, 3, 3, Cin, Cout) HWIO -> (num_conv*3, W*Cin, W*Cout).

    band[conv, dhi][w'*Cin + cin, w*Cout + cout] =
        bn_scale[conv, cout] * conv_w[conv, dhi, (w'-w)+1, cin, cout]  if |w'-w| <= 1
        else 0
    i.e. the dw taps, w-direction zero padding AND the (inference) BN scale are
    baked into the bf16 matmul weights.
    """
    cw = np.asarray(conv_w, dtype=np.float32)
    sc = np.asarray(bn_scale, dtype=np.float32)
    num_conv, KH, KW, Cin, Cout = cw.shape
    cw = cw * sc[:, None, None, None, :]          # fold BN scale into weights
    band = np.zeros((num_conv, KH, W, Cin, W, Cout), np.float32)
    for dhi in range(KH):
        for dwi in range(KW):
            dw = dwi - 1
            for w in range(W):
                wp = w + dw
                if 0 <= wp < W:
                    band[:, dhi, wp, :, w, :] = cw[:, dhi, dwi, :, :]
    return jnp.asarray(band.reshape(num_conv * KH, W * Cin, W * Cout),
                       jnp.bfloat16)


def _build_fc(fc_w, fc_b, H, W):
    """Fused avgpool+fc weight (contains 1/(H*W)), padded to NCLS_PAD lanes."""
    fw = np.asarray(fc_w, np.float32)             # (C, ncls)
    fb = np.asarray(fc_b, np.float32)
    C, ncls = fw.shape
    fw_pad = np.zeros((C, NCLS_PAD), np.float32)
    fw_pad[:, :ncls] = fw / float(H * W)
    fc_big = np.tile(fw_pad, (W, 1))              # (W*C, NCLS_PAD)
    fb_pad = np.zeros((1, NCLS_PAD), np.float32)
    fb_pad[0, :ncls] = fb
    return jnp.asarray(fc_big, jnp.bfloat16), jnp.asarray(fb_pad, jnp.float32)


def early_exit_forward(x_nhwc, conv_w, bn_scale, bn_bias, fc_w, fc_b,
                       *, num_blocks, batch_tile=16):
    N, H, W, C = x_nhwc.shape
    WC = W * C
    num_classes = fc_w.shape[1]
    assert WC % 128 == 0, "kernel assumes lane-dense W*C (multiple of 128)"
    assert (batch_tile * H) % 8 == 0

    # Pack parameters into kernel-friendly layouts (host-side, once).
    band_w = _build_band_weights(conv_w, bn_scale, W)          # (nc*3, WC, WC) bf16
    bn_bias_t = jnp.tile(jnp.asarray(bn_bias, jnp.float32),
                         (1, W)).reshape(2 * num_blocks, 1, WC)
    fc_big, fb_pad = _build_fc(fc_w, fc_b, H, W)

    # Pad batch to a multiple of the tile, flatten to lane-dense (N*H, W*C),
    # and ship activations as bf16 (halves the input HBM->VMEM DMA bytes).
    n_pad = (-N) % batch_tile
    if n_pad:
        x_nhwc = jnp.concatenate(
            [x_nhwc, jnp.zeros((n_pad, H, W, C), x_nhwc.dtype)], axis=0)
    Np = N + n_pad
    x2d = x_nhwc.astype(jnp.bfloat16).reshape(Np * H, WC)

    kernel = functools.partial(_early_exit_kernel, B=batch_tile, H=H, W=W, C=C,
                               num_blocks=num_blocks)
    out = pl.pallas_call(
        kernel,
        out_shape=jax.ShapeDtypeStruct((Np, NCLS_PAD), jnp.float32),
        grid_spec=pltpu.PrefetchScalarGridSpec(
            num_scalar_prefetch=0,
            grid=(Np // batch_tile,),
            in_specs=[
                pl.BlockSpec((batch_tile * H, WC), lambda n: (n, 0)),
                pl.BlockSpec(band_w.shape, lambda n: (0, 0, 0)),
                pl.BlockSpec(bn_bias_t.shape, lambda n: (0, 0, 0)),
                pl.BlockSpec(fc_big.shape, lambda n: (0, 0)),
                pl.BlockSpec(fb_pad.shape, lambda n: (0, 0)),
            ],
            out_specs=pl.BlockSpec((batch_tile, NCLS_PAD), lambda n: (n, 0)),
        ),
        compiler_params=pltpu.CompilerParams(
            dimension_semantics=("parallel",)),
    )(x2d, band_w, bn_bias_t, fc_big, fb_pad)
    return out[:N, :num_classes]


if __name__ == "__main__":
    N, C, H, W = 64, 8, 16, 16       # in_planes = 8, W*C = 128 (lane-dense)
    num_blocks = 2
    num_classes = 10
    eps = 1e-5
    batch_tile = 16                  # M = 256 per matmul, grid of 4 parallel blocks

    key = jax.random.PRNGKey(0)
    keys = jax.random.split(key, 8)

    # PyTorch-convention NCHW input, transposed to kernel layout NHWC.
    x_nchw = jax.random.normal(keys[0], (N, C, H, W), jnp.float32)
    x_nhwc = jnp.transpose(x_nchw, (0, 2, 3, 1))

    # Synthetic parameters (shapes implied by the module), HWIO conv weights.
    conv_w = 0.1 * jax.random.normal(keys[1],
                                     (num_blocks * 2, 3, 3, C, C), jnp.float32)
    gamma = 1.0 + 0.1 * jax.random.normal(keys[2], (num_blocks * 2, C), jnp.float32)
    beta = 0.1 * jax.random.normal(keys[3], (num_blocks * 2, C), jnp.float32)
    running_mean = 0.1 * jax.random.normal(keys[4], (num_blocks * 2, C), jnp.float32)
    running_var = 1.0 + 0.1 * jax.random.uniform(keys[5], (num_blocks * 2, C), jnp.float32)
    bn_scale = gamma * lax.rsqrt(running_var + eps)
    bn_bias = beta - running_mean * bn_scale

    fc_w = 0.1 * jax.random.normal(keys[6], (C, num_classes), jnp.float32)
    fc_b = 0.1 * jax.random.normal(keys[7], (num_classes,), jnp.float32)

    logits = early_exit_forward(x_nhwc, conv_w, bn_scale, bn_bias, fc_w, fc_b,
                                num_blocks=num_blocks, batch_tile=batch_tile)
    logits = jax.block_until_ready(logits)

    # Pure-JAX f32 reference for validation (inference-mode BN folded to scale/bias).
    def ref_forward(x):
        h = x
        for b in range(num_blocks):
            y = lax.conv_general_dilated(h, conv_w[2 * b], (1, 1), 'SAME',
                                         dimension_numbers=('NHWC', 'HWIO', 'NHWC'))
            y = y * bn_scale[2 * b] + bn_bias[2 * b]
            y = jnp.maximum(y, 0.0)
            y = lax.conv_general_dilated(y, conv_w[2 * b + 1], (1, 1), 'SAME',
                                         dimension_numbers=('NHWC', 'HWIO', 'NHWC'))
            y = y * bn_scale[2 * b + 1] + bn_bias[2 * b + 1]
            h = jnp.maximum(y + h, 0.0)
        feat = jnp.mean(h, axis=(1, 2))
        return feat @ fc_w + fc_b

    ref = jax.block_until_ready(ref_forward(x_nhwc))
    assert logits.shape == (N, num_classes)
    # bf16 matmul inputs/activations with f32 accumulation -> loose tolerance.
    assert jnp.allclose(logits, ref, rtol=2e-2, atol=2e-2), (logits, ref)
    print("KERNEL_OK")
</pallas_src>

<mosaic_0001>
module attributes {stable_mosaic.version = 11 : i64} {
  func.func @_early_exit_kernel(%arg0: i32, %arg1: memref<256x128xbf16, #tpu.memory_space<vmem>>, %arg2: memref<12x128x128xbf16, #tpu.memory_space<vmem>>, %arg3: memref<4x1x128xf32, #tpu.memory_space<vmem>>, %arg4: memref<128x128xbf16, #tpu.memory_space<vmem>>, %arg5: memref<1x128xf32, #tpu.memory_space<vmem>>, %arg6: memref<16x128xf32, #tpu.memory_space<vmem>>) attributes {dimension_semantics = [#tpu.dimension_semantics<parallel>], iteration_bounds = array<i64: 4>, scalar_prefetch = 0 : i64, scratch_operands = 0 : i64, tpu.core_type = #tpu.core_type<tc>, window_params = [{transform_indices = @transform_0, window_bounds = array<i64: 256, 128>}, {pipeline_mode = #tpu.pipeline_mode<synchronous>, transform_indices = @transform_1, window_bounds = array<i64: 12, 128, 128>}, {pipeline_mode = #tpu.pipeline_mode<synchronous>, transform_indices = @transform_2, window_bounds = array<i64: 4, 1, 128>}, {pipeline_mode = #tpu.pipeline_mode<synchronous>, transform_indices = @transform_3, window_bounds = array<i64: 128, 128>}, {pipeline_mode = #tpu.pipeline_mode<synchronous>, transform_indices = @transform_4, window_bounds = array<i64: 1, 128>}, {transform_indices = @transform_5, window_bounds = array<i64: 16, 128>}]} {
    %0 = tpu.iota {dimensions = array<i32: 0>} : vector<256x1xi32>
    %c16_i32 = arith.constant 16 : i32
    %c0_i32 = arith.constant 0 : i32
    %1 = arith.cmpi eq, %c16_i32, %c0_i32 : i32
    %c1_i32 = arith.constant 1 : i32
    %2 = arith.select %1, %c1_i32, %c16_i32 : i32
    %3 = vector.broadcast %2 : i32 to vector<256x1xi32>
    %4 = arith.remsi %0, %3 : vector<256x1xi32>
    %c0_i32_0 = arith.constant 0 : i32
    %5 = vector.broadcast %c0_i32_0 : i32 to vector<256x1xi32>
    %6 = arith.cmpi ne, %4, %5 : vector<256x1xi32>
    %c0_i32_1 = arith.constant 0 : i32
    %7 = vector.broadcast %c0_i32_1 : i32 to vector<256x1xi32>
    %8 = arith.cmpi slt, %4, %7 : vector<256x1xi32>
    %c0_i32_2 = arith.constant 0 : i32
    %9 = arith.cmpi slt, %2, %c0_i32_2 : i32
    %10 = vector.broadcast %9 : i1 to vector<256x1xi1>
    %11 = vector.broadcast %10 : vector<256x1xi1> to vector<256x1xi1>
    %12 = arith.xori %8, %11 : vector<256x1xi1>
    %13 = arith.andi %12, %6 : vector<256x1xi1>
    %14 = vector.broadcast %2 : i32 to vector<256x1xi32>
    %15 = arith.addi %4, %14 : vector<256x1xi32>
    %16 = arith.select %13, %15, %4 : vector<256x1xi1>, vector<256x1xi32>
    %c0_i32_3 = arith.constant 0 : i32
    %17 = vector.broadcast %c0_i32_3 : i32 to vector<256x1xi32>
    %18 = arith.cmpi ne, %16, %17 : vector<256x1xi32>
    %19 = vector.shape_cast %18 : vector<256x1xi1> to vector<256x1xi1>
    %20 = vector.broadcast %19 : vector<256x1xi1> to vector<256x128xi1>
    %c15_i32 = arith.constant 15 : i32
    %21 = vector.broadcast %c15_i32 : i32 to vector<256x1xi32>
    %22 = arith.cmpi ne, %16, %21 : vector<256x1xi32>
    %23 = vector.shape_cast %22 : vector<256x1xi1> to vector<256x1xi1>
    %24 = vector.broadcast %23 : vector<256x1xi1> to vector<256x128xi1>
    %c0 = arith.constant 0 : index
    %c0_4 = arith.constant 0 : index
    %25 = vector.load %arg1[%c0, %c0_4] : memref<256x128xbf16, #tpu.memory_space<vmem>>, vector<256x128xbf16>
    %26 = arith.extf %25 : vector<256x128xbf16> to vector<256x128xf32>
    %27 = arith.truncf %26 : vector<256x128xf32> to vector<256x128xbf16>
    %28 = vector.extract_strided_slice %26 {offsets = [255, 0], sizes = [1, 128], strides = [1, 1]} : vector<256x128xf32> to vector<1x128xf32>
    %29 = vector.extract_strided_slice %26 {offsets = [0, 0], sizes = [255, 128], strides = [1, 1]} : vector<256x128xf32> to vector<255x128xf32>
    %30 = tpu.concatenate %28, %29 in 0 : vector<1x128xf32>, vector<255x128xf32> -> vector<256x128xf32>
    %cst = arith.constant 0.000000e+00 : f32
    %31 = vector.broadcast %cst : f32 to vector<256x128xf32>
    %32 = arith.select %20, %30, %31 : vector<256x128xi1>, vector<256x128xf32>
    %33 = arith.truncf %32 : vector<256x128xf32> to vector<256x128xbf16>
    %34 = vector.extract_strided_slice %26 {offsets = [1, 0], sizes = [255, 128], strides = [1, 1]} : vector<256x128xf32> to vector<255x128xf32>
    %35 = vector.extract_strided_slice %26 {offsets = [0, 0], sizes = [1, 128], strides = [1, 1]} : vector<256x128xf32> to vector<1x128xf32>
    %36 = tpu.concatenate %34, %35 in 0 : vector<255x128xf32>, vector<1x128xf32> -> vector<256x128xf32>
    %cst_5 = arith.constant 0.000000e+00 : f32
    %37 = vector.broadcast %cst_5 : f32 to vector<256x128xf32>
    %38 = arith.select %24, %36, %37 : vector<256x128xi1>, vector<256x128xf32>
    %39 = arith.truncf %38 : vector<256x128xf32> to vector<256x128xbf16>
    %c0_6 = arith.constant 0 : index
    %c0_7 = arith.constant 0 : index
    %c0_8 = arith.constant 0 : index
    %40 = vector.load %arg2[%c0_6, %c0_7, %c0_8] : memref<12x128x128xbf16, #tpu.memory_space<vmem>>, vector<1x128x128xbf16>
    %41 = vector.shape_cast %40 : vector<1x128x128xbf16> to vector<128x128xbf16>
    %cst_9 = arith.constant dense<0.000000e+00> : vector<256x128xf32>
    %42 = tpu.matmul %33, %41, %cst_9 {dimension_numbers = #tpu.dot_dimension_numbers<[1], [0], [0], [1], [0, 0, 1, 1], [], []>} : vector<256x128xbf16>, vector<128x128xbf16>, vector<256x128xf32> -> vector<256x128xf32>
    %c1 = arith.constant 1 : index
    %c0_10 = arith.constant 0 : index
    %c0_11 = arith.constant 0 : index
    %43 = vector.load %arg2[%c1, %c0_10, %c0_11] : memref<12x128x128xbf16, #tpu.memory_space<vmem>>, vector<1x128x128xbf16>
    %44 = vector.shape_cast %43 : vector<1x128x128xbf16> to vector<128x128xbf16>
    %cst_12 = arith.constant dense<0.000000e+00> : vector<256x128xf32>
    %45 = tpu.matmul %27, %44, %cst_12 {dimension_numbers = #tpu.dot_dimension_numbers<[1], [0], [0], [1], [0, 0, 1, 1], [], []>} : vector<256x128xbf16>, vector<128x128xbf16>, vector<256x128xf32> -> vector<256x128xf32>
    %46 = arith.addf %42, %45 : vector<256x128xf32>
    %c2 = arith.constant 2 : index
    %c0_13 = arith.constant 0 : index
    %c0_14 = arith.constant 0 : index
    %47 = vector.load %arg2[%c2, %c0_13, %c0_14] : memref<12x128x128xbf16, #tpu.memory_space<vmem>>, vector<1x128x128xbf16>
    %48 = vector.shape_cast %47 : vector<1x128x128xbf16> to vector<128x128xbf16>
    %cst_15 = arith.constant dense<0.000000e+00> : vector<256x128xf32>
    %49 = tpu.matmul %39, %48, %cst_15 {dimension_numbers = #tpu.dot_dimension_numbers<[1], [0], [0], [1], [0, 0, 1, 1], [], []>} : vector<256x128xbf16>, vector<128x128xbf16>, vector<256x128xf32> -> vector<256x128xf32>
    %50 = arith.addf %46, %49 : vector<256x128xf32>
    %c0_16 = arith.constant 0 : index
    %c0_17 = arith.constant 0 : index
    %c0_18 = arith.constant 0 : index
    %51 = vector.load %arg3[%c0_16, %c0_17, %c0_18] : memref<4x1x128xf32, #tpu.memory_space<vmem>>, vector<1x1x128xf32>
    %52 = vector.shape_cast %51 : vector<1x1x128xf32> to vector<1x128xf32>
    %53 = vector.broadcast %52 : vector<1x128xf32> to vector<256x128xf32>
    %54 = arith.addf %50, %53 : vector<256x128xf32>
    %cst_19 = arith.constant 0.000000e+00 : f32
    %55 = vector.broadcast %cst_19 : f32 to vector<256x128xf32>
    %56 = arith.maximumf %54, %55 : vector<256x128xf32>
    %57 = arith.truncf %56 : vector<256x128xf32> to vector<256x128xbf16>
    %58 = vector.extract_strided_slice %56 {offsets = [255, 0], sizes = [1, 128], strides = [1, 1]} : vector<256x128xf32> to vector<1x128xf32>
    %59 = vector.extract_strided_slice %56 {offsets = [0, 0], sizes = [255, 128], strides = [1, 1]} : vector<256x128xf32> to vector<255x128xf32>
    %60 = tpu.concatenate %58, %59 in 0 : vector<1x128xf32>, vector<255x128xf32> -> vector<256x128xf32>
    %cst_20 = arith.constant 0.000000e+00 : f32
    %61 = vector.broadcast %cst_20 : f32 to vector<256x128xf32>
    %62 = arith.select %20, %60, %61 : vector<256x128xi1>, vector<256x128xf32>
    %63 = arith.truncf %62 : vector<256x128xf32> to vector<256x128xbf16>
    %64 = vector.extract_strided_slice %56 {offsets = [1, 0], sizes = [255, 128], strides = [1, 1]} : vector<256x128xf32> to vector<255x128xf32>
    %65 = vector.extract_strided_slice %56 {offsets = [0, 0], sizes = [1, 128], strides = [1, 1]} : vector<256x128xf32> to vector<1x128xf32>
    %66 = tpu.concatenate %64, %65 in 0 : vector<255x128xf32>, vector<1x128xf32> -> vector<256x128xf32>
    %cst_21 = arith.constant 0.000000e+00 : f32
    %67 = vector.broadcast %cst_21 : f32 to vector<256x128xf32>
    %68 = arith.select %24, %66, %67 : vector<256x128xi1>, vector<256x128xf32>
    %69 = arith.truncf %68 : vector<256x128xf32> to vector<256x128xbf16>
    %c3 = arith.constant 3 : index
    %c0_22 = arith.constant 0 : index
    %c0_23 = arith.constant 0 : index
    %70 = vector.load %arg2[%c3, %c0_22, %c0_23] : memref<12x128x128xbf16, #tpu.memory_space<vmem>>, vector<1x128x128xbf16>
    %71 = vector.shape_cast %70 : vector<1x128x128xbf16> to vector<128x128xbf16>
    %cst_24 = arith.constant dense<0.000000e+00> : vector<256x128xf32>
    %72 = tpu.matmul %63, %71, %cst_24 {dimension_numbers = #tpu.dot_dimension_numbers<[1], [0], [0], [1], [0, 0, 1, 1], [], []>} : vector<256x128xbf16>, vector<128x128xbf16>, vector<256x128xf32> -> vector<256x128xf32>
    %c4 = arith.constant 4 : index
    %c0_25 = arith.constant 0 : index
    %c0_26 = arith.constant 0 : index
    %73 = vector.load %arg2[%c4, %c0_25, %c0_26] : memref<12x128x128xbf16, #tpu.memory_space<vmem>>, vector<1x128x128xbf16>
    %74 = vector.shape_cast %73 : vector<1x128x128xbf16> to vector<128x128xbf16>
    %cst_27 = arith.constant dense<0.000000e+00> : vector<256x128xf32>
    %75 = tpu.matmul %57, %74, %cst_27 {dimension_numbers = #tpu.dot_dimension_numbers<[1], [0], [0], [1], [0, 0, 1, 1], [], []>} : vector<256x128xbf16>, vector<128x128xbf16>, vector<256x128xf32> -> vector<256x128xf32>
    %76 = arith.addf %72, %75 : vector<256x128xf32>
    %c5 = arith.constant 5 : index
    %c0_28 = arith.constant 0 : index
    %c0_29 = arith.constant 0 : index
    %77 = vector.load %arg2[%c5, %c0_28, %c0_29] : memref<12x128x128xbf16, #tpu.memory_space<vmem>>, vector<1x128x128xbf16>
    %78 = vector.shape_cast %77 : vector<1x128x128xbf16> to vector<128x128xbf16>
    %cst_30 = arith.constant dense<0.000000e+00> : vector<256x128xf32>
    %79 = tpu.matmul %69, %78, %cst_30 {dimension_numbers = #tpu.dot_dimension_numbers<[1], [0], [0], [1], [0, 0, 1, 1], [], []>} : vector<256x128xbf16>, vector<128x128xbf16>, vector<256x128xf32> -> vector<256x128xf32>
    %80 = arith.addf %76, %79 : vector<256x128xf32>
    %c1_31 = arith.constant 1 : index
    %c0_32 = arith.constant 0 : index
    %c0_33 = arith.constant 0 : index
    %81 = vector.load %arg3[%c1_31, %c0_32, %c0_33] : memref<4x1x128xf32, #tpu.memory_space<vmem>>, vector<1x1x128xf32>
    %82 = vector.shape_cast %81 : vector<1x1x128xf32> to vector<1x128xf32>
    %83 = vector.broadcast %82 : vector<1x128xf32> to vector<256x128xf32>
    %84 = arith.addf %80, %83 : vector<256x128xf32>
    %85 = arith.addf %84, %26 : vector<256x128xf32>
    %cst_34 = arith.constant 0.000000e+00 : f32
    %86 = vector.broadcast %cst_34 : f32 to vector<256x128xf32>
    %87 = arith.maximumf %85, %86 : vector<256x128xf32>
    %88 = arith.truncf %87 : vector<256x128xf32> to vector<256x128xbf16>
    %89 = vector.extract_strided_slice %87 {offsets = [255, 0], sizes = [1, 128], strides = [1, 1]} : vector<256x128xf32> to vector<1x128xf32>
    %90 = vector.extract_strided_slice %87 {offsets = [0, 0], sizes = [255, 128], strides = [1, 1]} : vector<256x128xf32> to vector<255x128xf32>
    %91 = tpu.concatenate %89, %90 in 0 : vector<1x128xf32>, vector<255x128xf32> -> vector<256x128xf32>
    %cst_35 = arith.constant 0.000000e+00 : f32
    %92 = vector.broadcast %cst_35 : f32 to vector<256x128xf32>
    %93 = arith.select %20, %91, %92 : vector<256x128xi1>, vector<256x128xf32>
    %94 = arith.truncf %93 : vector<256x128xf32> to vector<256x128xbf16>
    %95 = vector.extract_strided_slice %87 {offsets = [1, 0], sizes = [255, 128], strides = [1, 1]} : vector<256x128xf32> to vector<255x128xf32>
    %96 = vector.extract_strided_slice %87 {offsets = [0, 0], sizes = [1, 128], strides = [1, 1]} : vector<256x128xf32> to vector<1x128xf32>
    %97 = tpu.concatenate %95, %96 in 0 : vector<255x128xf32>, vector<1x128xf32> -> vector<256x128xf32>
    %cst_36 = arith.constant 0.000000e+00 : f32
    %98 = vector.broadcast %cst_36 : f32 to vector<256x128xf32>
    %99 = arith.select %24, %97, %98 : vector<256x128xi1>, vector<256x128xf32>
    %100 = arith.truncf %99 : vector<256x128xf32> to vector<256x128xbf16>
    %c6 = arith.constant 6 : index
    %c0_37 = arith.constant 0 : index
    %c0_38 = arith.constant 0 : index
    %101 = vector.load %arg2[%c6, %c0_37, %c0_38] : memref<12x128x128xbf16, #tpu.memory_space<vmem>>, vector<1x128x128xbf16>
    %102 = vector.shape_cast %101 : vector<1x128x128xbf16> to vector<128x128xbf16>
    %cst_39 = arith.constant dense<0.000000e+00> : vector<256x128xf32>
    %103 = tpu.matmul %94, %102, %cst_39 {dimension_numbers = #tpu.dot_dimension_numbers<[1], [0], [0], [1], [0, 0, 1, 1], [], []>} : vector<256x128xbf16>, vector<128x128xbf16>, vector<256x128xf32> -> vector<256x128xf32>
    %c7 = arith.constant 7 : index
    %c0_40 = arith.constant 0 : index
    %c0_41 = arith.constant 0 : index
    %104 = vector.load %arg2[%c7, %c0_40, %c0_41] : memref<12x128x128xbf16, #tpu.memory_space<vmem>>, vector<1x128x128xbf16>
    %105 = vector.shape_cast %104 : vector<1x128x128xbf16> to vector<128x128xbf16>
    %cst_42 = arith.constant dense<0.000000e+00> : vector<256x128xf32>
    %106 = tpu.matmul %88, %105, %cst_42 {dimension_numbers = #tpu.dot_dimension_numbers<[1], [0], [0], [1], [0, 0, 1, 1], [], []>} : vector<256x128xbf16>, vector<128x128xbf16>, vector<256x128xf32> -> vector<256x128xf32>
    %107 = arith.addf %103, %106 : vector<256x128xf32>
    %c8 = arith.constant 8 : index
    %c0_43 = arith.constant 0 : index
    %c0_44 = arith.constant 0 : index
    %108 = vector.load %arg2[%c8, %c0_43, %c0_44] : memref<12x128x128xbf16, #tpu.memory_space<vmem>>, vector<1x128x128xbf16>
    %109 = vector.shape_cast %108 : vector<1x128x128xbf16> to vector<128x128xbf16>
    %cst_45 = arith.constant dense<0.000000e+00> : vector<256x128xf32>
    %110 = tpu.matmul %100, %109, %cst_45 {dimension_numbers = #tpu.dot_dimension_numbers<[1], [0], [0], [1], [0, 0, 1, 1], [], []>} : vector<256x128xbf16>, vector<128x128xbf16>, vector<256x128xf32> -> vector<256x128xf32>
    %111 = arith.addf %107, %110 : vector<256x128xf32>
    %c2_46 = arith.constant 2 : index
    %c0_47 = arith.constant 0 : index
    %c0_48 = arith.constant 0 : index
    %112 = vector.load %arg3[%c2_46, %c0_47, %c0_48] : memref<4x1x128xf32, #tpu.memory_space<vmem>>, vector<1x1x128xf32>
    %113 = vector.shape_cast %112 : vector<1x1x128xf32> to vector<1x128xf32>
    %114 = vector.broadcast %113 : vector<1x128xf32> to vector<256x128xf32>
    %115 = arith.addf %111, %114 : vector<256x128xf32>
    %cst_49 = arith.constant 0.000000e+00 : f32
    %116 = vector.broadcast %cst_49 : f32 to vector<256x128xf32>
    %117 = arith.maximumf %115, %116 : vector<256x128xf32>
    %118 = arith.truncf %117 : vector<256x128xf32> to vector<256x128xbf16>
    %119 = vector.extract_strided_slice %117 {offsets = [255, 0], sizes = [1, 128], strides = [1, 1]} : vector<256x128xf32> to vector<1x128xf32>
    %120 = vector.extract_strided_slice %117 {offsets = [0, 0], sizes = [255, 128], strides = [1, 1]} : vector<256x128xf32> to vector<255x128xf32>
    %121 = tpu.concatenate %119, %120 in 0 : vector<1x128xf32>, vector<255x128xf32> -> vector<256x128xf32>
    %cst_50 = arith.constant 0.000000e+00 : f32
    %122 = vector.broadcast %cst_50 : f32 to vector<256x128xf32>
    %123 = arith.select %20, %121, %122 : vector<256x128xi1>, vector<256x128xf32>
    %124 = arith.truncf %123 : vector<256x128xf32> to vector<256x128xbf16>
    %125 = vector.extract_strided_slice %117 {offsets = [1, 0], sizes = [255, 128], strides = [1, 1]} : vector<256x128xf32> to vector<255x128xf32>
    %126 = vector.extract_strided_slice %117 {offsets = [0, 0], sizes = [1, 128], strides = [1, 1]} : vector<256x128xf32> to vector<1x128xf32>
    %127 = tpu.concatenate %125, %126 in 0 : vector<255x128xf32>, vector<1x128xf32> -> vector<256x128xf32>
    %cst_51 = arith.constant 0.000000e+00 : f32
    %128 = vector.broadcast %cst_51 : f32 to vector<256x128xf32>
    %129 = arith.select %24, %127, %128 : vector<256x128xi1>, vector<256x128xf32>
    %130 = arith.truncf %129 : vector<256x128xf32> to vector<256x128xbf16>
    %c9 = arith.constant 9 : index
    %c0_52 = arith.constant 0 : index
    %c0_53 = arith.constant 0 : index
    %131 = vector.load %arg2[%c9, %c0_52, %c0_53] : memref<12x128x128xbf16, #tpu.memory_space<vmem>>, vector<1x128x128xbf16>
    %132 = vector.shape_cast %131 : vector<1x128x128xbf16> to vector<128x128xbf16>
    %cst_54 = arith.constant dense<0.000000e+00> : vector<256x128xf32>
    %133 = tpu.matmul %124, %132, %cst_54 {dimension_numbers = #tpu.dot_dimension_numbers<[1], [0], [0], [1], [0, 0, 1, 1], [], []>} : vector<256x128xbf16>, vector<128x128xbf16>, vector<256x128xf32> -> vector<256x128xf32>
    %c10 = arith.constant 10 : index
    %c0_55 = arith.constant 0 : index
    %c0_56 = arith.constant 0 : index
    %134 = vector.load %arg2[%c10, %c0_55, %c0_56] : memref<12x128x128xbf16, #tpu.memory_space<vmem>>, vector<1x128x128xbf16>
    %135 = vector.shape_cast %134 : vector<1x128x128xbf16> to vector<128x128xbf16>
    %cst_57 = arith.constant dense<0.000000e+00> : vector<256x128xf32>
    %136 = tpu.matmul %118, %135, %cst_57 {dimension_numbers = #tpu.dot_dimension_numbers<[1], [0], [0], [1], [0, 0, 1, 1], [], []>} : vector<256x128xbf16>, vector<128x128xbf16>, vector<256x128xf32> -> vector<256x128xf32>
    %137 = arith.addf %133, %136 : vector<256x128xf32>
    %c11 = arith.constant 11 : index
    %c0_58 = arith.constant 0 : index
    %c0_59 = arith.constant 0 : index
    %138 = vector.load %arg2[%c11, %c0_58, %c0_59] : memref<12x128x128xbf16, #tpu.memory_space<vmem>>, vector<1x128x128xbf16>
    %139 = vector.shape_cast %138 : vector<1x128x128xbf16> to vector<128x128xbf16>
    %cst_60 = arith.constant dense<0.000000e+00> : vector<256x128xf32>
    %140 = tpu.matmul %130, %139, %cst_60 {dimension_numbers = #tpu.dot_dimension_numbers<[1], [0], [0], [1], [0, 0, 1, 1], [], []>} : vector<256x128xbf16>, vector<128x128xbf16>, vector<256x128xf32> -> vector<256x128xf32>
    %141 = arith.addf %137, %140 : vector<256x128xf32>
    %c3_61 = arith.constant 3 : index
    %c0_62 = arith.constant 0 : index
    %c0_63 = arith.constant 0 : index
    %142 = vector.load %arg3[%c3_61, %c0_62, %c0_63] : memref<4x1x128xf32, #tpu.memory_space<vmem>>, vector<1x1x128xf32>
    %143 = vector.shape_cast %142 : vector<1x1x128xf32> to vector<1x128xf32>
    %144 = vector.broadcast %143 : vector<1x128xf32> to vector<256x128xf32>
    %145 = arith.addf %141, %144 : vector<256x128xf32>
    %146 = arith.addf %145, %87 : vector<256x128xf32>
    %cst_64 = arith.constant 0.000000e+00 : f32
    %147 = vector.broadcast %cst_64 : f32 to vector<256x128xf32>
    %148 = arith.maximumf %146, %147 : vector<256x128xf32>
    %149 = vector.shape_cast %148 : vector<256x128xf32> to vector<16x16x128xf32>
    %cst_65 = arith.constant dense<0.000000e+00> : vector<16x128xf32>
    %150 = vector.multi_reduction <add>, %149, %cst_65 [1] : vector<16x16x128xf32> to vector<16x128xf32>
    %151 = arith.truncf %150 : vector<16x128xf32> to vector<16x128xbf16>
    %c0_66 = arith.constant 0 : index
    %c0_67 = arith.constant 0 : index
    %152 = vector.load %arg4[%c0_66, %c0_67] : memref<128x128xbf16, #tpu.memory_space<vmem>>, vector<128x128xbf16>
    %cst_68 = arith.constant dense<0.000000e+00> : vector<16x128xf32>
    %153 = tpu.matmul %151, %152, %cst_68 {dimension_numbers = #tpu.dot_dimension_numbers<[1], [0], [0], [1], [0, 0, 1, 1], [], []>} : vector<16x128xbf16>, vector<128x128xbf16>, vector<16x128xf32> -> vector<16x128xf32>
    %c0_69 = arith.constant 0 : index
    %c0_70 = arith.constant 0 : index
    %154 = vector.load %arg5[%c0_69, %c0_70] : memref<1x128xf32, #tpu.memory_space<vmem>>, vector<1x128xf32>
    %155 = vector.broadcast %154 : vector<1x128xf32> to vector<16x128xf32>
    %156 = arith.addf %153, %155 : vector<16x128xf32>
    %c0_71 = arith.constant 0 : index
    %c0_72 = arith.constant 0 : index
    %157 = vector.load %arg6[%c0_71, %c0_72] : memref<16x128xf32, #tpu.memory_space<vmem>>, vector<16x128xf32>
    tpu.vector_store %arg6[%c0_71, %c0_72], %156 {strides = array<i32>} : memref<16x128xf32, #tpu.memory_space<vmem>>, vector<16x128xf32>,
    return
  }
  func.func @transform_0(%arg0: i32) -> (i32, i32) {
    %c0_i32 = arith.constant 0 : i32
    %c0_i32_0 = arith.constant 0 : i32
    return %arg0, %c0_i32 : i32, i32
  }
  func.func @transform_1(%arg0: i32) -> (i32, i32, i32) {
    %c0_i32 = arith.constant 0 : i32
    %c0_i32_0 = arith.constant 0 : i32
    %c0_i32_1 = arith.constant 0 : i32
    %c0_i32_2 = arith.constant 0 : i32
    return %c0_i32, %c0_i32_0, %c0_i32_1 : i32, i32, i32
  }
  func.func @transform_2(%arg0: i32) -> (i32, i32, i32) {
    %c0_i32 = arith.constant 0 : i32
    %c0_i32_0 = arith.constant 0 : i32
    %c0_i32_1 = arith.constant 0 : i32
    %c0_i32_2 = arith.constant 0 : i32
    return %c0_i32, %c0_i32_0, %c0_i32_1 : i32, i32, i32
  }
  func.func @transform_3(%arg0: i32) -> (i32, i32) {
    %c0_i32 = arith.constant 0 : i32
    %c0_i32_0 = arith.constant 0 : i32
    %c0_i32_1 = arith.constant 0 : i32
    return %c0_i32, %c0_i32_0 : i32, i32
  }
  func.func @transform_4(%arg0: i32) -> (i32, i32) {
    %c0_i32 = arith.constant 0 : i32
    %c0_i32_0 = arith.constant 0 : i32
    %c0_i32_1 = arith.constant 0 : i32
    return %c0_i32, %c0_i32_0 : i32, i32
  }
  func.func @transform_5(%arg0: i32) -> (i32, i32) {
    %c0_i32 = arith.constant 0 : i32
    %c0_i32_0 = arith.constant 0 : i32
    return %arg0, %c0_i32 : i32, i32
  }
}

</mosaic_0001>

<llo_original>
// kernel: tpu_custom_call.1
$region0: #{tpu_custom_call.1}
  #allocation0 [shape = 'u32[]', space=smem, size = 0x4, offset = 0x4, fixed_abs, tag = 'smem constant byte address 0x4 - core index']
  #allocation1 [shape = 'u32[144,128]{1,0:T(1,128)}', space=vmem, size = 0x12000, scoped, tag = 'internal scratch']
  %s0 = inlined_call_operand.hbm [shape: bf16[1024,128], index: 0, kind: input, shape index: {}]
  %s1 = inlined_call_operand.hbm [shape: bf16[12,128,128], index: 1, kind: input, shape index: {}]
  %s2 = inlined_call_operand.vmem [shape: f32[4,1,128], index: 2, kind: input, shape index: {}]
  %s3 = inlined_call_operand.hbm [shape: bf16[128,128], index: 3, kind: input, shape index: {}]
  %s4 = inlined_call_operand.vmem [shape: f32[1,128], index: 4, kind: input, shape index: {}]
  %s5 = inlined_call_operand.hbm [shape: f32[64,128], index: 5, kind: output, shape index: {}]
  %s6 = sld [smem:[#allocation0]]
  $region65: #{tpu_custom_call.1} parent=0
    _
  %s8 = ssub.s32 1, %s6
  %s9 = scalar_select 0, %s8, %s6
  $region1: #{tpu_custom_call.1} parent=0
    #allocation2 [shape = 'u8[131072]{0}', space=vmem, size = 0x20000, scoped, tag = 'input window, operand 0']
    #allocation3 [shape = 's32[2]{0}', space=sflag, size = 0x8, scoped, tag = 'scoped memory for tpu_custom_call.1']
    #allocation4 [shape = 's32[2]{0}', space=sflag, size = 0x8, scoped, tag = 'scoped memory for tpu_custom_call.1']
    #allocation5 [shape = 'u8[393216]{0}', space=vmem, size = 0x60000, scoped, tag = 'input window, operand 1, single buffered']
    #allocation6 [shape = 's32[1]{0}', space=sflag, size = 0x4, scoped, tag = 'scoped memory for tpu_custom_call.1']
    #allocation7 [shape = 'u8[32768]{0}', space=vmem, size = 0x8000, scoped, tag = 'input window, operand 3, single buffered']
    #allocation8 [shape = 'u8[16384]{0}', space=vmem, size = 0x4000, scoped, tag = 'output window, operand 0']
    %10 = vsyncpa [#allocation3], 0
    %s11 = scalar_lea.sflag [#allocation3], 1
    %12 = vsyncpa %s11, 0
    %13 = vsyncpa [#allocation6], 0
    %14 = vsyncpa [#allocation4], 0
    %s15 = scalar_lea.sflag [#allocation4], 1
    %16 = vsyncpa %s15, 0
    loop: start=0, step=1, limit=6
    $region2: #{tpu_custom_call.1} parent=1 // loop_pre_header
      _
    $region3: #{tpu_custom_call.1} parent=1 // loop_header
      %s18 = sphi 0, %s22
      %p19 = scmp.ge.s32.totalorder %s18, 6
      %s28 = sphi 0, %s30
      %s31 = sphi 0, %s28
      %s32 = sphi 0, %s31
      %s48 = sphi 0, %s32
      %s52 = sphi 0, %s52
      %s54 = sphi 0, %s52
      %s55 = sphi 0, %s54
      %s69 = sphi 0, %s55
      %s73 = sphi 0, %s73
      %s75 = sphi 0, %s73
      %s76 = sphi 0, %s75
      %s90 = sphi 0, %s76
      %s94 = sphi 0, %s94
      %s96 = sphi 0, %s94
      %s97 = sphi 0, %s96
      %s111 = sphi 0, %s97
      %s115 = sphi 0, %s115
      %s117 = sphi 0, %s115
      %s118 = sphi 0, %s117
      %s132 = sphi 0, %s118
      %s138 = sphi 0, %s140
      %s141 = sphi 0, %s138
      %s142 = sphi 0, %s141
      %s158 = sphi 0, %s142
    $region4: #{tpu_custom_call.1} parent=1 // loop_header_branch
      %21 = sbr.rel (%p19) target = $region8
    $region5: #{tpu_custom_call.1} parent=1 // loop_body
      %s23 = ssub.s32 %s18, 1
      %s24 = ssub.s32 %s18, 2
      %s25 = sadd.s32 %s18, 1
      %s26 = ssub.s32 %s18, %s25
      %p27 = scmp.eq.s32.totalorder %s26, 0
      %s29 = sadd.s32 %s28, 1
      %s30 = scalar_select %p27, %s28, %s29
      %p33 = pneg %p27
      %p34 = scmp.eq.s32.totalorder %s18, 3
      %p35 = por %p33, %p34
      %p36 = scmp.ne.s32.totalorder %s28, %s31
      %p37 = scmp.eq.s32.totalorder %s18, 0
      %p38 = por %p36, %p37
      %p39 = scmp.ne.s32.totalorder %s28, %s31
      %p40 = scmp.eq.s32.totalorder %s23, 3
      %p41 = por %p39, %p40
      %p42 = scmp.ne.s32.totalorder %s31, %s32
      %p43 = scmp.eq.s32.totalorder %s23, 0
      %p44 = por %p42, %p43
      %p45 = scmp.ne.s32.totalorder %s31, %s32
      %p46 = scmp.eq.s32.totalorder %s24, 3
      %p47 = por %p45, %p46
      %p49 = scmp.ne.s32.totalorder %s32, %s48
      %p50 = scmp.eq.s32.totalorder %s24, 0
      %p51 = por %p49, %p50
      %s53 = sadd.s32 %s52, 1
      %p56 = scmp.eq.s32.totalorder %s18, 3
      %p57 = scmp.ne.s32.totalorder %s52, %s54
      %p58 = scmp.eq.s32.totalorder %s18, 0
      %p59 = por %p57, %p58
      %p60 = scmp.ne.s32.totalorder %s52, %s54
      %p61 = scmp.eq.s32.totalorder %s23, 3
      %p62 = por %p60, %p61
      %p63 = scmp.ne.s32.totalorder %s54, %s55
      %p64 = scmp.eq.s32.totalorder %s23, 0
      %p65 = por %p63, %p64
      %p66 = scmp.ne.s32.totalorder %s54, %s55
      %p67 = scmp.eq.s32.totalorder %s24, 3
      %p68 = por %p66, %p67
      %p70 = scmp.ne.s32.totalorder %s55, %s69
      %p71 = scmp.eq.s32.totalorder %s24, 0
      %p72 = por %p70, %p71
      %s74 = sadd.s32 %s73, 1
      %p77 = scmp.eq.s32.totalorder %s18, 3
      %p78 = scmp.ne.s32.totalorder %s73, %s75
      %p79 = scmp.eq.s32.totalorder %s18, 0
      %p80 = por %p78, %p79
      %p81 = scmp.ne.s32.totalorder %s73, %s75
      %p82 = scmp.eq.s32.totalorder %s23, 3
      %p83 = por %p81, %p82
      %p84 = scmp.ne.s32.totalorder %s75, %s76
      %p85 = scmp.eq.s32.totalorder %s23, 0
      %p86 = por %p84, %p85
      %p87 = scmp.ne.s32.totalorder %s75, %s76
      %p88 = scmp.eq.s32.totalorder %s24, 3
      %p89 = por %p87, %p88
      %p91 = scmp.ne.s32.totalorder %s76, %s90
      %p92 = scmp.eq.s32.totalorder %s24, 0
      %p93 = por %p91, %p92
      %s95 = sadd.s32 %s94, 1
      %p98 = scmp.eq.s32.totalorder %s18, 3
      %p99 = scmp.ne.s32.totalorder %s94, %s96
      %p100 = scmp.eq.s32.totalorder %s18, 0
      %p101 = por %p99, %p100
      %p102 = scmp.ne.s32.totalorder %s94, %s96
      %p103 = scmp.eq.s32.totalorder %s23, 3
      %p104 = por %p102, %p103
      %p105 = scmp.ne.s32.totalorder %s96, %s97
      %p106 = scmp.eq.s32.totalorder %s23, 0
      %p107 = por %p105, %p106
      %p108 = scmp.ne.s32.totalorder %s96, %s97
      %p109 = scmp.eq.s32.totalorder %s24, 3
      %p110 = por %p108, %p109
      %p112 = scmp.ne.s32.totalorder %s97, %s111
      %p113 = scmp.eq.s32.totalorder %s24, 0
      %p114 = por %p112, %p113
      %s116 = sadd.s32 %s115, 1
      %p119 = scmp.eq.s32.totalorder %s18, 3
      %p120 = scmp.ne.s32.totalorder %s115, %s117
      %p121 = scmp.eq.s32.totalorder %s18, 0
      %p122 = por %p120, %p121
      %p123 = scmp.ne.s32.totalorder %s115, %s117
      %p124 = scmp.eq.s32.totalorder %s23, 3
      %p125 = por %p123, %p124
      %p126 = scmp.ne.s32.totalorder %s117, %s118
      %p127 = scmp.eq.s32.totalorder %s23, 0
      %p128 = por %p126, %p127
      %p129 = scmp.ne.s32.totalorder %s117, %s118
      %p130 = scmp.eq.s32.totalorder %s24, 3
      %p131 = por %p129, %p130
      %p133 = scmp.ne.s32.totalorder %s118, %s132
      %p134 = scmp.eq.s32.totalorder %s24, 0
      %p135 = por %p133, %p134
      %s136 = ssub.s32 %s18, %s25
      %p137 = scmp.eq.s32.totalorder %s136, 0
      %s139 = sadd.s32 %s138, 1
      %s140 = scalar_select %p137, %s138, %s139
      %p143 = pneg %p137
      %p144 = scmp.eq.s32.totalorder %s18, 3
      %p145 = por %p143, %p144
      %p146 = scmp.ne.s32.totalorder %s138, %s141
      %p147 = scmp.eq.s32.totalorder %s18, 0
      %p148 = por %p146, %p147
      %p149 = scmp.ne.s32.totalorder %s138, %s141
      %p150 = scmp.eq.s32.totalorder %s23, 3
      %p151 = por %p149, %p150
      %p152 = scmp.ne.s32.totalorder %s141, %s142
      %p153 = scmp.eq.s32.totalorder %s23, 0
      %p154 = por %p152, %p153
      %p155 = scmp.ne.s32.totalorder %s141, %s142
      %p156 = scmp.eq.s32.totalorder %s24, 3
      %p157 = por %p155, %p156
      %p159 = scmp.ne.s32.totalorder %s142, %s158
      %p160 = scmp.eq.s32.totalorder %s24, 0
      %p161 = por %p159, %p160
      %p162 = scmp.le.s32.totalorder 1, %s18
      %p163 = scmp.lt.s32.totalorder %s18, 5
      %p164 = pnand %p162, %p163
      %p165 = pneg %p164
      // Predicated region
      $region9: #{tpu_custom_call.1} parent=5 // pred_check
        _
      $region10: #{tpu_custom_call.1} parent=5 // pred_check_branch
        %167 = sbr.rel (%p164) target = $region12
      $region11: #{tpu_custom_call.1} parent=5 // pred_region
        %s168 = ssub.s32 %s18, 1
        // Predicated region
        $region13: #{tpu_custom_call.1} parent=11 // pred_check
          %p169 = pneg %p65
        $region14: #{tpu_custom_call.1} parent=11 // pred_check_branch
          %171 = sbr.rel (%p169) target = $region16
        $region15: #{tpu_custom_call.1} parent=11 // pred_region
          %s173 = ssub.s32 12288, 12288
          %174 = vsyncadd [#allocation6], %s173
          %s175 = sshll.u32 [#allocation5], 4
          %s176 = int_to_ptr.vmem [resolvable:$true] %s175
          %181 = dma.hbm_to_vmem [thread:$0]  %s1, 12288, %s176, [#allocation6], 64, 64, 4
        $region16: #{tpu_custom_call.1} parent=11 // pred_fallthru
          _
        // Predicated region
        $region17: #{tpu_custom_call.1} parent=11 // pred_check
          %p182 = pneg %p86
        $region18: #{tpu_custom_call.1} parent=11 // pred_check_branch
          %184 = sbr.rel (%p182) target = $region20
        $region19: #{tpu_custom_call.1} parent=11 // pred_region
          _
        $region20: #{tpu_custom_call.1} parent=11 // pred_fallthru
          _
        // Predicated region
        $region21: #{tpu_custom_call.1} parent=11 // pred_check
          %p185 = pneg %p107
        $region22: #{tpu_custom_call.1} parent=11 // pred_check_branch
          %187 = sbr.rel (%p185) target = $region24
        $region23: #{tpu_custom_call.1} parent=11 // pred_region
          %s189 = ssub.s32 1024, 1024
          %190 = vsyncadd [#allocation6], %s189
          %s191 = sshll.u32 [#allocation7], 4
          %s192 = int_to_ptr.vmem [resolvable:$true] %s191
          %197 = dma.hbm_to_vmem [thread:$0]  %s3, 1024, %s192, [#allocation6], 64, 64, 4
        $region24: #{tpu_custom_call.1} parent=11 // pred_fallthru
          _
        // Predicated region
        $region25: #{tpu_custom_call.1} parent=11 // pred_check
          %p198 = pneg %p128
        $region26: #{tpu_custom_call.1} parent=11 // pred_check_branch
          %200 = sbr.rel (%p198) target = $region28
        $region27: #{tpu_custom_call.1} parent=11 // pred_region
          _
        $region28: #{tpu_custom_call.1} parent=11 // pred_fallthru
          _
      $region12: #{tpu_custom_call.1} parent=5 // pred_fallthru
        _
      %p201 = scmp.lt.s32.totalorder %s18, 4
      // Predicated region
      $region29: #{tpu_custom_call.1} parent=5 // pred_check
        %p202 = pneg %p201
      $region30: #{tpu_custom_call.1} parent=5 // pred_check_branch
        %204 = sbr.rel (%p202) target = $region32
      $region31: #{tpu_custom_call.1} parent=5 // pred_region
        // Predicated region
        $region33: #{tpu_custom_call.1} parent=31 // pred_check
          %p205 = pneg %p38
        $region34: #{tpu_custom_call.1} parent=31 // pred_check_branch
          %207 = sbr.rel (%p205) target = $region36
        $region35: #{tpu_custom_call.1} parent=31 // pred_region
          %s208 = sand.u32 %s28, 1
          %s209 = scalar_lea.sflag [#allocation3], %s208
          %s210 = sand.u32 %s28, 1
          %s211 = smul.addr %s210, 128
          %s212 = scalar_lea.vmem [#allocation2], %s211
          %s213 = smul.u32 32, %s18
          %s215 = ssub.s32 2048, 2048
          %216 = vsyncadd %s209, %s215
          %s217 = smul.addr %s213, 64
          %s218 = scalar_lea.hbm %s0, %s217
          %s219 = sshll.u32 %s212, 4
          %s220 = int_to_ptr.vmem [resolvable:$true] %s219
          %225 = dma.hbm_to_vmem [thread:$0]  %s218, 2048, %s220, %s209, 64, 64, 4
        $region36: #{tpu_custom_call.1} parent=31 // pred_fallthru
          _
      $region32: #{tpu_custom_call.1} parent=5 // pred_fallthru
        _
      %p226 = scmp.le.s32.totalorder 1, %s18
      %p227 = scmp.lt.s32.totalorder %s18, 5
      %p228 = pnand %p226, %p227
      %p229 = pneg %p228
      // Predicated region
      $region37: #{tpu_custom_call.1} parent=5 // pred_check
        _
      $region38: #{tpu_custom_call.1} parent=5 // pred_check_branch
        %231 = sbr.rel (%p228) target = $region40
      $region39: #{tpu_custom_call.1} parent=5 // pred_region
        %s232 = ssub.s32 %s18, 1
        %s233 = sand.u32 %s31, 1
        %s234 = scalar_lea.sflag [#allocation3], %s233
        %s235 = sand.u32 %s31, 1
        %s236 = smul.addr %s235, 128
        %s237 = scalar_lea.vmem [#allocation2], %s236
        // Predicated region
        $region41: #{tpu_custom_call.1} parent=39 // pred_check
          %p238 = pneg %p44
        $region42: #{tpu_custom_call.1} parent=39 // pred_check_branch
          %240 = sbr.rel (%p238) target = $region44
        $region43: #{tpu_custom_call.1} parent=39 // pred_region
          %241 = dma.done %s234, 2048
        $region44: #{tpu_custom_call.1} parent=39 // pred_fallthru
          _
        // Predicated region
        $region45: #{tpu_custom_call.1} parent=39 // pred_check
          %p242 = pneg %p65
        $region46: #{tpu_custom_call.1} parent=39 // pred_check_branch
          %244 = sbr.rel (%p242) target = $region48
        $region47: #{tpu_custom_call.1} parent=39 // pred_region
          %245 = dma.done [#allocation6], 12288
        $region48: #{tpu_custom_call.1} parent=39 // pred_fallthru
          _
        // Predicated region
        $region49: #{tpu_custom_call.1} parent=39 // pred_check
          %p246 = pneg %p107
        $region50: #{tpu_custom_call.1} parent=39 // pred_check_branch
          %248 = sbr.rel (%p246) target = $region52
        $region51: #{tpu_custom_call.1} parent=39 // pred_region
          %249 = dma.done [#allocation6], 1024
        $region52: #{tpu_custom_call.1} parent=39 // pred_fallthru
          _
        %s250 = sand.u32 %s31, 1
        %s251 = scalar_lea.sflag [#allocation3], %s250
        %s252 = sand.u32 %s31, 1
        %s253 = smul.addr %s252, 128
        %s254 = scalar_lea.vmem [#allocation2], %s253
        %p255 = pneg %p44
        %p256 = pneg %p41
        %p257 = pneg %p65
        %p258 = pneg %p62
        %p259 = pneg %p86
        %p260 = pneg %p83
        %p261 = pneg %p107
        %p262 = pneg %p104
        %p263 = pneg %p128
        %p264 = pneg %p125
        %p265 = pneg %p154
        %p266 = pneg %p151
        %s267 = sand.u32 %s141, 1
        %s268 = scalar_lea.sflag [#allocation4], %s267
        %s269 = sand.u32 %s141, 1
        %s270 = smul.addr %s269, 16
        %s271 = scalar_lea.vmem [#allocation8], %s270
        %s272 = smul.u32 32, %s23
        %s273 = smul.u32 2, %s23
        %v275 = vlaneseq
        %v276 = vshrl.u32 %v275, 7
        %v277 = vadd.s32 %v276, 8
        %v278 = vadd.s32 %v276, 16
        %v279 = vadd.s32 %v276, 24
        %v280 = vadd.s32 %v276, 32
        %v281 = vadd.s32 %v276, 40
        %v282 = vadd.s32 %v276, 48
        %v283 = vadd.s32 %v276, 56
        %v284 = vadd.s32 %v276, 64
        %v285 = vadd.s32 %v276, 72
        %v286 = vadd.s32 %v276, 80
        %v287 = vadd.s32 %v276, 88
        %v288 = vadd.s32 %v276, 96
        %v289 = vadd.s32 %v276, 104
        %v290 = vadd.s32 %v276, 112
        %v291 = vadd.s32 %v276, 120
        %v292 = vadd.s32 %v276, 128
        %v293 = vadd.s32 %v276, 136
        %v294 = vadd.s32 %v276, 144
        %v295 = vadd.s32 %v276, 152
        %v296 = vadd.s32 %v276, 160
        %v297 = vadd.s32 %v276, 168
        %v298 = vadd.s32 %v276, 176
        %v299 = vadd.s32 %v276, 184
        %v300 = vadd.s32 %v276, 192
        %v301 = vadd.s32 %v276, 200
        %v302 = vadd.s32 %v276, 208
        %v303 = vadd.s32 %v276, 216
        %v304 = vadd.s32 %v276, 224
        %v305 = vadd.s32 %v276, 232
        %v306 = vadd.s32 %v276, 240
        %v307 = vadd.s32 %v276, 248
        %vm308 = vcmp.lt.s32.totalorder %v276, 0
        %v309 = vsub.s32 0, %v276
        %v310 = vsel %vm308, %v309, %v276
        %v311 = vshrl.u32 %v310, 4
        %v312 = vand.u32 %v310, 15
        %v313 = vsub.s32 0, %v312
        %v314 = vsel %vm308, %v313, %v312
        %vm315 = vcmp.lt.s32.totalorder %v277, 0
        %v316 = vsub.s32 0, %v277
        %v317 = vsel %vm315, %v316, %v277
        %v318 = vshrl.u32 %v317, 4
        %v319 = vand.u32 %v317, 15
        %v320 = vsub.s32 0, %v319
        %v321 = vsel %vm315, %v320, %v319
        %vm322 = vcmp.lt.s32.totalorder %v278, 0
        %v323 = vsub.s32 0, %v278
        %v324 = vsel %vm322, %v323, %v278
        %v325 = vshrl.u32 %v324, 4
        %v326 = vand.u32 %v324, 15
        %v327 = vsub.s32 0, %v326
        %v328 = vsel %vm322, %v327, %v326
        %vm329 = vcmp.lt.s32.totalorder %v279, 0
        %v330 = vsub.s32 0, %v279
        %v331 = vsel %vm329, %v330, %v279
        %v332 = vshrl.u32 %v331, 4
        %v333 = vand.u32 %v331, 15
        %v334 = vsub.s32 0, %v333
        %v335 = vsel %vm329, %v334, %v333
        %vm336 = vcmp.lt.s32.totalorder %v280, 0
        %v337 = vsub.s32 0, %v280
        %v338 = vsel %vm336, %v337, %v280
        %v339 = vshrl.u32 %v338, 4
        %v340 = vand.u32 %v338, 15
        %v341 = vsub.s32 0, %v340
        %v342 = vsel %vm336, %v341, %v340
        %vm343 = vcmp.lt.s32.totalorder %v281, 0
        %v344 = vsub.s32 0, %v281
        %v345 = vsel %vm343, %v344, %v281
        %v346 = vshrl.u32 %v345, 4
        %v347 = vand.u32 %v345, 15
        %v348 = vsub.s32 0, %v347
        %v349 = vsel %vm343, %v348, %v347
        %vm350 = vcmp.lt.s32.totalorder %v282, 0
        %v351 = vsub.s32 0, %v282
        %v352 = vsel %vm350, %v351, %v282
        %v353 = vshrl.u32 %v352, 4
        %v354 = vand.u32 %v352, 15
        %v355 = vsub.s32 0, %v354
        %v356 = vsel %vm350, %v355, %v354
        %vm357 = vcmp.lt.s32.totalorder %v283, 0
        %v358 = vsub.s32 0, %v283
        %v359 = vsel %vm357, %v358, %v283
        %v360 = vshrl.u32 %v359, 4
        %v361 = vand.u32 %v359, 15
        %v362 = vsub.s32 0, %v361
        %v363 = vsel %vm357, %v362, %v361
        %vm364 = vcmp.lt.s32.totalorder %v284, 0
        %v365 = vsub.s32 0, %v284
        %v366 = vsel %vm364, %v365, %v284
        %v367 = vshrl.u32 %v366, 4
        %v368 = vand.u32 %v366, 15
        %v369 = vsub.s32 0, %v368
        %v370 = vsel %vm364, %v369, %v368
        %vm371 = vcmp.lt.s32.totalorder %v285, 0
        %v372 = vsub.s32 0, %v285
        %v373 = vsel %vm371, %v372, %v285
        %v374 = vshrl.u32 %v373, 4
        %v375 = vand.u32 %v373, 15
        %v376 = vsub.s32 0, %v375
        %v377 = vsel %vm371, %v376, %v375
        %vm378 = vcmp.lt.s32.totalorder %v286, 0
        %v379 = vsub.s32 0, %v286
        %v380 = vsel %vm378, %v379, %v286
        %v381 = vshrl.u32 %v380, 4
        %v382 = vand.u32 %v380, 15
        %v383 = vsub.s32 0, %v382
        %v384 = vsel %vm378, %v383, %v382
        %vm385 = vcmp.lt.s32.totalorder %v287, 0
        %v386 = vsub.s32 0, %v287
        %v387 = vsel %vm385, %v386, %v287
        %v388 = vshrl.u32 %v387, 4
        %v389 = vand.u32 %v387, 15
        %v390 = vsub.s32 0, %v389
        %v391 = vsel %vm385, %v390, %v389
        %vm392 = vcmp.lt.s32.totalorder %v288, 0
        %v393 = vsub.s32 0, %v288
        %v394 = vsel %vm392, %v393, %v288
        %v395 = vshrl.u32 %v394, 4
        %v396 = vand.u32 %v394, 15
        %v397 = vsub.s32 0, %v396
        %v398 = vsel %vm392, %v397, %v396
        %vm399 = vcmp.lt.s32.totalorder %v289, 0
        %v400 = vsub.s32 0, %v289
        %v401 = vsel %vm399, %v400, %v289
        %v402 = vshrl.u32 %v401, 4
        %v403 = vand.u32 %v401, 15
        %v404 = vsub.s32 0, %v403
        %v405 = vsel %vm399, %v404, %v403
        %vm406 = vcmp.lt.s32.totalorder %v290, 0
        %v407 = vsub.s32 0, %v290
        %v408 = vsel %vm406, %v407, %v290
        %v409 = vshrl.u32 %v408, 4
        %v410 = vand.u32 %v408, 15
        %v411 = vsub.s32 0, %v410
        %v412 = vsel %vm406, %v411, %v410
        %vm413 = vcmp.lt.s32.totalorder %v291, 0
        %v414 = vsub.s32 0, %v291
        %v415 = vsel %vm413, %v414, %v291
        %v416 = vshrl.u32 %v415, 4
        %v417 = vand.u32 %v415, 15
        %v418 = vsub.s32 0, %v417
        %v419 = vsel %vm413, %v418, %v417
        %vm420 = vcmp.lt.s32.totalorder %v292, 0
        %v421 = vsub.s32 0, %v292
        %v422 = vsel %vm420, %v421, %v292
        %v423 = vshrl.u32 %v422, 4
        %v424 = vand.u32 %v422, 15
        %v425 = vsub.s32 0, %v424
        %v426 = vsel %vm420, %v425, %v424
        %vm427 = vcmp.lt.s32.totalorder %v293, 0
        %v428 = vsub.s32 0, %v293
        %v429 = vsel %vm427, %v428, %v293
        %v430 = vshrl.u32 %v429, 4
        %v431 = vand.u32 %v429, 15
        %v432 = vsub.s32 0, %v431
        %v433 = vsel %vm427, %v432, %v431
        %vm434 = vcmp.lt.s32.totalorder %v294, 0
        %v435 = vsub.s32 0, %v294
        %v436 = vsel %vm434, %v435, %v294
        %v437 = vshrl.u32 %v436, 4
        %v438 = vand.u32 %v436, 15
        %v439 = vsub.s32 0, %v438
        %v440 = vsel %vm434, %v439, %v438
        %vm441 = vcmp.lt.s32.totalorder %v295, 0
        %v442 = vsub.s32 0, %v295
        %v443 = vsel %vm441, %v442, %v295
        %v444 = vshrl.u32 %v443, 4
        %v445 = vand.u32 %v443, 15
        %v446 = vsub.s32 0, %v445
        %v447 = vsel %vm441, %v446, %v445
        %vm448 = vcmp.lt.s32.totalorder %v296, 0
        %v449 = vsub.s32 0, %v296
        %v450 = vsel %vm448, %v449, %v296
        %v451 = vshrl.u32 %v450, 4
        %v452 = vand.u32 %v450, 15
        %v453 = vsub.s32 0, %v452
        %v454 = vsel %vm448, %v453, %v452
        %vm455 = vcmp.lt.s32.totalorder %v297, 0
        %v456 = vsub.s32 0, %v297
        %v457 = vsel %vm455, %v456, %v297
        %v458 = vshrl.u32 %v457, 4
        %v459 = vand.u32 %v457, 15
        %v460 = vsub.s32 0, %v459
        %v461 = vsel %vm455, %v460, %v459
        %vm462 = vcmp.lt.s32.totalorder %v298, 0
        %v463 = vsub.s32 0, %v298
        %v464 = vsel %vm462, %v463, %v298
        %v465 = vshrl.u32 %v464, 4
        %v466 = vand.u32 %v464, 15
        %v467 = vsub.s32 0, %v466
        %v468 = vsel %vm462, %v467, %v466
        %vm469 = vcmp.lt.s32.totalorder %v299, 0
        %v470 = vsub.s32 0, %v299
        %v471 = vsel %vm469, %v470, %v299
        %v472 = vshrl.u32 %v471, 4
        %v473 = vand.u32 %v471, 15
        %v474 = vsub.s32 0, %v473
        %v475 = vsel %vm469, %v474, %v473
        %vm476 = vcmp.lt.s32.totalorder %v300, 0
        %v477 = vsub.s32 0, %v300
        %v478 = vsel %vm476, %v477, %v300
        %v479 = vshrl.u32 %v478, 4
        %v480 = vand.u32 %v478, 15
        %v481 = vsub.s32 0, %v480
        %v482 = vsel %vm476, %v481, %v480
        %vm483 = vcmp.lt.s32.totalorder %v301, 0
        %v484 = vsub.s32 0, %v301
        %v485 = vsel %vm483, %v484, %v301
        %v486 = vshrl.u32 %v485, 4
        %v487 = vand.u32 %v485, 15
        %v488 = vsub.s32 0, %v487
        %v489 = vsel %vm483, %v488, %v487
        %vm490 = vcmp.lt.s32.totalorder %v302, 0
        %v491 = vsub.s32 0, %v302
        %v492 = vsel %vm490, %v491, %v302
        %v493 = vshrl.u32 %v492, 4
        %v494 = vand.u32 %v492, 15
        %v495 = vsub.s32 0, %v494
        %v496 = vsel %vm490, %v495, %v494
        %vm497 = vcmp.lt.s32.totalorder %v303, 0
        %v498 = vsub.s32 0, %v303
        %v499 = vsel %vm497, %v498, %v303
        %v500 = vshrl.u32 %v499, 4
        %v501 = vand.u32 %v499, 15
        %v502 = vsub.s32 0, %v501
        %v503 = vsel %vm497, %v502, %v501
        %vm504 = vcmp.lt.s32.totalorder %v304, 0
        %v505 = vsub.s32 0, %v304
        %v506 = vsel %vm504, %v505, %v304
        %v507 = vshrl.u32 %v506, 4
        %v508 = vand.u32 %v506, 15
        %v509 = vsub.s32 0, %v508
        %v510 = vsel %vm504, %v509, %v508
        %vm511 = vcmp.lt.s32.totalorder %v305, 0
        %v512 = vsub.s32 0, %v305
        %v513 = vsel %vm511, %v512, %v305
        %v514 = vshrl.u32 %v513, 4
        %v515 = vand.u32 %v513, 15
        %v516 = vsub.s32 0, %v515
        %v517 = vsel %vm511, %v516, %v515
        %vm518 = vcmp.lt.s32.totalorder %v306, 0
        %v519 = vsub.s32 0, %v306
        %v520 = vsel %vm518, %v519, %v306
        %v521 = vshrl.u32 %v520, 4
        %v522 = vand.u32 %v520, 15
        %v523 = vsub.s32 0, %v522
        %v524 = vsel %vm518, %v523, %v522
        %vm525 = vcmp.lt.s32.totalorder %v307, 0
        %v526 = vsub.s32 0, %v307
        %v527 = vsel %vm525, %v526, %v307
        %v528 = vshrl.u32 %v527, 4
        %v529 = vand.u32 %v527, 15
        %v530 = vsub.s32 0, %v529
        %v531 = vsel %vm525, %v530, %v529
        %vm532 = vcmp.ne.s32.totalorder %v314, 0
        %vm533 = vcmp.ne.s32.totalorder %v321, 0
        %vm534 = vcmp.ne.s32.totalorder %v328, 0
        %vm535 = vcmp.ne.s32.totalorder %v335, 0
        %vm536 = vcmp.ne.s32.totalorder %v342, 0
        %vm537 = vcmp.ne.s32.totalorder %v349, 0
        %vm538 = vcmp.ne.s32.totalorder %v356, 0
        %vm539 = vcmp.ne.s32.totalorder %v363, 0
        %vm540 = vcmp.ne.s32.totalorder %v370, 0
        %vm541 = vcmp.ne.s32.totalorder %v377, 0
        %vm542 = vcmp.ne.s32.totalorder %v384, 0
        %vm543 = vcmp.ne.s32.totalorder %v391, 0
        %vm544 = vcmp.ne.s32.totalorder %v398, 0
        %vm545 = vcmp.ne.s32.totalorder %v405, 0
        %vm546 = vcmp.ne.s32.totalorder %v412, 0
        %vm547 = vcmp.ne.s32.totalorder %v419, 0
        %vm548 = vcmp.ne.s32.totalorder %v426, 0
        %vm549 = vcmp.ne.s32.totalorder %v433, 0
        %vm550 = vcmp.ne.s32.totalorder %v440, 0
        %vm551 = vcmp.ne.s32.totalorder %v447, 0
        %vm552 = vcmp.ne.s32.totalorder %v454, 0
        %vm553 = vcmp.ne.s32.totalorder %v461, 0
        %vm554 = vcmp.ne.s32.totalorder %v468, 0
        %vm555 = vcmp.ne.s32.totalorder %v475, 0
        %vm556 = vcmp.ne.s32.totalorder %v482, 0
        %vm557 = vcmp.ne.s32.totalorder %v489, 0
        %vm558 = vcmp.ne.s32.totalorder %v496, 0
        %vm559 = vcmp.ne.s32.totalorder %v503, 0
        %vm560 = vcmp.ne.s32.totalorder %v510, 0
        %vm561 = vcmp.ne.s32.totalorder %v517, 0
        %vm562 = vcmp.ne.s32.totalorder %v524, 0
        %vm563 = vcmp.ne.s32.totalorder %v531, 0
        %vm564 = vcmp.lt.s32.totalorder %v314, 0
        %vm565 = vcmp.lt.s32.totalorder %v321, 0
        %vm566 = vcmp.lt.s32.totalorder %v328, 0
        %vm567 = vcmp.lt.s32.totalorder %v335, 0
        %vm568 = vcmp.lt.s32.totalorder %v342, 0
        %vm569 = vcmp.lt.s32.totalorder %v349, 0
        %vm570 = vcmp.lt.s32.totalorder %v356, 0
        %vm571 = vcmp.lt.s32.totalorder %v363, 0
        %vm572 = vcmp.lt.s32.totalorder %v370, 0
        %vm573 = vcmp.lt.s32.totalorder %v377, 0
        %vm574 = vcmp.lt.s32.totalorder %v384, 0
        %vm575 = vcmp.lt.s32.totalorder %v391, 0
        %vm576 = vcmp.lt.s32.totalorder %v398, 0
        %vm577 = vcmp.lt.s32.totalorder %v405, 0
        %vm578 = vcmp.lt.s32.totalorder %v412, 0
        %vm579 = vcmp.lt.s32.totalorder %v419, 0
        %vm580 = vcmp.lt.s32.totalorder %v426, 0
        %vm581 = vcmp.lt.s32.totalorder %v433, 0
        %vm582 = vcmp.lt.s32.totalorder %v440, 0
        %vm583 = vcmp.lt.s32.totalorder %v447, 0
        %vm584 = vcmp.lt.s32.totalorder %v454, 0
        %vm585 = vcmp.lt.s32.totalorder %v461, 0
        %vm586 = vcmp.lt.s32.totalorder %v468, 0
        %vm587 = vcmp.lt.s32.totalorder %v475, 0
        %vm588 = vcmp.lt.s32.totalorder %v482, 0
        %vm589 = vcmp.lt.s32.totalorder %v489, 0
        %vm590 = vcmp.lt.s32.totalorder %v496, 0
        %vm591 = vcmp.lt.s32.totalorder %v503, 0
        %vm592 = vcmp.lt.s32.totalorder %v510, 0
        %vm593 = vcmp.lt.s32.totalorder %v517, 0
        %vm594 = vcmp.lt.s32.totalorder %v524, 0
        %vm595 = vcmp.lt.s32.totalorder %v531, 0
        %vm596 = vmand %vm564, %vm532
        %vm597 = vmand %vm565, %vm533
        %vm598 = vmand %vm566, %vm534
        %vm599 = vmand %vm567, %vm535
        %vm600 = vmand %vm568, %vm536
        %vm601 = vmand %vm569, %vm537
        %vm602 = vmand %vm570, %vm538
        %vm603 = vmand %vm571, %vm539
        %vm604 = vmand %vm572, %vm540
        %vm605 = vmand %vm573, %vm541
        %vm606 = vmand %vm574, %vm542
        %vm607 = vmand %vm575, %vm543
        %vm608 = vmand %vm576, %vm544
        %vm609 = vmand %vm577, %vm545
        %vm610 = vmand %vm578, %vm546
        %vm611 = vmand %vm579, %vm547
        %vm612 = vmand %vm580, %vm548
        %vm613 = vmand %vm581, %vm549
        %vm614 = vmand %vm582, %vm550
        %vm615 = vmand %vm583, %vm551
        %vm616 = vmand %vm584, %vm552
        %vm617 = vmand %vm585, %vm553
        %vm618 = vmand %vm586, %vm554
        %vm619 = vmand %vm587, %vm555
        %vm620 = vmand %vm588, %vm556
        %vm621 = vmand %vm589, %vm557
        %vm622 = vmand %vm590, %vm558
        %vm623 = vmand %vm591, %vm559
        %vm624 = vmand %vm592, %vm560
        %vm625 = vmand %vm593, %vm561
        %vm626 = vmand %vm594, %vm562
        %vm627 = vmand %vm595, %vm563
        %v628 = vadd.s32 %v314, 16
        %v629 = vadd.s32 %v321, 16
        %v630 = vadd.s32 %v328, 16
        %v631 = vadd.s32 %v335, 16
        %v632 = vadd.s32 %v342, 16
        %v633 = vadd.s32 %v349, 16
        %v634 = vadd.s32 %v356, 16
        %v635 = vadd.s32 %v363, 16
        %v636 = vadd.s32 %v370, 16
        %v637 = vadd.s32 %v377, 16
        %v638 = vadd.s32 %v384, 16
        %v639 = vadd.s32 %v391, 16
        %v640 = vadd.s32 %v398, 16
        %v641 = vadd.s32 %v405, 16
        %v642 = vadd.s32 %v412, 16
        %v643 = vadd.s32 %v419, 16
        %v644 = vadd.s32 %v426, 16
        %v645 = vadd.s32 %v433, 16
        %v646 = vadd.s32 %v440, 16
        %v647 = vadd.s32 %v447, 16
        %v648 = vadd.s32 %v454, 16
        %v649 = vadd.s32 %v461, 16
        %v650 = vadd.s32 %v468, 16
        %v651 = vadd.s32 %v475, 16
        %v652 = vadd.s32 %v482, 16
        %v653 = vadd.s32 %v489, 16
        %v654 = vadd.s32 %v496, 16
        %v655 = vadd.s32 %v503, 16
        %v656 = vadd.s32 %v510, 16
        %v657 = vadd.s32 %v517, 16
        %v658 = vadd.s32 %v524, 16
        %v659 = vadd.s32 %v531, 16
        %v660 = vsel %vm596, %v628, %v314
        %v661 = vsel %vm597, %v629, %v321
        %v662 = vsel %vm598, %v630, %v328
        %v663 = vsel %vm599, %v631, %v335
        %v664 = vsel %vm600, %v632, %v342
        %v665 = vsel %vm601, %v633, %v349
        %v666 = vsel %vm602, %v634, %v356
        %v667 = vsel %vm603, %v635, %v363
        %v668 = vsel %vm604, %v636, %v370
        %v669 = vsel %vm605, %v637, %v377
        %v670 = vsel %vm606, %v638, %v384
        %v671 = vsel %vm607, %v639, %v391
        %v672 = vsel %vm608, %v640, %v398
        %v673 = vsel %vm609, %v641, %v405
        %v674 = vsel %vm610, %v642, %v412
        %v675 = vsel %vm611, %v643, %v419
        %v676 = vsel %vm612, %v644, %v426
        %v677 = vsel %vm613, %v645, %v433
        %v678 = vsel %vm614, %v646, %v440
        %v679 = vsel %vm615, %v647, %v447
        %v680 = vsel %vm616, %v648, %v454
        %v681 = vsel %vm617, %v649, %v461
        %v682 = vsel %vm618, %v650, %v468
        %v683 = vsel %vm619, %v651, %v475
        %v684 = vsel %vm620, %v652, %v482
        %v685 = vsel %vm621, %v653, %v489
        %v686 = vsel %vm622, %v654, %v496
        %v687 = vsel %vm623, %v655, %v503
        %v688 = vsel %vm624, %v656, %v510
        %v689 = vsel %vm625, %v657, %v517
        %v690 = vsel %vm626, %v658, %v524
        %v691 = vsel %vm627, %v659, %v531
        %vm692 = vcmp.ne.s32.totalorder %v660, 0
        %vm693 = vcmp.ne.s32.totalorder %v661, 0
        %vm694 = vcmp.ne.s32.totalorder %v662, 0
        %vm695 = vcmp.ne.s32.totalorder %v663, 0
        %vm696 = vcmp.ne.s32.totalorder %v664, 0
        %vm697 = vcmp.ne.s32.totalorder %v665, 0
        %vm698 = vcmp.ne.s32.totalorder %v666, 0
        %vm699 = vcmp.ne.s32.totalorder %v667, 0
        %vm700 = vcmp.ne.s32.totalorder %v668, 0
        %vm701 = vcmp.ne.s32.totalorder %v669, 0
        %vm702 = vcmp.ne.s32.totalorder %v670, 0
        %vm703 = vcmp.ne.s32.totalorder %v671, 0
        %vm704 = vcmp.ne.s32.totalorder %v672, 0
        %vm705 = vcmp.ne.s32.totalorder %v673, 0
        %vm706 = vcmp.ne.s32.totalorder %v674, 0
        %vm707 = vcmp.ne.s32.totalorder %v675, 0
        %vm708 = vcmp.ne.s32.totalorder %v676, 0
        %vm709 = vcmp.ne.s32.totalorder %v677, 0
        %vm710 = vcmp.ne.s32.totalorder %v678, 0
        %vm711 = vcmp.ne.s32.totalorder %v679, 0
        %vm712 = vcmp.ne.s32.totalorder %v680, 0
        %vm713 = vcmp.ne.s32.totalorder %v681, 0
        %vm714 = vcmp.ne.s32.totalorder %v682, 0
        %vm715 = vcmp.ne.s32.totalorder %v683, 0
        %vm716 = vcmp.ne.s32.totalorder %v684, 0
        %vm717 = vcmp.ne.s32.totalorder %v685, 0
        %vm718 = vcmp.ne.s32.totalorder %v686, 0
        %vm719 = vcmp.ne.s32.totalorder %v687, 0
        %vm720 = vcmp.ne.s32.totalorder %v688, 0
        %vm721 = vcmp.ne.s32.totalorder %v689, 0
        %vm722 = vcmp.ne.s32.totalorder %v690, 0
        %vm723 = vcmp.ne.s32.totalorder %v691, 0
        %v724 = vsel %vm692, 1, 0
        %v725 = vsel %vm693, 1, 0
        %v726 = vsel %vm694, 1, 0
        %v727 = vsel %vm695, 1, 0
        %v728 = vsel %vm696, 1, 0
        %v729 = vsel %vm697, 1, 0
        %v730 = vsel %vm698, 1, 0
        %v731 = vsel %vm699, 1, 0
        %v732 = vsel %vm700, 1, 0
        %v733 = vsel %vm701, 1, 0
        %v734 = vsel %vm702, 1, 0
        %v735 = vsel %vm703, 1, 0
        %v736 = vsel %vm704, 1, 0
        %v737 = vsel %vm705, 1, 0
        %v738 = vsel %vm706, 1, 0
        %v739 = vsel %vm707, 1, 0
        %v740 = vsel %vm708, 1, 0
        %v741 = vsel %vm709, 1, 0
        %v742 = vsel %vm710, 1, 0
        %v743 = vsel %vm711, 1, 0
        %v744 = vsel %vm712, 1, 0
        %v745 = vsel %vm713, 1, 0
        %v746 = vsel %vm714, 1, 0
        %v747 = vsel %vm715, 1, 0
        %v748 = vsel %vm716, 1, 0
        %v749 = vsel %vm717, 1, 0
        %v750 = vsel %vm718, 1, 0
        %v751 = vsel %vm719, 1, 0
        %v752 = vsel %vm720, 1, 0
        %v753 = vsel %vm721, 1, 0
        %v754 = vsel %vm722, 1, 0
        %v755 = vsel %vm723, 1, 0
        %vm756 = vcmp.eq.s32.totalorder %v724, 1
        %vm757 = vcmp.eq.s32.totalorder %v725, 1
        %vm758 = vcmp.eq.s32.totalorder %v726, 1
        %vm759 = vcmp.eq.s32.totalorder %v727, 1
        %vm760 = vcmp.eq.s32.totalorder %v728, 1
        %vm761 = vcmp.eq.s32.totalorder %v729, 1
        %vm762 = vcmp.eq.s32.totalorder %v730, 1
        %vm763 = vcmp.eq.s32.totalorder %v731, 1
        %vm764 = vcmp.eq.s32.totalorder %v732, 1
        %vm765 = vcmp.eq.s32.totalorder %v733, 1
        %vm766 = vcmp.eq.s32.totalorder %v734, 1
        %vm767 = vcmp.eq.s32.totalorder %v735, 1
        %vm768 = vcmp.eq.s32.totalorder %v736, 1
        %vm769 = vcmp.eq.s32.totalorder %v737, 1
        %vm770 = vcmp.eq.s32.totalorder %v738, 1
        %vm771 = vcmp.eq.s32.totalorder %v739, 1
        %vm772 = vcmp.eq.s32.totalorder %v740, 1
        %vm773 = vcmp.eq.s32.totalorder %v741, 1
        %vm774 = vcmp.eq.s32.totalorder %v742, 1
        %vm775 = vcmp.eq.s32.totalorder %v743, 1
        %vm776 = vcmp.eq.s32.totalorder %v744, 1
        %vm777 = vcmp.eq.s32.totalorder %v745, 1
        %vm778 = vcmp.eq.s32.totalorder %v746, 1
        %vm779 = vcmp.eq.s32.totalorder %v747, 1
        %vm780 = vcmp.eq.s32.totalorder %v748, 1
        %vm781 = vcmp.eq.s32.totalorder %v749, 1
        %vm782 = vcmp.eq.s32.totalorder %v750, 1
        %vm783 = vcmp.eq.s32.totalorder %v751, 1
        %vm784 = vcmp.eq.s32.totalorder %v752, 1
        %vm785 = vcmp.eq.s32.totalorder %v753, 1
        %vm786 = vcmp.eq.s32.totalorder %v754, 1
        %vm787 = vcmp.eq.s32.totalorder %v755, 1
        %vm788 = vcmp.ne.s32.totalorder %v660, 15
        %vm789 = vcmp.ne.s32.totalorder %v661, 15
        %vm790 = vcmp.ne.s32.totalorder %v662, 15
        %vm791 = vcmp.ne.s32.totalorder %v663, 15
        %vm792 = vcmp.ne.s32.totalorder %v664, 15
        %vm793 = vcmp.ne.s32.totalorder %v665, 15
        %vm794 = vcmp.ne.s32.totalorder %v666, 15
        %vm795 = vcmp.ne.s32.totalorder %v667, 15
        %vm796 = vcmp.ne.s32.totalorder %v668, 15
        %vm797 = vcmp.ne.s32.totalorder %v669, 15
        %vm798 = vcmp.ne.s32.totalorder %v670, 15
        %vm799 = vcmp.ne.s32.totalorder %v671, 15
        %vm800 = vcmp.ne.s32.totalorder %v672, 15
        %vm801 = vcmp.ne.s32.totalorder %v673, 15
        %vm802 = vcmp.ne.s32.totalorder %v674, 15
        %vm803 = vcmp.ne.s32.totalorder %v675, 15
        %vm804 = vcmp.ne.s32.totalorder %v676, 15
        %vm805 = vcmp.ne.s32.totalorder %v677, 15
        %vm806 = vcmp.ne.s32.totalorder %v678, 15
        %vm807 = vcmp.ne.s32.totalorder %v679, 15
        %vm808 = vcmp.ne.s32.totalorder %v680, 15
        %vm809 = vcmp.ne.s32.totalorder %v681, 15
        %vm810 = vcmp.ne.s32.totalorder %v682, 15
        %vm811 = vcmp.ne.s32.totalorder %v683, 15
        %vm812 = vcmp.ne.s32.totalorder %v684, 15
        %vm813 = vcmp.ne.s32.totalorder %v685, 15
        %vm814 = vcmp.ne.s32.totalorder %v686, 15
        %vm815 = vcmp.ne.s32.totalorder %v687, 15
        %vm816 = vcmp.ne.s32.totalorder %v688, 15
        %vm817 = vcmp.ne.s32.totalorder %v689, 15
        %vm818 = vcmp.ne.s32.totalorder %v690, 15
        %vm819 = vcmp.ne.s32.totalorder %v691, 15
        %v820 = vsel %vm788, 1, 0
        %v821 = vsel %vm789, 1, 0
        %v822 = vsel %vm790, 1, 0
        %v823 = vsel %vm791, 1, 0
        %v824 = vsel %vm792, 1, 0
        %v825 = vsel %vm793, 1, 0
        %v826 = vsel %vm794, 1, 0
        %v827 = vsel %vm795, 1, 0
        %v828 = vsel %vm796, 1, 0
        %v829 = vsel %vm797, 1, 0
        %v830 = vsel %vm798, 1, 0
        %v831 = vsel %vm799, 1, 0
        %v832 = vsel %vm800, 1, 0
        %v833 = vsel %vm801, 1, 0
        %v834 = vsel %vm802, 1, 0
        %v835 = vsel %vm803, 1, 0
        %v836 = vsel %vm804, 1, 0
        %v837 = vsel %vm805, 1, 0
        %v838 = vsel %vm806, 1, 0
        %v839 = vsel %vm807, 1, 0
        %v840 = vsel %vm808, 1, 0
        %v841 = vsel %vm809, 1, 0
        %v842 = vsel %vm810, 1, 0
        %v843 = vsel %vm811, 1, 0
        %v844 = vsel %vm812, 1, 0
        %v845 = vsel %vm813, 1, 0
        %v846 = vsel %vm814, 1, 0
        %v847 = vsel %vm815, 1, 0
        %v848 = vsel %vm816, 1, 0
        %v849 = vsel %vm817, 1, 0
        %v850 = vsel %vm818, 1, 0
        %v851 = vsel %vm819, 1, 0
        %vm852 = vcmp.eq.s32.totalorder %v820, 1
        %vm853 = vcmp.eq.s32.totalorder %v821, 1
        %vm854 = vcmp.eq.s32.totalorder %v822, 1
        %vm855 = vcmp.eq.s32.totalorder %v823, 1
        %vm856 = vcmp.eq.s32.totalorder %v824, 1
        %vm857 = vcmp.eq.s32.totalorder %v825, 1
        %vm858 = vcmp.eq.s32.totalorder %v826, 1
        %vm859 = vcmp.eq.s32.totalorder %v827, 1
        %vm860 = vcmp.eq.s32.totalorder %v828, 1
        %vm861 = vcmp.eq.s32.totalorder %v829, 1
        %vm862 = vcmp.eq.s32.totalorder %v830, 1
        %vm863 = vcmp.eq.s32.totalorder %v831, 1
        %vm864 = vcmp.eq.s32.totalorder %v832, 1
        %vm865 = vcmp.eq.s32.totalorder %v833, 1
        %vm866 = vcmp.eq.s32.totalorder %v834, 1
        %vm867 = vcmp.eq.s32.totalorder %v835, 1
        %vm868 = vcmp.eq.s32.totalorder %v836, 1
        %vm869 = vcmp.eq.s32.totalorder %v837, 1
        %vm870 = vcmp.eq.s32.totalorder %v838, 1
        %vm871 = vcmp.eq.s32.totalorder %v839, 1
        %vm872 = vcmp.eq.s32.totalorder %v840, 1
        %vm873 = vcmp.eq.s32.totalorder %v841, 1
        %vm874 = vcmp.eq.s32.totalorder %v842, 1
        %vm875 = vcmp.eq.s32.totalorder %v843, 1
        %vm876 = vcmp.eq.s32.totalorder %v844, 1
        %vm877 = vcmp.eq.s32.totalorder %v845, 1
        %vm878 = vcmp.eq.s32.totalorder %v846, 1
        %vm879 = vcmp.eq.s32.totalorder %v847, 1
        %vm880 = vcmp.eq.s32.totalorder %v848, 1
        %vm881 = vcmp.eq.s32.totalorder %v849, 1
        %vm882 = vcmp.eq.s32.totalorder %v850, 1
        %vm883 = vcmp.eq.s32.totalorder %v851, 1
        %v884 = vld [vmem:[%s237] sm:$0xf]
        %v885 = vld [vmem:[%s237 + $0x4] sm:$0xf]
        %v886 = vld [vmem:[%s237 + $0x8] sm:$0xf]
        %v887 = vld [vmem:[%s237 + $0xc] sm:$0xf]
        %v888 = vld [vmem:[%s237 + $0x10] sm:$0xf]
        %v889 = vld [vmem:[%s237 + $0x14] sm:$0xf]
        %v890 = vld [vmem:[%s237 + $0x18] sm:$0xf]
        %v891 = vld [vmem:[%s237 + $0x1c] sm:$0xf]
        %v892 = vld [vmem:[%s237 + $0x20] sm:$0xf]
        %v893 = vld [vmem:[%s237 + $0x24] sm:$0xf]
        %v894 = vld [vmem:[%s237 + $0x28] sm:$0xf]
        %v895 = vld [vmem:[%s237 + $0x2c] sm:$0xf]
        %v896 = vld [vmem:[%s237 + $0x30] sm:$0xf]
        %v897 = vld [vmem:[%s237 + $0x34] sm:$0xf]
        %v898 = vld [vmem:[%s237 + $0x38] sm:$0xf]
        %v899 = vld [vmem:[%s237 + $0x3c] sm:$0xf]
        %v900 = vld [vmem:[%s237 + $0x40] sm:$0xf]
        %v901 = vld [vmem:[%s237 + $0x44] sm:$0xf]
        %v902 = vld [vmem:[%s237 + $0x48] sm:$0xf]
        %v903 = vld [vmem:[%s237 + $0x4c] sm:$0xf]
        %v904 = vld [vmem:[%s237 + $0x50] sm:$0xf]
        %v905 = vld [vmem:[%s237 + $0x54] sm:$0xf]
        %v906 = vld [vmem:[%s237 + $0x58] sm:$0xf]
        %v907 = vld [vmem:[%s237 + $0x5c] sm:$0xf]
        %v908 = vld [vmem:[%s237 + $0x60] sm:$0xf]
        %v909 = vld [vmem:[%s237 + $0x64] sm:$0xf]
        %v910 = vld [vmem:[%s237 + $0x68] sm:$0xf]
        %v911 = vld [vmem:[%s237 + $0x6c] sm:$0xf]
        %v912 = vld [vmem:[%s237 + $0x70] sm:$0xf]
        %v913 = vld [vmem:[%s237 + $0x74] sm:$0xf]
        %v914 = vld [vmem:[%s237 + $0x78] sm:$0xf]
        %v915 = vld [vmem:[%s237 + $0x7c] sm:$0xf]
        %v916 = vunpack.c.l.bf16 %v884
        %v917 = vunpack.c.l.bf16 %v885
        %v918 = vunpack.c.l.bf16 %v886
        %v919 = vunpack.c.l.bf16 %v887
        %v920 = vunpack.c.l.bf16 %v888
        %v921 = vunpack.c.l.bf16 %v889
        %v922 = vunpack.c.l.bf16 %v890
        %v923 = vunpack.c.l.bf16 %v891
        %v924 = vunpack.c.l.bf16 %v892
        %v925 = vunpack.c.l.bf16 %v893
        %v926 = vunpack.c.l.bf16 %v894
        %v927 = vunpack.c.l.bf16 %v895
        %v928 = vunpack.c.l.bf16 %v896
        %v929 = vunpack.c.l.bf16 %v897
        %v930 = vunpack.c.l.bf16 %v898
        %v931 = vunpack.c.l.bf16 %v899
        %v932 = vunpack.c.l.bf16 %v900
        %v933 = vunpack.c.l.bf16 %v901
        %v934 = vunpack.c.l.bf16 %v902
        %v935 = vunpack.c.l.bf16 %v903
        %v936 = vunpack.c.l.bf16 %v904
        %v937 = vunpack.c.l.bf16 %v905
        %v938 = vunpack.c.l.bf16 %v906
        %v939 = vunpack.c.l.bf16 %v907
        %v940 = vunpack.c.l.bf16 %v908
        %v941 = vunpack.c.l.bf16 %v909
        %v942 = vunpack.c.l.bf16 %v910
        %v943 = vunpack.c.l.bf16 %v911
        %v944 = vunpack.c.l.bf16 %v912
        %v945 = vunpack.c.l.bf16 %v913
        %v946 = vunpack.c.l.bf16 %v914
        %v947 = vunpack.c.l.bf16 %v915
        %v949 = vrot.slane %v947, 7
        %vm982 = vcmask 1040384
        %v983 = vrot.slane %v916, 7
        %v984 = vrot.slane %v917, 7
        %v985 = vsel %vm982, %v983, %v984
        %v986 = vrot.slane %v918, 7
        %v987 = vsel %vm982, %v984, %v986
        %v988 = vrot.slane %v919, 7
        %v989 = vsel %vm982, %v986, %v988
        %v990 = vrot.slane %v920, 7
        %v991 = vsel %vm982, %v988, %v990
        %v992 = vrot.slane %v921, 7
        %v993 = vsel %vm982, %v990, %v992
        %v994 = vrot.slane %v922, 7
        %v995 = vsel %vm982, %v992, %v994
        %v996 = vrot.slane %v923, 7
        %v997 = vsel %vm982, %v994, %v996
        %v998 = vrot.slane %v924, 7
        %v999 = vsel %vm982, %v996, %v998
        %v1000 = vrot.slane %v925, 7
        %v1001 = vsel %vm982, %v998, %v1000
        %v1002 = vrot.slane %v926, 7
        %v1003 = vsel %vm982, %v1000, %v1002
        %v1004 = vrot.slane %v927, 7
        %v1005 = vsel %vm982, %v1002, %v1004
        %v1006 = vrot.slane %v928, 7
        %v1007 = vsel %vm982, %v1004, %v1006
        %v1008 = vrot.slane %v929, 7
        %v1009 = vsel %vm982, %v1006, %v1008
        %v1010 = vrot.slane %v930, 7
        %v1011 = vsel %vm982, %v1008, %v1010
        %v1012 = vrot.slane %v931, 7
        %v1013 = vsel %vm982, %v1010, %v1012
        %v1014 = vrot.slane %v932, 7
        %v1015 = vsel %vm982, %v1012, %v1014
        %v1016 = vrot.slane %v933, 7
        %v1017 = vsel %vm982, %v1014, %v1016
        %v1018 = vrot.slane %v934, 7
        %v1019 = vsel %vm982, %v1016, %v1018
        %v1020 = vrot.slane %v935, 7
        %v1021 = vsel %vm982, %v1018, %v1020
        %v1022 = vrot.slane %v936, 7
        %v1023 = vsel %vm982, %v1020, %v1022
        %v1024 = vrot.slane %v937, 7
        %v1025 = vsel %vm982, %v1022, %v1024
        %v1026 = vrot.slane %v938, 7
        %v1027 = vsel %vm982, %v1024, %v1026
        %v1028 = vrot.slane %v939, 7
        %v1029 = vsel %vm982, %v1026, %v1028
        %v1030 = vrot.slane %v940, 7
        %v1031 = vsel %vm982, %v1028, %v1030
        %v1032 = vrot.slane %v941, 7
        %v1033 = vsel %vm982, %v1030, %v1032
        %v1034 = vrot.slane %v942, 7
        %v1035 = vsel %vm982, %v1032, %v1034
        %v1036 = vrot.slane %v943, 7
        %v1037 = vsel %vm982, %v1034, %v1036
        %v1038 = vrot.slane %v944, 7
        %v1039 = vsel %vm982, %v1036, %v1038
        %v1040 = vrot.slane %v945, 7
        %v1041 = vsel %vm982, %v1038, %v1040
        %v1042 = vrot.slane %v946, 7
        %v1043 = vsel %vm982, %v1040, %v1042
        %v1044 = vsel %vm982, %v1042, %v949
        %v1077 = vsel %vm982, %v949, %v983
        %v1078 = vsel %vm756, %v1077, 0.0
        %v1079 = vsel %vm757, %v985, 0.0
        %v1080 = vsel %vm758, %v987, 0.0
        %v1081 = vsel %vm759, %v989, 0.0
        %v1082 = vsel %vm760, %v991, 0.0
        %v1083 = vsel %vm761, %v993, 0.0
        %v1084 = vsel %vm762, %v995, 0.0
        %v1085 = vsel %vm763, %v997, 0.0
        %v1086 = vsel %vm764, %v999, 0.0
        %v1087 = vsel %vm765, %v1001, 0.0
        %v1088 = vsel %vm766, %v1003, 0.0
        %v1089 = vsel %vm767, %v1005, 0.0
        %v1090 = vsel %vm768, %v1007, 0.0
        %v1091 = vsel %vm769, %v1009, 0.0
        %v1092 = vsel %vm770, %v1011, 0.0
        %v1093 = vsel %vm771, %v1013, 0.0
        %v1094 = vsel %vm772, %v1015, 0.0
        %v1095 = vsel %vm773, %v1017, 0.0
        %v1096 = vsel %vm774, %v1019, 0.0
        %v1097 = vsel %vm775, %v1021, 0.0
        %v1098 = vsel %vm776, %v1023, 0.0
        %v1099 = vsel %vm777, %v1025, 0.0
        %v1100 = vsel %vm778, %v1027, 0.0
        %v1101 = vsel %vm779, %v1029, 0.0
        %v1102 = vsel %vm780, %v1031, 0.0
        %v1103 = vsel %vm781, %v1033, 0.0
        %v1104 = vsel %vm782, %v1035, 0.0
        %v1105 = vsel %vm783, %v1037, 0.0
        %v1106 = vsel %vm784, %v1039, 0.0
        %v1107 = vsel %vm785, %v1041, 0.0
        %v1108 = vsel %vm786, %v1043, 0.0
        %v1109 = vsel %vm787, %v1044, 0.0
        %v1110 = vpack.c.bf16 %v1079, %v1078
        %v1111 = vpack.c.bf16 %v1081, %v1080
        %v1112 = vpack.c.bf16 %v1083, %v1082
        %v1113 = vpack.c.bf16 %v1085, %v1084
        %v1114 = vpack.c.bf16 %v1087, %v1086
        %v1115 = vpack.c.bf16 %v1089, %v1088
        %v1116 = vpack.c.bf16 %v1091, %v1090
        %v1117 = vpack.c.bf16 %v1093, %v1092
        %v1118 = vpack.c.bf16 %v1095, %v1094
        %v1119 = vpack.c.bf16 %v1097, %v1096
        %v1120 = vpack.c.bf16 %v1099, %v1098
        %v1121 = vpack.c.bf16 %v1101, %v1100
        %v1122 = vpack.c.bf16 %v1103, %v1102
        %v1123 = vpack.c.bf16 %v1105, %v1104
        %v1124 = vpack.c.bf16 %v1107, %v1106
        %v1125 = vpack.c.bf16 %v1109, %v1108
        %vm1126 = vcmask 1046528
        %v1127 = vrot.slane %v916, 1
        %v1128 = vrot.slane %v917, 1
        %v1129 = vsel %vm1126, %v1127, %v1128
        %v1130 = vrot.slane %v918, 1
        %v1131 = vsel %vm1126, %v1128, %v1130
        %v1132 = vrot.slane %v919, 1
        %v1133 = vsel %vm1126, %v1130, %v1132
        %v1134 = vrot.slane %v920, 1
        %v1135 = vsel %vm1126, %v1132, %v1134
        %v1136 = vrot.slane %v921, 1
        %v1137 = vsel %vm1126, %v1134, %v1136
        %v1138 = vrot.slane %v922, 1
        %v1139 = vsel %vm1126, %v1136, %v1138
        %v1140 = vrot.slane %v923, 1
        %v1141 = vsel %vm1126, %v1138, %v1140
        %v1142 = vrot.slane %v924, 1
        %v1143 = vsel %vm1126, %v1140, %v1142
        %v1144 = vrot.slane %v925, 1
        %v1145 = vsel %vm1126, %v1142, %v1144
        %v1146 = vrot.slane %v926, 1
        %v1147 = vsel %vm1126, %v1144, %v1146
        %v1148 = vrot.slane %v927, 1
        %v1149 = vsel %vm1126, %v1146, %v1148
        %v1150 = vrot.slane %v928, 1
        %v1151 = vsel %vm1126, %v1148, %v1150
        %v1152 = vrot.slane %v929, 1
        %v1153 = vsel %vm1126, %v1150, %v1152
        %v1154 = vrot.slane %v930, 1
        %v1155 = vsel %vm1126, %v1152, %v1154
        %v1156 = vrot.slane %v931, 1
        %v1157 = vsel %vm1126, %v1154, %v1156
        %v1158 = vrot.slane %v932, 1
        %v1159 = vsel %vm1126, %v1156, %v1158
        %v1160 = vrot.slane %v933, 1
        %v1161 = vsel %vm1126, %v1158, %v1160
        %v1162 = vrot.slane %v934, 1
        %v1163 = vsel %vm1126, %v1160, %v1162
        %v1164 = vrot.slane %v935, 1
        %v1165 = vsel %vm1126, %v1162, %v1164
        %v1166 = vrot.slane %v936, 1
        %v1167 = vsel %vm1126, %v1164, %v1166
        %v1168 = vrot.slane %v937, 1
        %v1169 = vsel %vm1126, %v1166, %v1168
        %v1170 = vrot.slane %v938, 1
        %v1171 = vsel %vm1126, %v1168, %v1170
        %v1172 = vrot.slane %v939, 1
        %v1173 = vsel %vm1126, %v1170, %v1172
        %v1174 = vrot.slane %v940, 1
        %v1175 = vsel %vm1126, %v1172, %v1174
        %v1176 = vrot.slane %v941, 1
        %v1177 = vsel %vm1126, %v1174, %v1176
        %v1178 = vrot.slane %v942, 1
        %v1179 = vsel %vm1126, %v1176, %v1178
        %v1180 = vrot.slane %v943, 1
        %v1181 = vsel %vm1126, %v1178, %v1180
        %v1182 = vrot.slane %v944, 1
        %v1183 = vsel %vm1126, %v1180, %v1182
        %v1184 = vrot.slane %v945, 1
        %v1185 = vsel %vm1126, %v1182, %v1184
        %v1186 = vrot.slane %v946, 1
        %v1187 = vsel %vm1126, %v1184, %v1186
        %v1188 = vrot.slane %v947, 1
        %v1189 = vsel %vm1126, %v1186, %v1188
        %v1223 = vsel %vm1126, %v1188, %v1127
        %v1224 = vsel %vm852, %v1129, 0.0
        %v1225 = vsel %vm853, %v1131, 0.0
        %v1226 = vsel %vm854, %v1133, 0.0
        %v1227 = vsel %vm855, %v1135, 0.0
        %v1228 = vsel %vm856, %v1137, 0.0
        %v1229 = vsel %vm857, %v1139, 0.0
        %v1230 = vsel %vm858, %v1141, 0.0
        %v1231 = vsel %vm859, %v1143, 0.0
        %v1232 = vsel %vm860, %v1145, 0.0
        %v1233 = vsel %vm861, %v1147, 0.0
        %v1234 = vsel %vm862, %v1149, 0.0
        %v1235 = vsel %vm863, %v1151, 0.0
        %v1236 = vsel %vm864, %v1153, 0.0
        %v1237 = vsel %vm865, %v1155, 0.0
        %v1238 = vsel %vm866, %v1157, 0.0
        %v1239 = vsel %vm867, %v1159, 0.0
        %v1240 = vsel %vm868, %v1161, 0.0
        %v1241 = vsel %vm869, %v1163, 0.0
        %v1242 = vsel %vm870, %v1165, 0.0
        %v1243 = vsel %vm871, %v1167, 0.0
        %v1244 = vsel %vm872, %v1169, 0.0
        %v1245 = vsel %vm873, %v1171, 0.0
        %v1246 = vsel %vm874, %v1173, 0.0
        %v1247 = vsel %vm875, %v1175, 0.0
        %v1248 = vsel %vm876, %v1177, 0.0
        %v1249 = vsel %vm877, %v1179, 0.0
        %v1250 = vsel %vm878, %v1181, 0.0
        %v1251 = vsel %vm879, %v1183, 0.0
        %v1252 = vsel %vm880, %v1185, 0.0
        %v1253 = vsel %vm881, %v1187, 0.0
        %v1254 = vsel %vm882, %v1189, 0.0
        %v1255 = vsel %vm883, %v1223, 0.0
        %v1256 = vpack.c.bf16 %v1225, %v1224
        %v1257 = vpack.c.bf16 %v1227, %v1226
        %v1258 = vpack.c.bf16 %v1229, %v1228
        %v1259 = vpack.c.bf16 %v1231, %v1230
        %v1260 = vpack.c.bf16 %v1233, %v1232
        %v1261 = vpack.c.bf16 %v1235, %v1234
        %v1262 = vpack.c.bf16 %v1237, %v1236
        %v1263 = vpack.c.bf16 %v1239, %v1238
        %v1264 = vpack.c.bf16 %v1241, %v1240
        %v1265 = vpack.c.bf16 %v1243, %v1242
        %v1266 = vpack.c.bf16 %v1245, %v1244
        %v1267 = vpack.c.bf16 %v1247, %v1246
        %v1268 = vpack.c.bf16 %v1249, %v1248
        %v1269 = vpack.c.bf16 %v1251, %v1250
        %v1270 = vpack.c.bf16 %v1253, %v1252
        %v1271 = vpack.c.bf16 %v1255, %v1254
        %v1272 = vld [vmem:[#allocation5] sm:$0xf]
        %v1273 = vld [vmem:[#allocation5 + $0x4] sm:$0xf]
        %v1274 = vld [vmem:[#allocation5 + $0x8] sm:$0xf]
        %v1275 = vld [vmem:[#allocation5 + $0xc] sm:$0xf]
        %v1276 = vld [vmem:[#allocation5 + $0x10] sm:$0xf]
        %v1277 = vld [vmem:[#allocation5 + $0x14] sm:$0xf]
        %v1278 = vld [vmem:[#allocation5 + $0x18] sm:$0xf]
        %v1279 = vld [vmem:[#allocation5 + $0x1c] sm:$0xf]
        %v1280 = vld [vmem:[#allocation5 + $0x20] sm:$0xf]
        %v1281 = vld [vmem:[#allocation5 + $0x24] sm:$0xf]
        %v1282 = vld [vmem:[#allocation5 + $0x28] sm:$0xf]
        %v1283 = vld [vmem:[#allocation5 + $0x2c] sm:$0xf]
        %v1284 = vld [vmem:[#allocation5 + $0x30] sm:$0xf]
        %v1285 = vld [vmem:[#allocation5 + $0x34] sm:$0xf]
        %v1286 = vld [vmem:[#allocation5 + $0x38] sm:$0xf]
        %v1287 = vld [vmem:[#allocation5 + $0x3c] sm:$0xf]
        %s1288 = scalar_lea.vmem [#allocation5], 64
        %v1289 = vld [vmem:[%s1288] sm:$0xf]
        %v1290 = vld [vmem:[%s1288 + $0x4] sm:$0xf]
        %v1291 = vld [vmem:[%s1288 + $0x8] sm:$0xf]
        %v1292 = vld [vmem:[%s1288 + $0xc] sm:$0xf]
        %v1293 = vld [vmem:[%s1288 + $0x10] sm:$0xf]
        %v1294 = vld [vmem:[%s1288 + $0x14] sm:$0xf]
        %v1295 = vld [vmem:[%s1288 + $0x18] sm:$0xf]
        %v1296 = vld [vmem:[%s1288 + $0x1c] sm:$0xf]
        %v1297 = vld [vmem:[%s1288 + $0x20] sm:$0xf]
        %v1298 = vld [vmem:[%s1288 + $0x24] sm:$0xf]
        %v1299 = vld [vmem:[%s1288 + $0x28] sm:$0xf]
        %v1300 = vld [vmem:[%s1288 + $0x2c] sm:$0xf]
        %v1301 = vld [vmem:[%s1288 + $0x30] sm:$0xf]
        %v1302 = vld [vmem:[%s1288 + $0x34] sm:$0xf]
        %v1303 = vld [vmem:[%s1288 + $0x38] sm:$0xf]
        %v1304 = vld [vmem:[%s1288 + $0x3c] sm:$0xf]
        %v1337 = vunpack.c.l.b16 %v884
        %v1338 = vunpack.c.l.b16 %v885
        %v1339 = vunpack.c.l.b16 %v886
        %v1340 = vunpack.c.l.b16 %v887
        %v1341 = vunpack.c.l.b16 %v888
        %v1342 = vunpack.c.l.b16 %v889
        %v1343 = vunpack.c.l.b16 %v890
        %v1344 = vunpack.c.l.b16 %v891
        %v1345 = vunpack.c.l.b16 %v892
        %v1346 = vunpack.c.l.b16 %v893
        %v1347 = vunpack.c.l.b16 %v894
        %v1348 = vunpack.c.l.b16 %v895
        %v1349 = vunpack.c.l.b16 %v896
        %v1350 = vunpack.c.l.b16 %v897
        %v1351 = vunpack.c.l.b16 %v898
        %v1352 = vunpack.c.l.b16 %v899
        %v1353 = vunpack.c.l.b16 %v900
        %v1354 = vunpack.c.l.b16 %v901
        %v1355 = vunpack.c.l.b16 %v902
        %v1356 = vunpack.c.l.b16 %v903
        %v1357 = vunpack.c.l.b16 %v904
        %v1358 = vunpack.c.l.b16 %v905
        %v1359 = vunpack.c.l.b16 %v906
        %v1360 = vunpack.c.l.b16 %v907
        %v1361 = vunpack.c.l.b16 %v908
        %v1362 = vunpack.c.l.b16 %v909
        %v1363 = vunpack.c.l.b16 %v910
        %v1364 = vunpack.c.l.b16 %v911
        %v1365 = vunpack.c.l.b16 %v912
        %v1366 = vunpack.c.l.b16 %v913
        %v1367 = vunpack.c.l.b16 %v914
        %v1368 = vunpack.c.l.b16 %v915
        %v1369 = vpack.c.b16 %v1338, %v1337
        %v1370 = vpack.c.b16 %v1340, %v1339
        %v1371 = vpack.c.b16 %v1342, %v1341
        %v1372 = vpack.c.b16 %v1344, %v1343
        %v1373 = vpack.c.b16 %v1346, %v1345
        %v1374 = vpack.c.b16 %v1348, %v1347
        %v1375 = vpack.c.b16 %v1350, %v1349
        %v1376 = vpack.c.b16 %v1352, %v1351
        %v1377 = vpack.c.b16 %v1354, %v1353
        %v1378 = vpack.c.b16 %v1356, %v1355
        %v1379 = vpack.c.b16 %v1358, %v1357
        %v1380 = vpack.c.b16 %v1360, %v1359
        %v1381 = vpack.c.b16 %v1362, %v1361
        %v1382 = vpack.c.b16 %v1364, %v1363
        %v1383 = vpack.c.b16 %v1366, %v1365
        %v1384 = vpack.c.b16 %v1368, %v1367
        %v1417 = vunpack.c.l.b16 %v1289
        %v1418 = vunpack.c.l.b16 %v1290
        %v1419 = vunpack.c.l.b16 %v1291
        %v1420 = vunpack.c.l.b16 %v1292
        %v1421 = vunpack.c.l.b16 %v1293
        %v1422 = vunpack.c.l.b16 %v1294
        %v1423 = vunpack.c.l.b16 %v1295
        %v1424 = vunpack.c.l.b16 %v1296
        %v1425 = vunpack.c.l.b16 %v1297
        %v1426 = vunpack.c.l.b16 %v1298
        %v1427 = vunpack.c.l.b16 %v1299
        %v1428 = vunpack.c.l.b16 %v1300
        %v1429 = vunpack.c.l.b16 %v1301
        %v1430 = vunpack.c.l.b16 %v1302
        %v1431 = vunpack.c.l.b16 %v1303
        %v1432 = vunpack.c.l.b16 %v1304
        %v1433 = vpack.c.b16 %v1418, %v1417
        %v1434 = vpack.c.b16 %v1420, %v1419
        %v1435 = vpack.c.b16 %v1422, %v1421
        %v1436 = vpack.c.b16 %v1424, %v1423
        %v1437 = vpack.c.b16 %v1426, %v1425
        %v1438 = vpack.c.b16 %v1428, %v1427
        %v1439 = vpack.c.b16 %v1430, %v1429
        %v1440 = vpack.c.b16 %v1432, %v1431
        %1449 = vmatprep.subr.bf16.mxu0 0
        %1450 = vmatpush1.bf16.msra.mxu0 %v1433
        %1451 = vmatprep.subr.bf16.mxu0 0
        %1452 = vmatpush1.bf16.msra.mxu0 %v1434
        %1453 = vmatprep.subr.bf16.mxu0 0
        %1454 = vmatpush1.bf16.msra.mxu0 %v1435
        %1455 = vmatprep.subr.bf16.mxu0 0
        %1456 = vmatpush1.bf16.msra.mxu0 %v1436
        %1457 = vmatprep.subr.bf16.mxu0 0
        %1458 = vmatpush1.bf16.msra.mxu0 %v1437
        %1459 = vmatprep.subr.bf16.mxu0 0
        %1460 = vmatpush1.bf16.msra.mxu0 %v1438
        %1461 = vmatprep.subr.bf16.mxu0 0
        %1462 = vmatpush1.bf16.msra.mxu0 %v1439
        %1463 = vmatprep.subr.bf16.mxu0 0
        %1464 = vmatpush1.bf16.msra.mxu0 %v1440
        %1465 = vmatprep.subr.bf16.mxu0 0
        %1466 = vmatpush1.bf16.msra.mxu0 0
        %1467 = vmatprep.subr.bf16.mxu0 0
        %1468 = vmatpush1.bf16.msra.mxu0 0
        %1469 = vmatprep.subr.bf16.mxu0 0
        %1470 = vmatpush1.bf16.msra.mxu0 0
        %1471 = vmatprep.subr.bf16.mxu0 0
        %1472 = vmatpush1.bf16.msra.mxu0 0
        %1473 = vmatprep.subr.bf16.mxu0 0
        %1474 = vmatpush1.bf16.msra.mxu0 0
        %1475 = vmatprep.subr.bf16.mxu0 0
        %1476 = vmatpush1.bf16.msra.mxu0 0
        %1477 = vmatprep.subr.bf16.mxu0 0
        %1478 = vmatpush1.bf16.msra.mxu0 0
        %1479 = vmatprep.subr.bf16.mxu0 0
        %1480 = vmatpush1.bf16.msra.mxu0 0
        %1481 = vmatprep.mubr.bf16.mxu0 0
        %1482 = vmatmul.mubr.bf16.gmra.mrb[0].mxu0 %v1369
        %v1483 = vpop.f32.mrb[0].mxu0
        %v1484 = vadd.f32 0.0, %v1483
        %v1485 = vpop.f32.mrb[0].mxu0
        %v1486 = vpop.f32.mrb[0].mxu0
        %v1487 = vadd.f32 0.0, %v1486
        %v1488 = vpop.f32.mrb[0].mxu0
        %1489 = vmatprep.mubr.bf16.mxu0 0
        %1490 = vmatmul.mubr.bf16.gmra.mrb[0].mxu0 %v1370
        %v1491 = vpop.f32.mrb[0].mxu0
        %v1492 = vadd.f32 0.0, %v1491
        %v1493 = vpop.f32.mrb[0].mxu0
        %v1494 = vpop.f32.mrb[0].mxu0
        %v1495 = vadd.f32 0.0, %v1494
        %v1496 = vpop.f32.mrb[0].mxu0
        %1497 = vmatprep.mubr.bf16.mxu0 0
        %1498 = vmatmul.mubr.bf16.gmra.mrb[0].mxu0 %v1371
        %v1499 = vpop.f32.mrb[0].mxu0
        %v1500 = vadd.f32 0.0, %v1499
        %v1501 = vpop.f32.mrb[0].mxu0
        %v1502 = vpop.f32.mrb[0].mxu0
        %v1503 = vadd.f32 0.0, %v1502
        %v1504 = vpop.f32.mrb[0].mxu0
        %1505 = vmatprep.mubr.bf16.mxu0 0
        %1506 = vmatmul.mubr.bf16.gmra.mrb[0].mxu0 %v1372
        %v1507 = vpop.f32.mrb[0].mxu0
        %v1508 = vadd.f32 0.0, %v1507
        %v1509 = vpop.f32.mrb[0].mxu0
        %v1510 = vpop.f32.mrb[0].mxu0
        %v1511 = vadd.f32 0.0, %v1510
        %v1512 = vpop.f32.mrb[0].mxu0
        %1513 = vmatprep.mubr.bf16.mxu0 0
        %1514 = vmatmul.mubr.bf16.gmra.mrb[0].mxu0 %v1373
        %v1515 = vpop.f32.mrb[0].mxu0
        %v1516 = vadd.f32 0.0, %v1515
        %v1517 = vpop.f32.mrb[0].mxu0
        %v1518 = vpop.f32.mrb[0].mxu0
        %v1519 = vadd.f32 0.0, %v1518
        %v1520 = vpop.f32.mrb[0].mxu0
        %1521 = vmatprep.mubr.bf16.mxu0 0
        %1522 = vmatmul.mubr.bf16.gmra.mrb[0].mxu0 %v1374
        %v1523 = vpop.f32.mrb[0].mxu0
        %v1524 = vadd.f32 0.0, %v1523
        %v1525 = vpop.f32.mrb[0].mxu0
        %v1526 = vpop.f32.mrb[0].mxu0
        %v1527 = vadd.f32 0.0, %v1526
        %v1528 = vpop.f32.mrb[0].mxu0
        %1529 = vmatprep.mubr.bf16.mxu0 0
        %1530 = vmatmul.mubr.bf16.gmra.mrb[0].mxu0 %v1375
        %v1531 = vpop.f32.mrb[0].mxu0
        %v1532 = vadd.f32 0.0, %v1531
        %v1533 = vpop.f32.mrb[0].mxu0
        %v1534 = vpop.f32.mrb[0].mxu0
        %v1535 = vadd.f32 0.0, %v1534
        %v1536 = vpop.f32.mrb[0].mxu0
        %1537 = vmatprep.mubr.bf16.mxu0 0
        %1538 = vmatmul.mubr.bf16.gmra.mrb[0].mxu0 %v1376
        %v1539 = vpop.f32.mrb[0].mxu0
        %v1540 = vadd.f32 0.0, %v1539
        %v1541 = vpop.f32.mrb[0].mxu0
        %v1542 = vpop.f32.mrb[0].mxu0
        %v1543 = vadd.f32 0.0, %v1542
        %v1544 = vpop.f32.mrb[0].mxu0
        %1545 = vmatprep.mubr.bf16.mxu0 0
        %1546 = vmatmul.mubr.bf16.gmra.mrb[0].mxu0 %v1377
        %v1547 = vpop.f32.mrb[0].mxu0
        %v1548 = vadd.f32 0.0, %v1547
        %v1549 = vpop.f32.mrb[0].mxu0
        %v1550 = vpop.f32.mrb[0].mxu0
        %v1551 = vadd.f32 0.0, %v1550
        %v1552 = vpop.f32.mrb[0].mxu0
        %1553 = vmatprep.mubr.bf16.mxu0 0
        %1554 = vmatmul.mubr.bf16.gmra.mrb[0].mxu0 %v1378
        %v1555 = vpop.f32.mrb[0].mxu0
        %v1556 = vadd.f32 0.0, %v1555
        %v1557 = vpop.f32.mrb[0].mxu0
        %v1558 = vpop.f32.mrb[0].mxu0
        %v1559 = vadd.f32 0.0, %v1558
        %v1560 = vpop.f32.mrb[0].mxu0
        %1561 = vmatprep.mubr.bf16.mxu0 0
        %1562 = vmatmul.mubr.bf16.gmra.mrb[0].mxu0 %v1379
        %v1563 = vpop.f32.mrb[0].mxu0
        %v1564 = vadd.f32 0.0, %v1563
        %v1565 = vpop.f32.mrb[0].mxu0
        %v1566 = vpop.f32.mrb[0].mxu0
        %v1567 = vadd.f32 0.0, %v1566
        %v1568 = vpop.f32.mrb[0].mxu0
        %1569 = vmatprep.mubr.bf16.mxu0 0
        %1570 = vmatmul.mubr.bf16.gmra.mrb[0].mxu0 %v1380
        %v1571 = vpop.f32.mrb[0].mxu0
        %v1572 = vadd.f32 0.0, %v1571
        %v1573 = vpop.f32.mrb[0].mxu0
        %v1574 = vpop.f32.mrb[0].mxu0
        %v1575 = vadd.f32 0.0, %v1574
        %v1576 = vpop.f32.mrb[0].mxu0
        %1577 = vmatprep.mubr.bf16.mxu0 0
        %1578 = vmatmul.mubr.bf16.gmra.mrb[0].mxu0 %v1381
        %v1579 = vpop.f32.mrb[0].mxu0
        %v1580 = vadd.f32 0.0, %v1579
        %v1581 = vpop.f32.mrb[0].mxu0
        %v1582 = vpop.f32.mrb[0].mxu0
        %v1583 = vadd.f32 0.0, %v1582
        %v1584 = vpop.f32.mrb[0].mxu0
        %1585 = vmatprep.mubr.bf16.mxu0 0
        %1586 = vmatmul.mubr.bf16.gmra.mrb[0].mxu0 %v1382
        %v1587 = vpop.f32.mrb[0].mxu0
        %v1588 = vadd.f32 0.0, %v1587
        %v1589 = vpop.f32.mrb[0].mxu0
        %v1590 = vpop.f32.mrb[0].mxu0
        %v1591 = vadd.f32 0.0, %v1590
        %v1592 = vpop.f32.mrb[0].mxu0
        %1593 = vmatprep.mubr.bf16.mxu0 0
        %1594 = vmatmul.mubr.bf16.gmra.mrb[0].mxu0 %v1383
        %v1595 = vpop.f32.mrb[0].mxu0
        %v1596 = vadd.f32 0.0, %v1595
        %v1597 = vpop.f32.mrb[0].mxu0
        %v1598 = vpop.f32.mrb[0].mxu0
        %v1599 = vadd.f32 0.0, %v1598
        %v1600 = vpop.f32.mrb[0].mxu0
        %1601 = vmatprep.mubr.bf16.mxu0 0
        %1602 = vmatmul.mubr.bf16.gmra.mrb[0].mxu0 %v1384
        %v1603 = vpop.f32.mrb[0].mxu0
        %v1604 = vadd.f32 0.0, %v1603
        %v1605 = vpop.f32.mrb[0].mxu0
        %v1606 = vpop.f32.mrb[0].mxu0
        %v1607 = vadd.f32 0.0, %v1606
        %v1608 = vpop.f32.mrb[0].mxu0
        %1609 = vdwg.mxu0
        %v1626 = vunpack.c.l.b16 %v1272
        %v1627 = vunpack.c.l.b16 %v1273
        %v1628 = vunpack.c.l.b16 %v1274
        %v1629 = vunpack.c.l.b16 %v1275
        %v1630 = vunpack.c.l.b16 %v1276
        %v1631 = vunpack.c.l.b16 %v1277
        %v1632 = vunpack.c.l.b16 %v1278
        %v1633 = vunpack.c.l.b16 %v1279
        %v1634 = vunpack.c.l.b16 %v1280
        %v1635 = vunpack.c.l.b16 %v1281
        %v1636 = vunpack.c.l.b16 %v1282
        %v1637 = vunpack.c.l.b16 %v1283
        %v1638 = vunpack.c.l.b16 %v1284
        %v1639 = vunpack.c.l.b16 %v1285
        %v1640 = vunpack.c.l.b16 %v1286
        %v1641 = vunpack.c.l.b16 %v1287
        %v1642 = vpack.c.b16 %v1627, %v1626
        %v1643 = vpack.c.b16 %v1629, %v1628
        %v1644 = vpack.c.b16 %v1631, %v1630
        %v1645 = vpack.c.b16 %v1633, %v1632
        %v1646 = vpack.c.b16 %v1635, %v1634
        %v1647 = vpack.c.b16 %v1637, %v1636
        %v1648 = vpack.c.b16 %v1639, %v1638
        %v1649 = vpack.c.b16 %v1641, %v1640
        %1658 = vmatprep.subr.bf16.mxu0 0
        %1659 = vmatpush1.bf16.msra.mxu0 %v1642
        %1660 = vmatprep.subr.bf16.mxu0 0
        %1661 = vmatpush1.bf16.msra.mxu0 %v1643
        %1662 = vmatprep.subr.bf16.mxu0 0
        %1663 = vmatpush1.bf16.msra.mxu0 %v1644
        %1664 = vmatprep.subr.bf16.mxu0 0
        %1665 = vmatpush1.bf16.msra.mxu0 %v1645
        %1666 = vmatprep.subr.bf16.mxu0 0
        %1667 = vmatpush1.bf16.msra.mxu0 %v1646
        %1668 = vmatprep.subr.bf16.mxu0 0
        %1669 = vmatpush1.bf16.msra.mxu0 %v1647
        %1670 = vmatprep.subr.bf16.mxu0 0
        %1671 = vmatpush1.bf16.msra.mxu0 %v1648
        %1672 = vmatprep.subr.bf16.mxu0 0
        %1673 = vmatpush1.bf16.msra.mxu0 %v1649
        %1674 = vmatprep.subr.bf16.mxu0 0
        %1675 = vmatpush1.bf16.msra.mxu0 0
        %1676 = vmatprep.subr.bf16.mxu0 0
        %1677 = vmatpush1.bf16.msra.mxu0 0
        %1678 = vmatprep.subr.bf16.mxu0 0
        %1679 = vmatpush1.bf16.msra.mxu0 0
        %1680 = vmatprep.subr.bf16.mxu0 0
        %1681 = vmatpush1.bf16.msra.mxu0 0
        %1682 = vmatprep.subr.bf16.mxu0 0
        %1683 = vmatpush1.bf16.msra.mxu0 0
        %1684 = vmatprep.subr.bf16.mxu0 0
        %1685 = vmatpush1.bf16.msra.mxu0 0
        %1686 = vmatprep.subr.bf16.mxu0 0
        %1687 = vmatpush1.bf16.msra.mxu0 0
        %1688 = vmatprep.subr.bf16.mxu0 0
        %1689 = vmatpush1.bf16.msra.mxu0 0
        %1690 = vmatprep.mubr.bf16.mxu0 0
        %1691 = vmatmul.mubr.bf16.gmra.mrb[0].mxu0 %v1110
        %v1692 = vpop.f32.mrb[0].mxu0
        %v1693 = vadd.f32 %v1484, %v1692
        %v1694 = vpop.f32.mrb[0].mxu0
        %v1695 = vpop.f32.mrb[0].mxu0
        %v1696 = vadd.f32 %v1487, %v1695
        %v1697 = vpop.f32.mrb[0].mxu0
        %1698 = vmatprep.mubr.bf16.mxu0 0
        %1699 = vmatmul.mubr.bf16.gmra.mrb[0].mxu0 %v1111
        %v1700 = vpop.f32.mrb[0].mxu0
        %v1701 = vadd.f32 %v1492, %v1700
        %v1702 = vpop.f32.mrb[0].mxu0
        %v1703 = vpop.f32.mrb[0].mxu0
        %v1704 = vadd.f32 %v1495, %v1703
        %v1705 = vpop.f32.mrb[0].mxu0
        %1706 = vmatprep.mubr.bf16.mxu0 0
        %1707 = vmatmul.mubr.bf16.gmra.mrb[0].mxu0 %v1112
        %v1708 = vpop.f32.mrb[0].mxu0
        %v1709 = vadd.f32 %v1500, %v1708
        %v1710 = vpop.f32.mrb[0].mxu0
        %v1711 = vpop.f32.mrb[0].mxu0
        %v1712 = vadd.f32 %v1503, %v1711
        %v1713 = vpop.f32.mrb[0].mxu0
        %1714 = vmatprep.mubr.bf16.mxu0 0
        %1715 = vmatmul.mubr.bf16.gmra.mrb[0].mxu0 %v1113
        %v1716 = vpop.f32.mrb[0].mxu0
        %v1717 = vadd.f32 %v1508, %v1716
        %v1718 = vpop.f32.mrb[0].mxu0
        %v1719 = vpop.f32.mrb[0].mxu0
        %v1720 = vadd.f32 %v1511, %v1719
        %v1721 = vpop.f32.mrb[0].mxu0
        %1722 = vmatprep.mubr.bf16.mxu0 0
        %1723 = vmatmul.mubr.bf16.gmra.mrb[0].mxu0 %v1114
        %v1724 = vpop.f32.mrb[0].mxu0
        %v1725 = vadd.f32 %v1516, %v1724
        %v1726 = vpop.f32.mrb[0].mxu0
        %v1727 = vpop.f32.mrb[0].mxu0
        %v1728 = vadd.f32 %v1519, %v1727
        %v1729 = vpop.f32.mrb[0].mxu0
        %1730 = vmatprep.mubr.bf16.mxu0 0
        %1731 = vmatmul.mubr.bf16.gmra.mrb[0].mxu0 %v1115
        %v1732 = vpop.f32.mrb[0].mxu0
        %v1733 = vadd.f32 %v1524, %v1732
        %v1734 = vpop.f32.mrb[0].mxu0
        %v1735 = vpop.f32.mrb[0].mxu0
        %v1736 = vadd.f32 %v1527, %v1735
        %v1737 = vpop.f32.mrb[0].mxu0
        %1738 = vmatprep.mubr.bf16.mxu0 0
        %1739 = vmatmul.mubr.bf16.gmra.mrb[0].mxu0 %v1116
        %v1740 = vpop.f32.mrb[0].mxu0
        %v1741 = vadd.f32 %v1532, %v1740
        %v1742 = vpop.f32.mrb[0].mxu0
        %v1743 = vpop.f32.mrb[0].mxu0
        %v1744 = vadd.f32 %v1535, %v1743
        %v1745 = vpop.f32.mrb[0].mxu0
        %1746 = vmatprep.mubr.bf16.mxu0 0
        %1747 = vmatmul.mubr.bf16.gmra.mrb[0].mxu0 %v1117
        %v1748 = vpop.f32.mrb[0].mxu0
        %v1749 = vadd.f32 %v1540, %v1748
        %v1750 = vpop.f32.mrb[0].mxu0
        %v1751 = vpop.f32.mrb[0].mxu0
        %v1752 = vadd.f32 %v1543, %v1751
        %v1753 = vpop.f32.mrb[0].mxu0
        %1754 = vmatprep.mubr.bf16.mxu0 0
        %1755 = vmatmul.mubr.bf16.gmra.mrb[0].mxu0 %v1118
        %v1756 = vpop.f32.mrb[0].mxu0
        %v1757 = vadd.f32 %v1548, %v1756
        %v1758 = vpop.f32.mrb[0].mxu0
        %v1759 = vpop.f32.mrb[0].mxu0
        %v1760 = vadd.f32 %v1551, %v1759
        %v1761 = vpop.f32.mrb[0].mxu0
        %1762 = vmatprep.mubr.bf16.mxu0 0
        %1763 = vmatmul.mubr.bf16.gmra.mrb[0].mxu0 %v1119
        %v1764 = vpop.f32.mrb[0].mxu0
        %v1765 = vadd.f32 %v1556, %v1764
        %v1766 = vpop.f32.mrb[0].mxu0
        %v1767 = vpop.f32.mrb[0].mxu0
        %v1768 = vadd.f32 %v1559, %v1767
        %v1769 = vpop.f32.mrb[0].mxu0
        %1770 = vmatprep.mubr.bf16.mxu0 0
        %1771 = vmatmul.mubr.bf16.gmra.mrb[0].mxu0 %v1120
        %v1772 = vpop.f32.mrb[0].mxu0
        %v1773 = vadd.f32 %v1564, %v1772
        %v1774 = vpop.f32.mrb[0].mxu0
        %v1775 = vpop.f32.mrb[0].mxu0
        %v1776 = vadd.f32 %v1567, %v1775
        %v1777 = vpop.f32.mrb[0].mxu0
        %1778 = vmatprep.mubr.bf16.mxu0 0
        %1779 = vmatmul.mubr.bf16.gmra.mrb[0].mxu0 %v1121
        %v1780 = vpop.f32.mrb[0].mxu0
        %v1781 = vadd.f32 %v1572, %v1780
        %v1782 = vpop.f32.mrb[0].mxu0
        %v1783 = vpop.f32.mrb[0].mxu0
        %v1784 = vadd.f32 %v1575, %v1783
        %v1785 = vpop.f32.mrb[0].mxu0
        %1786 = vmatprep.mubr.bf16.mxu0 0
        %1787 = vmatmul.mubr.bf16.gmra.mrb[0].mxu0 %v1122
        %v1788 = vpop.f32.mrb[0].mxu0
        %v1789 = vadd.f32 %v1580, %v1788
        %v1790 = vpop.f32.mrb[0].mxu0
        %v1791 = vpop.f32.mrb[0].mxu0
        %v1792 = vadd.f32 %v1583, %v1791
        %v1793 = vpop.f32.mrb[0].mxu0
        %1794 = vmatprep.mubr.bf16.mxu0 0
        %1795 = vmatmul.mubr.bf16.gmra.mrb[0].mxu0 %v1123
        %v1796 = vpop.f32.mrb[0].mxu0
        %v1797 = vadd.f32 %v1588, %v1796
        %v1798 = vpop.f32.mrb[0].mxu0
        %v1799 = vpop.f32.mrb[0].mxu0
        %v1800 = vadd.f32 %v1591, %v1799
        %v1801 = vpop.f32.mrb[0].mxu0
        %1802 = vmatprep.mubr.bf16.mxu0 0
        %1803 = vmatmul.mubr.bf16.gmra.mrb[0].mxu0 %v1124
        %v1804 = vpop.f32.mrb[0].mxu0
        %v1805 = vadd.f32 %v1596, %v1804
        %v1806 = vpop.f32.mrb[0].mxu0
        %v1807 = vpop.f32.mrb[0].mxu0
        %v1808 = vadd.f32 %v1599, %v1807
        %v1809 = vpop.f32.mrb[0].mxu0
        %1810 = vmatprep.mubr.bf16.mxu0 0
        %1811 = vmatmul.mubr.bf16.gmra.mrb[0].mxu0 %v1125
        %v1812 = vpop.f32.mrb[0].mxu0
        %v1813 = vadd.f32 %v1604, %v1812
        %v1814 = vpop.f32.mrb[0].mxu0
        %v1815 = vpop.f32.mrb[0].mxu0
        %v1816 = vadd.f32 %v1607, %v1815
        %v1817 = vpop.f32.mrb[0].mxu0
        %1818 = vdwg.mxu0
        %s1819 = scalar_lea.vmem [#allocation5], 128
        %v1820 = vld [vmem:[%s1819] sm:$0xf]
        %v1821 = vld [vmem:[%s1819 + $0x4] sm:$0xf]
        %v1822 = vld [vmem:[%s1819 + $0x8] sm:$0xf]
        %v1823 = vld [vmem:[%s1819 + $0xc] sm:$0xf]
        %v1824 = vld [vmem:[%s1819 + $0x10] sm:$0xf]
        %v1825 = vld [vmem:[%s1819 + $0x14] sm:$0xf]
        %v1826 = vld [vmem:[%s1819 + $0x18] sm:$0xf]
        %v1827 = vld [vmem:[%s1819 + $0x1c] sm:$0xf]
        %v1828 = vld [vmem:[%s1819 + $0x20] sm:$0xf]
        %v1829 = vld [vmem:[%s1819 + $0x24] sm:$0xf]
        %v1830 = vld [vmem:[%s1819 + $0x28] sm:$0xf]
        %v1831 = vld [vmem:[%s1819 + $0x2c] sm:$0xf]
        %v1832 = vld [vmem:[%s1819 + $0x30] sm:$0xf]
        %v1833 = vld [vmem:[%s1819 + $0x34] sm:$0xf]
        %v1834 = vld [vmem:[%s1819 + $0x38] sm:$0xf]
        %v1835 = vld [vmem:[%s1819 + $0x3c] sm:$0xf]
        %v1852 = vunpack.c.l.b16 %v1820
        %v1853 = vunpack.c.l.b16 %v1821
        %v1854 = vunpack.c.l.b16 %v1822
        %v1855 = vunpack.c.l.b16 %v1823
        %v1856 = vunpack.c.l.b16 %v1824
        %v1857 = vunpack.c.l.b16 %v1825
        %v1858 = vunpack.c.l.b16 %v1826
        %v1859 = vunpack.c.l.b16 %v1827
        %v1860 = vunpack.c.l.b16 %v1828
        %v1861 = vunpack.c.l.b16 %v1829
        %v1862 = vunpack.c.l.b16 %v1830
        %v1863 = vunpack.c.l.b16 %v1831
        %v1864 = vunpack.c.l.b16 %v1832
        %v1865 = vunpack.c.l.b16 %v1833
        %v1866 = vunpack.c.l.b16 %v1834
        %v1867 = vunpack.c.l.b16 %v1835
        %v1868 = vpack.c.b16 %v1853, %v1852
        %v1869 = vpack.c.b16 %v1855, %v1854
        %v1870 = vpack.c.b16 %v1857, %v1856
        %v1871 = vpack.c.b16 %v1859, %v1858
        %v1872 = vpack.c.b16 %v1861, %v1860
        %v1873 = vpack.c.b16 %v1863, %v1862
        %v1874 = vpack.c.b16 %v1865, %v1864
        %v1875 = vpack.c.b16 %v1867, %v1866
        %1884 = vmatprep.subr.bf16.mxu0 0
        %1885 = vmatpush1.bf16.msra.mxu0 %v1868
        %1886 = vmatprep.subr.bf16.mxu0 0
        %1887 = vmatpush1.bf16.msra.mxu0 %v1869
        %1888 = vmatprep.subr.bf16.mxu0 0
        %1889 = vmatpush1.bf16.msra.mxu0 %v1870
        %1890 = vmatprep.subr.bf16.mxu0 0
        %1891 = vmatpush1.bf16.msra.mxu0 %v1871
        %1892 = vmatprep.subr.bf16.mxu0 0
        %1893 = vmatpush1.bf16.msra.mxu0 %v1872
        %1894 = vmatprep.subr.bf16.mxu0 0
        %1895 = vmatpush1.bf16.msra.mxu0 %v1873
        %1896 = vmatprep.subr.bf16.mxu0 0
        %1897 = vmatpush1.bf16.msra.mxu0 %v1874
        %1898 = vmatprep.subr.bf16.mxu0 0
        %1899 = vmatpush1.bf16.msra.mxu0 %v1875
        %1900 = vmatprep.subr.bf16.mxu0 0
        %1901 = vmatpush1.bf16.msra.mxu0 0
        %1902 = vmatprep.subr.bf16.mxu0 0
        %1903 = vmatpush1.bf16.msra.mxu0 0
        %1904 = vmatprep.subr.bf16.mxu0 0
        %1905 = vmatpush1.bf16.msra.mxu0 0
        %1906 = vmatprep.subr.bf16.mxu0 0
        %1907 = vmatpush1.bf16.msra.mxu0 0
        %1908 = vmatprep.subr.bf16.mxu0 0
        %1909 = vmatpush1.bf16.msra.mxu0 0
        %1910 = vmatprep.subr.bf16.mxu0 0
        %1911 = vmatpush1.bf16.msra.mxu0 0
        %1912 = vmatprep.subr.bf16.mxu0 0
        %1913 = vmatpush1.bf16.msra.mxu0 0
        %1914 = vmatprep.subr.bf16.mxu0 0
        %1915 = vmatpush1.bf16.msra.mxu0 0
        %1916 = vmatprep.mubr.bf16.mxu0 0
        %1917 = vmatmul.mubr.bf16.gmra.mrb[0].mxu0 %v1256
        %v1918 = vpop.f32.mrb[0].mxu0
        %v1919 = vadd.f32 0.0, %v1918
        %v1920 = vpop.f32.mrb[0].mxu0
        %v1921 = vpop.f32.mrb[0].mxu0
        %v1922 = vadd.f32 0.0, %v1921
        %v1923 = vpop.f32.mrb[0].mxu0
        %1924 = vmatprep.mubr.bf16.mxu0 0
        %1925 = vmatmul.mubr.bf16.gmra.mrb[0].mxu0 %v1257
        %v1926 = vpop.f32.mrb[0].mxu0
        %v1927 = vadd.f32 0.0, %v1926
        %v1928 = vpop.f32.mrb[0].mxu0
        %v1929 = vpop.f32.mrb[0].mxu0
        %v1930 = vadd.f32 0.0, %v1929
        %v1931 = vpop.f32.mrb[0].mxu0
        %1932 = vmatprep.mubr.bf16.mxu0 0
        %1933 = vmatmul.mubr.bf16.gmra.mrb[0].mxu0 %v1258
        %v1934 = vpop.f32.mrb[0].mxu0
        %v1935 = vadd.f32 0.0, %v1934
        %v1936 = vpop.f32.mrb[0].mxu0
        %v1937 = vpop.f32.mrb[0].mxu0
        %v1938 = vadd.f32 0.0, %v1937
        %v1939 = vpop.f32.mrb[0].mxu0
        %1940 = vmatprep.mubr.bf16.mxu0 0
        %1941 = vmatmul.mubr.bf16.gmra.mrb[0].mxu0 %v1259
        %v1942 = vpop.f32.mrb[0].mxu0
        %v1943 = vadd.f32 0.0, %v1942
        %v1944 = vpop.f32.mrb[0].mxu0
        %v1945 = vpop.f32.mrb[0].mxu0
        %v1946 = vadd.f32 0.0, %v1945
        %v1947 = vpop.f32.mrb[0].mxu0
        %1948 = vmatprep.mubr.bf16.mxu0 0
        %1949 = vmatmul.mubr.bf16.gmra.mrb[0].mxu0 %v1260
        %v1950 = vpop.f32.mrb[0].mxu0
        %v1951 = vadd.f32 0.0, %v1950
        %v1952 = vpop.f32.mrb[0].mxu0
        %v1953 = vpop.f32.mrb[0].mxu0
        %v1954 = vadd.f32 0.0, %v1953
        %v1955 = vpop.f32.mrb[0].mxu0
        %1956 = vmatprep.mubr.bf16.mxu0 0
        %1957 = vmatmul.mubr.bf16.gmra.mrb[0].mxu0 %v1261
        %v1958 = vpop.f32.mrb[0].mxu0
        %v1959 = vadd.f32 0.0, %v1958
        %v1960 = vpop.f32.mrb[0].mxu0
        %v1961 = vpop.f32.mrb[0].mxu0
        %v1962 = vadd.f32 0.0, %v1961
        %v1963 = vpop.f32.mrb[0].mxu0
        %1964 = vmatprep.mubr.bf16.mxu0 0
        %1965 = vmatmul.mubr.bf16.gmra.mrb[0].mxu0 %v1262
        %v1966 = vpop.f32.mrb[0].mxu0
        %v1967 = vadd.f32 0.0, %v1966
        %v1968 = vpop.f32.mrb[0].mxu0
        %v1969 = vpop.f32.mrb[0].mxu0
        %v1970 = vadd.f32 0.0, %v1969
        %v1971 = vpop.f32.mrb[0].mxu0
        %1972 = vmatprep.mubr.bf16.mxu0 0
        %1973 = vmatmul.mubr.bf16.gmra.mrb[0].mxu0 %v1263
        %v1974 = vpop.f32.mrb[0].mxu0
        %v1975 = vadd.f32 0.0, %v1974
        %v1976 = vpop.f32.mrb[0].mxu0
        %v1977 = vpop.f32.mrb[0].mxu0
        %v1978 = vadd.f32 0.0, %v1977
        %v1979 = vpop.f32.mrb[0].mxu0
        %1980 = vmatprep.mubr.bf16.mxu0 0
        %1981 = vmatmul.mubr.bf16.gmra.mrb[0].mxu0 %v1264
        %v1982 = vpop.f32.mrb[0].mxu0
        %v1983 = vadd.f32 0.0, %v1982
        %v1984 = vpop.f32.mrb[0].mxu0
        %v1985 = vpop.f32.mrb[0].mxu0
        %v1986 = vadd.f32 0.0, %v1985
        %v1987 = vpop.f32.mrb[0].mxu0
        %1988 = vmatprep.mubr.bf16.mxu0 0
        %1989 = vmatmul.mubr.bf16.gmra.mrb[0].mxu0 %v1265
        %v1990 = vpop.f32.mrb[0].mxu0
        %v1991 = vadd.f32 0.0, %v1990
        %v1992 = vpop.f32.mrb[0].mxu0
        %v1993 = vpop.f32.mrb[0].mxu0
        %v1994 = vadd.f32 0.0, %v1993
        %v1995 = vpop.f32.mrb[0].mxu0
        %1996 = vmatprep.mubr.bf16.mxu0 0
        %1997 = vmatmul.mubr.bf16.gmra.mrb[0].mxu0 %v1266
        %v1998 = vpop.f32.mrb[0].mxu0
        %v1999 = vadd.f32 0.0, %v1998
        %v2000 = vpop.f32.mrb[0].mxu0
        %v2001 = vpop.f32.mrb[0].mxu0
        %v2002 = vadd.f32 0.0, %v2001
        %v2003 = vpop.f32.mrb[0].mxu0
        %2004 = vmatprep.mubr.bf16.mxu0 0
        %2005 = vmatmul.mubr.bf16.gmra.mrb[0].mxu0 %v1267
        %v2006 = vpop.f32.mrb[0].mxu0
        %v2007 = vadd.f32 0.0, %v2006
        %v2008 = vpop.f32.mrb[0].mxu0
        %v2009 = vpop.f32.mrb[0].mxu0
        %v2010 = vadd.f32 0.0, %v2009
        %v2011 = vpop.f32.mrb[0].mxu0
        %2012 = vmatprep.mubr.bf16.mxu0 0
        %2013 = vmatmul.mubr.bf16.gmra.mrb[0].mxu0 %v1268
        %v2014 = vpop.f32.mrb[0].mxu0
        %v2015 = vadd.f32 0.0, %v2014
        %v2016 = vpop.f32.mrb[0].mxu0
        %v2017 = vpop.f32.mrb[0].mxu0
        %v2018 = vadd.f32 0.0, %v2017
        %v2019 = vpop.f32.mrb[0].mxu0
        %2020 = vmatprep.mubr.bf16.mxu0 0
        %2021 = vmatmul.mubr.bf16.gmra.mrb[0].mxu0 %v1269
        %v2022 = vpop.f32.mrb[0].mxu0
        %v2023 = vadd.f32 0.0, %v2022
        %v2024 = vpop.f32.mrb[0].mxu0
        %v2025 = vpop.f32.mrb[0].mxu0
        %v2026 = vadd.f32 0.0, %v2025
        %v2027 = vpop.f32.mrb[0].mxu0
        %2028 = vmatprep.mubr.bf16.mxu0 0
        %2029 = vmatmul.mubr.bf16.gmra.mrb[0].mxu0 %v1270
        %v2030 = vpop.f32.mrb[0].mxu0
        %v2031 = vadd.f32 0.0, %v2030
        %v2032 = vpop.f32.mrb[0].mxu0
        %v2033 = vpop.f32.mrb[0].mxu0
        %v2034 = vadd.f32 0.0, %v2033
        %v2035 = vpop.f32.mrb[0].mxu0
        %2036 = vmatprep.mubr.bf16.mxu0 0
        %2037 = vmatmul.mubr.bf16.gmra.mrb[0].mxu0 %v1271
        %v2038 = vpop.f32.mrb[0].mxu0
        %v2039 = vadd.f32 0.0, %v2038
        %v2040 = vpop.f32.mrb[0].mxu0
        %v2041 = vpop.f32.mrb[0].mxu0
        %v2042 = vadd.f32 0.0, %v2041
        %v2043 = vpop.f32.mrb[0].mxu0
        %2044 = vdwg.mxu0
        %v2045 = vadd.f32 %v1693, %v1919
        %v2046 = vadd.f32 %v1696, %v1922
        %v2047 = vadd.f32 %v1701, %v1927
        %v2048 = vadd.f32 %v1704, %v1930
        %v2049 = vadd.f32 %v1709, %v1935
        %v2050 = vadd.f32 %v1712, %v1938
        %v2051 = vadd.f32 %v1717, %v1943
        %v2052 = vadd.f32 %v1720, %v1946
        %v2053 = vadd.f32 %v1725, %v1951
        %v2054 = vadd.f32 %v1728, %v1954
        %v2055 = vadd.f32 %v1733, %v1959
        %v2056 = vadd.f32 %v1736, %v1962
        %v2057 = vadd.f32 %v1741, %v1967
        %v2058 = vadd.f32 %v1744, %v1970
        %v2059 = vadd.f32 %v1749, %v1975
        %v2060 = vadd.f32 %v1752, %v1978
        %v2061 = vadd.f32 %v1757, %v1983
        %v2062 = vadd.f32 %v1760, %v1986
        %v2063 = vadd.f32 %v1765, %v1991
        %v2064 = vadd.f32 %v1768, %v1994
        %v2065 = vadd.f32 %v1773, %v1999
        %v2066 = vadd.f32 %v1776, %v2002
        %v2067 = vadd.f32 %v1781, %v2007
        %v2068 = vadd.f32 %v1784, %v2010
        %v2069 = vadd.f32 %v1789, %v2015
        %v2070 = vadd.f32 %v1792, %v2018
        %v2071 = vadd.f32 %v1797, %v2023
        %v2072 = vadd.f32 %v1800, %v2026
        %v2073 = vadd.f32 %v1805, %v2031
        %v2074 = vadd.f32 %v1808, %v2034
        %v2075 = vadd.f32 %v1813, %v2039
        %v2076 = vadd.f32 %v1816, %v2042
        %v2077 = vld [vmem:[%s2] sm:$0x1]
        %v2079 = vlaneseq
        %v2080 = vshrl.u32 %v2079, 7
        %v2081 = vsub.s32 0, %v2080
        %v2082 = vrot.slane %v2077, %v2081
        %v2084 = vadd.f32 %v2045, %v2082
        %v2085 = vadd.f32 %v2046, %v2082
        %v2086 = vadd.f32 %v2047, %v2082
        %v2087 = vadd.f32 %v2048, %v2082
        %v2088 = vadd.f32 %v2049, %v2082
        %v2089 = vadd.f32 %v2050, %v2082
        %v2090 = vadd.f32 %v2051, %v2082
        %v2091 = vadd.f32 %v2052, %v2082
        %v2092 = vadd.f32 %v2053, %v2082
        %v2093 = vadd.f32 %v2054, %v2082
        %v2094 = vadd.f32 %v2055, %v2082
        %v2095 = vadd.f32 %v2056, %v2082
        %v2096 = vadd.f32 %v2057, %v2082
        %v2097 = vadd.f32 %v2058, %v2082
        %v2098 = vadd.f32 %v2059, %v2082
        %v2099 = vadd.f32 %v2060, %v2082
        %v2100 = vadd.f32 %v2061, %v2082
        %v2101 = vadd.f32 %v2062, %v2082
        %v2102 = vadd.f32 %v2063, %v2082
        %v2103 = vadd.f32 %v2064, %v2082
        %v2104 = vadd.f32 %v2065, %v2082
        %v2105 = vadd.f32 %v2066, %v2082
        %v2106 = vadd.f32 %v2067, %v2082
        %v2107 = vadd.f32 %v2068, %v2082
        %v2108 = vadd.f32 %v2069, %v2082
        %v2109 = vadd.f32 %v2070, %v2082
        %v2110 = vadd.f32 %v2071, %v2082
        %v2111 = vadd.f32 %v2072, %v2082
        %v2112 = vadd.f32 %v2073, %v2082
        %v2113 = vadd.f32 %v2074, %v2082
        %v2114 = vadd.f32 %v2075, %v2082
        %v2115 = vadd.f32 %v2076, %v2082
        %v2116 = vmax.f32 %v2084, 0.0
        %v2117 = vmax.f32 %v2085, 0.0
        %v2118 = vmax.f32 %v2086, 0.0
        %v2119 = vmax.f32 %v2087, 0.0
        %v2120 = vmax.f32 %v2088, 0.0
        %v2121 = vmax.f32 %v2089, 0.0
        %v2122 = vmax.f32 %v2090, 0.0
        %v2123 = vmax.f32 %v2091, 0.0
        %v2124 = vmax.f32 %v2092, 0.0
        %v2125 = vmax.f32 %v2093, 0.0
        %v2126 = vmax.f32 %v2094, 0.0
        %v2127 = vmax.f32 %v2095, 0.0
        %v2128 = vmax.f32 %v2096, 0.0
        %v2129 = vmax.f32 %v2097, 0.0
        %v2130 = vmax.f32 %v2098, 0.0
        %v2131 = vmax.f32 %v2099, 0.0
        %v2132 = vmax.f32 %v2100, 0.0
        %v2133 = vmax.f32 %v2101, 0.0
        %v2134 = vmax.f32 %v2102, 0.0
        %v2135 = vmax.f32 %v2103, 0.0
        %v2136 = vmax.f32 %v2104, 0.0
        %v2137 = vmax.f32 %v2105, 0.0
        %v2138 = vmax.f32 %v2106, 0.0
        %v2139 = vmax.f32 %v2107, 0.0
        %v2140 = vmax.f32 %v2108, 0.0
        %v2141 = vmax.f32 %v2109, 0.0
        %v2142 = vmax.f32 %v2110, 0.0
        %v2143 = vmax.f32 %v2111, 0.0
        %v2144 = vmax.f32 %v2112, 0.0
        %v2145 = vmax.f32 %v2113, 0.0
        %v2146 = vmax.f32 %v2114, 0.0
        %v2147 = vmax.f32 %v2115, 0.0
        %v2148 = vpack.c.bf16 %v2117, %v2116
        %v2149 = vpack.c.bf16 %v2119, %v2118
        %v2150 = vpack.c.bf16 %v2121, %v2120
        %v2151 = vpack.c.bf16 %v2123, %v2122
        %v2152 = vpack.c.bf16 %v2125, %v2124
        %v2153 = vpack.c.bf16 %v2127, %v2126
        %v2154 = vpack.c.bf16 %v2129, %v2128
        %v2155 = vpack.c.bf16 %v2131, %v2130
        %v2156 = vpack.c.bf16 %v2133, %v2132
        %v2157 = vpack.c.bf16 %v2135, %v2134
        %v2158 = vpack.c.bf16 %v2137, %v2136
        %v2159 = vpack.c.bf16 %v2139, %v2138
        %v2160 = vpack.c.bf16 %v2141, %v2140
        %v2161 = vpack.c.bf16 %v2143, %v2142
        %v2162 = vpack.c.bf16 %v2145, %v2144
        %v2163 = vpack.c.bf16 %v2147, %v2146
        %v2165 = vrot.slane %v2147, 7
        %v2198 = vrot.slane %v2116, 7
        %v2199 = vrot.slane %v2117, 7
        %v2200 = vsel %vm982, %v2198, %v2199
        %v2201 = vrot.slane %v2118, 7
        %v2202 = vsel %vm982, %v2199, %v2201
        %v2203 = vrot.slane %v2119, 7
        %v2204 = vsel %vm982, %v2201, %v2203
        %v2205 = vrot.slane %v2120, 7
        %v2206 = vsel %vm982, %v2203, %v2205
        %v2207 = vrot.slane %v2121, 7
        %v2208 = vsel %vm982, %v2205, %v2207
        %v2209 = vrot.slane %v2122, 7
        %v2210 = vsel %vm982, %v2207, %v2209
        %v2211 = vrot.slane %v2123, 7
        %v2212 = vsel %vm982, %v2209, %v2211
        %v2213 = vrot.slane %v2124, 7
        %v2214 = vsel %vm982, %v2211, %v2213
        %v2215 = vrot.slane %v2125, 7
        %v2216 = vsel %vm982, %v2213, %v2215
        %v2217 = vrot.slane %v2126, 7
        %v2218 = vsel %vm982, %v2215, %v2217
        %v2219 = vrot.slane %v2127, 7
        %v2220 = vsel %vm982, %v2217, %v2219
        %v2221 = vrot.slane %v2128, 7
        %v2222 = vsel %vm982, %v2219, %v2221
        %v2223 = vrot.slane %v2129, 7
        %v2224 = vsel %vm982, %v2221, %v2223
        %v2225 = vrot.slane %v2130, 7
        %v2226 = vsel %vm982, %v2223, %v2225
        %v2227 = vrot.slane %v2131, 7
        %v2228 = vsel %vm982, %v2225, %v2227
        %v2229 = vrot.slane %v2132, 7
        %v2230 = vsel %vm982, %v2227, %v2229
        %v2231 = vrot.slane %v2133, 7
        %v2232 = vsel %vm982, %v2229, %v2231
        %v2233 = vrot.slane %v2134, 7
        %v2234 = vsel %vm982, %v2231, %v2233
        %v2235 = vrot.slane %v2135, 7
        %v2236 = vsel %vm982, %v2233, %v2235
        %v2237 = vrot.slane %v2136, 7
        %v2238 = vsel %vm982, %v2235, %v2237
        %v2239 = vrot.slane %v2137, 7
        %v2240 = vsel %vm982, %v2237, %v2239
        %v2241 = vrot.slane %v2138, 7
        %v2242 = vsel %vm982, %v2239, %v2241
        %v2243 = vrot.slane %v2139, 7
        %v2244 = vsel %vm982, %v2241, %v2243
        %v2245 = vrot.slane %v2140, 7
        %v2246 = vsel %vm982, %v2243, %v2245
        %v2247 = vrot.slane %v2141, 7
        %v2248 = vsel %vm982, %v2245, %v2247
        %v2249 = vrot.slane %v2142, 7
        %v2250 = vsel %vm982, %v2247, %v2249
        %v2251 = vrot.slane %v2143, 7
        %v2252 = vsel %vm982, %v2249, %v2251
        %v2253 = vrot.slane %v2144, 7
        %v2254 = vsel %vm982, %v2251, %v2253
        %v2255 = vrot.slane %v2145, 7
        %v2256 = vsel %vm982, %v2253, %v2255
        %v2257 = vrot.slane %v2146, 7
        %v2258 = vsel %vm982, %v2255, %v2257
        %v2259 = vsel %vm982, %v2257, %v2165
        %v2292 = vsel %vm982, %v2165, %v2198
        %v2293 = vsel %vm756, %v2292, 0.0
        %v2294 = vsel %vm757, %v2200, 0.0
        %v2295 = vsel %vm758, %v2202, 0.0
        %v2296 = vsel %vm759, %v2204, 0.0
        %v2297 = vsel %vm760, %v2206, 0.0
        %v2298 = vsel %vm761, %v2208, 0.0
        %v2299 = vsel %vm762, %v2210, 0.0
        %v2300 = vsel %vm763, %v2212, 0.0
        %v2301 = vsel %vm764, %v2214, 0.0
        %v2302 = vsel %vm765, %v2216, 0.0
        %v2303 = vsel %vm766, %v2218, 0.0
        %v2304 = vsel %vm767, %v2220, 0.0
        %v2305 = vsel %vm768, %v2222, 0.0
        %v2306 = vsel %vm769, %v2224, 0.0
        %v2307 = vsel %vm770, %v2226, 0.0
        %v2308 = vsel %vm771, %v2228, 0.0
        %v2309 = vsel %vm772, %v2230, 0.0
        %v2310 = vsel %vm773, %v2232, 0.0
        %v2311 = vsel %vm774, %v2234, 0.0
        %v2312 = vsel %vm775, %v2236, 0.0
        %v2313 = vsel %vm776, %v2238, 0.0
        %v2314 = vsel %vm777, %v2240, 0.0
        %v2315 = vsel %vm778, %v2242, 0.0
        %v2316 = vsel %vm779, %v2244, 0.0
        %v2317 = vsel %vm780, %v2246, 0.0
        %v2318 = vsel %vm781, %v2248, 0.0
        %v2319 = vsel %vm782, %v2250, 0.0
        %v2320 = vsel %vm783, %v2252, 0.0
        %v2321 = vsel %vm784, %v2254, 0.0
        %v2322 = vsel %vm785, %v2256, 0.0
        %v2323 = vsel %vm786, %v2258, 0.0
        %v2324 = vsel %vm787, %v2259, 0.0
        %v2325 = vpack.c.bf16 %v2294, %v2293
        %v2326 = vpack.c.bf16 %v2296, %v2295
        %v2327 = vpack.c.bf16 %v2298, %v2297
        %v2328 = vpack.c.bf16 %v2300, %v2299
        %v2329 = vpack.c.bf16 %v2302, %v2301
        %v2330 = vpack.c.bf16 %v2304, %v2303
        %v2331 = vpack.c.bf16 %v2306, %v2305
        %v2332 = vpack.c.bf16 %v2308, %v2307
        %v2333 = vpack.c.bf16 %v2310, %v2309
        %v2334 = vpack.c.bf16 %v2312, %v2311
        %v2335 = vpack.c.bf16 %v2314, %v2313
        %v2336 = vpack.c.bf16 %v2316, %v2315
        %v2337 = vpack.c.bf16 %v2318, %v2317
        %v2338 = vpack.c.bf16 %v2320, %v2319
        %v2339 = vpack.c.bf16 %v2322, %v2321
        %v2340 = vpack.c.bf16 %v2324, %v2323
        %v2341 = vrot.slane %v2116, 1
        %v2342 = vrot.slane %v2117, 1
        %v2343 = vsel %vm1126, %v2341, %v2342
        %v2344 = vrot.slane %v2118, 1
        %v2345 = vsel %vm1126, %v2342, %v2344
        %v2346 = vrot.slane %v2119, 1
        %v2347 = vsel %vm1126, %v2344, %v2346
        %v2348 = vrot.slane %v2120, 1
        %v2349 = vsel %vm1126, %v2346, %v2348
        %v2350 = vrot.slane %v2121, 1
        %v2351 = vsel %vm1126, %v2348, %v2350
        %v2352 = vrot.slane %v2122, 1
        %v2353 = vsel %vm1126, %v2350, %v2352
        %v2354 = vrot.slane %v2123, 1
        %v2355 = vsel %vm1126, %v2352, %v2354
        %v2356 = vrot.slane %v2124, 1
        %v2357 = vsel %vm1126, %v2354, %v2356
        %v2358 = vrot.slane %v2125, 1
        %v2359 = vsel %vm1126, %v2356, %v2358
        %v2360 = vrot.slane %v2126, 1
        %v2361 = vsel %vm1126, %v2358, %v2360
        %v2362 = vrot.slane %v2127, 1
        %v2363 = vsel %vm1126, %v2360, %v2362
        %v2364 = vrot.slane %v2128, 1
        %v2365 = vsel %vm1126, %v2362, %v2364
        %v2366 = vrot.slane %v2129, 1
        %v2367 = vsel %vm1126, %v2364, %v2366
        %v2368 = vrot.slane %v2130, 1
        %v2369 = vsel %vm1126, %v2366, %v2368
        %v2370 = vrot.slane %v2131, 1
        %v2371 = vsel %vm1126, %v2368, %v2370
        %v2372 = vrot.slane %v2132, 1
        %v2373 = vsel %vm1126, %v2370, %v2372
        %v2374 = vrot.slane %v2133, 1
        %v2375 = vsel %vm1126, %v2372, %v2374
        %v2376 = vrot.slane %v2134, 1
        %v2377 = vsel %vm1126, %v2374, %v2376
        %v2378 = vrot.slane %v2135, 1
        %v2379 = vsel %vm1126, %v2376, %v2378
        %v2380 = vrot.slane %v2136, 1
        %v2381 = vsel %vm1126, %v2378, %v2380
        %v2382 = vrot.slane %v2137, 1
        %v2383 = vsel %vm1126, %v2380, %v2382
        %v2384 = vrot.slane %v2138, 1
        %v2385 = vsel %vm1126, %v2382, %v2384
        %v2386 = vrot.slane %v2139, 1
        %v2387 = vsel %vm1126, %v2384, %v2386
        %v2388 = vrot.slane %v2140, 1
        %v2389 = vsel %vm1126, %v2386, %v2388
        %v2390 = vrot.slane %v2141, 1
        %v2391 = vsel %vm1126, %v2388, %v2390
        %v2392 = vrot.slane %v2142, 1
        %v2393 = vsel %vm1126, %v2390, %v2392
        %v2394 = vrot.slane %v2143, 1
        %v2395 = vsel %vm1126, %v2392, %v2394
        %v2396 = vrot.slane %v2144, 1
        %v2397 = vsel %vm1126, %v2394, %v2396
        %v2398 = vrot.slane %v2145, 1
        %v2399 = vsel %vm1126, %v2396, %v2398
        %v2400 = vrot.slane %v2146, 1
        %v2401 = vsel %vm1126, %v2398, %v2400
        %v2402 = vrot.slane %v2147, 1
        %v2403 = vsel %vm1126, %v2400, %v2402
        %v2437 = vsel %vm1126, %v2402, %v2341
        %v2438 = vsel %vm852, %v2343, 0.0
        %v2439 = vsel %vm853, %v2345, 0.0
        %v2440 = vsel %vm854, %v2347, 0.0
        %v2441 = vsel %vm855, %v2349, 0.0
        %v2442 = vsel %vm856, %v2351, 0.0
        %v2443 = vsel %vm857, %v2353, 0.0
        %v2444 = vsel %vm858, %v2355, 0.0
        %v2445 = vsel %vm859, %v2357, 0.0
        %v2446 = vsel %vm860, %v2359, 0.0
        %v2447 = vsel %vm861, %v2361, 0.0
        %v2448 = vsel %vm862, %v2363, 0.0
        %v2449 = vsel %vm863, %v2365, 0.0
        %v2450 = vsel %vm864, %v2367, 0.0
        %v2451 = vsel %vm865, %v2369, 0.0
        %v2452 = vsel %vm866, %v2371, 0.0
        %v2453 = vsel %vm867, %v2373, 0.0
        %v2454 = vsel %vm868, %v2375, 0.0
        %v2455 = vsel %vm869, %v2377, 0.0
        %v2456 = vsel %vm870, %v2379, 0.0
        %v2457 = vsel %vm871, %v2381, 0.0
        %v2458 = vsel %vm872, %v2383, 0.0
        %v2459 = vsel %vm873, %v2385, 0.0
        %v2460 = vsel %vm874, %v2387, 0.0
        %v2461 = vsel %vm875, %v2389, 0.0
        %v2462 = vsel %vm876, %v2391, 0.0
        %v2463 = vsel %vm877, %v2393, 0.0
        %v2464 = vsel %vm878, %v2395, 0.0
        %v2465 = vsel %vm879, %v2397, 0.0
        %v2466 = vsel %vm880, %v2399, 0.0
        %v2467 = vsel %vm881, %v2401, 0.0
        %v2468 = vsel %vm882, %v2403, 0.0
        %v2469 = vsel %vm883, %v2437, 0.0
        %v2470 = vpack.c.bf16 %v2439, %v2438
        %v2471 = vpack.c.bf16 %v2441, %v2440
        %v2472 = vpack.c.bf16 %v2443, %v2442
        %v2473 = vpack.c.bf16 %v2445, %v2444
        %v2474 = vpack.c.bf16 %v2447, %v2446
        %v2475 = vpack.c.bf16 %v2449, %v2448
        %v2476 = vpack.c.bf16 %v2451, %v2450
        %v2477 = vpack.c.bf16 %v2453, %v2452
        %v2478 = vpack.c.bf16 %v2455, %v2454
        %v2479 = vpack.c.bf16 %v2457, %v2456
        %v2480 = vpack.c.bf16 %v2459, %v2458
        %v2481 = vpack.c.bf16 %v2461, %v2460
        %v2482 = vpack.c.bf16 %v2463, %v2462
        %v2483 = vpack.c.bf16 %v2465, %v2464
        %v2484 = vpack.c.bf16 %v2467, %v2466
        %v2485 = vpack.c.bf16 %v2469, %v2468
        %s2486 = scalar_lea.vmem [#allocation5], 192
        %v2487 = vld [vmem:[%s2486] sm:$0xf]
        %v2488 = vld [vmem:[%s2486 + $0x4] sm:$0xf]
        %v2489 = vld [vmem:[%s2486 + $0x8] sm:$0xf]
        %v2490 = vld [vmem:[%s2486 + $0xc] sm:$0xf]
        %v2491 = vld [vmem:[%s2486 + $0x10] sm:$0xf]
        %v2492 = vld [vmem:[%s2486 + $0x14] sm:$0xf]
        %v2493 = vld [vmem:[%s2486 + $0x18] sm:$0xf]
        %v2494 = vld [vmem:[%s2486 + $0x1c] sm:$0xf]
        %v2495 = vld [vmem:[%s2486 + $0x20] sm:$0xf]
        %v2496 = vld [vmem:[%s2486 + $0x24] sm:$0xf]
        %v2497 = vld [vmem:[%s2486 + $0x28] sm:$0xf]
        %v2498 = vld [vmem:[%s2486 + $0x2c] sm:$0xf]
        %v2499 = vld [vmem:[%s2486 + $0x30] sm:$0xf]
        %v2500 = vld [vmem:[%s2486 + $0x34] sm:$0xf]
        %v2501 = vld [vmem:[%s2486 + $0x38] sm:$0xf]
        %v2502 = vld [vmem:[%s2486 + $0x3c] sm:$0xf]
        %s2503 = scalar_lea.vmem [#allocation5], 256
        %v2504 = vld [vmem:[%s2503] sm:$0xf]
        %v2505 = vld [vmem:[%s2503 + $0x4] sm:$0xf]
        %v2506 = vld [vmem:[%s2503 + $0x8] sm:$0xf]
        %v2507 = vld [vmem:[%s2503 + $0xc] sm:$0xf]
        %v2508 = vld [vmem:[%s2503 + $0x10] sm:$0xf]
        %v2509 = vld [vmem:[%s2503 + $0x14] sm:$0xf]
        %v2510 = vld [vmem:[%s2503 + $0x18] sm:$0xf]
        %v2511 = vld [vmem:[%s2503 + $0x1c] sm:$0xf]
        %v2512 = vld [vmem:[%s2503 + $0x20] sm:$0xf]
        %v2513 = vld [vmem:[%s2503 + $0x24] sm:$0xf]
        %v2514 = vld [vmem:[%s2503 + $0x28] sm:$0xf]
        %v2515 = vld [vmem:[%s2503 + $0x2c] sm:$0xf]
        %v2516 = vld [vmem:[%s2503 + $0x30] sm:$0xf]
        %v2517 = vld [vmem:[%s2503 + $0x34] sm:$0xf]
        %v2518 = vld [vmem:[%s2503 + $0x38] sm:$0xf]
        %v2519 = vld [vmem:[%s2503 + $0x3c] sm:$0xf]
        %v2536 = vunpack.c.l.b16 %v2504
        %v2537 = vunpack.c.l.b16 %v2505
        %v2538 = vunpack.c.l.b16 %v2506
        %v2539 = vunpack.c.l.b16 %v2507
        %v2540 = vunpack.c.l.b16 %v2508
        %v2541 = vunpack.c.l.b16 %v2509
        %v2542 = vunpack.c.l.b16 %v2510
        %v2543 = vunpack.c.l.b16 %v2511
        %v2544 = vunpack.c.l.b16 %v2512
        %v2545 = vunpack.c.l.b16 %v2513
        %v2546 = vunpack.c.l.b16 %v2514
        %v2547 = vunpack.c.l.b16 %v2515
        %v2548 = vunpack.c.l.b16 %v2516
        %v2549 = vunpack.c.l.b16 %v2517
        %v2550 = vunpack.c.l.b16 %v2518
        %v2551 = vunpack.c.l.b16 %v2519
        %v2552 = vpack.c.b16 %v2537, %v2536
        %v2553 = vpack.c.b16 %v2539, %v2538
        %v2554 = vpack.c.b16 %v2541, %v2540
        %v2555 = vpack.c.b16 %v2543, %v2542
        %v2556 = vpack.c.b16 %v2545, %v2544
        %v2557 = vpack.c.b16 %v2547, %v2546
        %v2558 = vpack.c.b16 %v2549, %v2548
        %v2559 = vpack.c.b16 %v2551, %v2550
        %2568 = vmatprep.subr.bf16.mxu0 0
        %2569 = vmatpush1.bf16.msra.mxu0 %v2552
        %2570 = vmatprep.subr.bf16.mxu0 0
        %2571 = vmatpush1.bf16.msra.mxu0 %v2553
        %2572 = vmatprep.subr.bf16.mxu0 0
        %2573 = vmatpush1.bf16.msra.mxu0 %v2554
        %2574 = vmatprep.subr.bf16.mxu0 0
        %2575 = vmatpush1.bf16.msra.mxu0 %v2555
        %2576 = vmatprep.subr.bf16.mxu0 0
        %2577 = vmatpush1.bf16.msra.mxu0 %v2556
        %2578 = vmatprep.subr.bf16.mxu0 0
        %2579 = vmatpush1.bf16.msra.mxu0 %v2557
        %2580 = vmatprep.subr.bf16.mxu0 0
        %2581 = vmatpush1.bf16.msra.mxu0 %v2558
        %2582 = vmatprep.subr.bf16.mxu0 0
        %2583 = vmatpush1.bf16.msra.mxu0 %v2559
        %2584 = vmatprep.subr.bf16.mxu0 0
        %2585 = vmatpush1.bf16.msra.mxu0 0
        %2586 = vmatprep.subr.bf16.mxu0 0
        %2587 = vmatpush1.bf16.msra.mxu0 0
        %2588 = vmatprep.subr.bf16.mxu0 0
        %2589 = vmatpush1.bf16.msra.mxu0 0
        %2590 = vmatprep.subr.bf16.mxu0 0
        %2591 = vmatpush1.bf16.msra.mxu0 0
        %2592 = vmatprep.subr.bf16.mxu0 0
        %2593 = vmatpush1.bf16.msra.mxu0 0
        %2594 = vmatprep.subr.bf16.mxu0 0
        %2595 = vmatpush1.bf16.msra.mxu0 0
        %2596 = vmatprep.subr.bf16.mxu0 0
        %2597 = vmatpush1.bf16.msra.mxu0 0
        %2598 = vmatprep.subr.bf16.mxu0 0
        %2599 = vmatpush1.bf16.msra.mxu0 0
        %2600 = vmatprep.mubr.bf16.mxu0 0
        %2601 = vmatmul.mubr.bf16.gmra.mrb[0].mxu0 %v2148
        %v2602 = vpop.f32.mrb[0].mxu0
        %v2603 = vadd.f32 0.0, %v2602
        %v2604 = vpop.f32.mrb[0].mxu0
        %v2605 = vpop.f32.mrb[0].mxu0
        %v2606 = vadd.f32 0.0, %v2605
        %v2607 = vpop.f32.mrb[0].mxu0
        %2608 = vmatprep.mubr.bf16.mxu0 0
        %2609 = vmatmul.mubr.bf16.gmra.mrb[0].mxu0 %v2149
        %v2610 = vpop.f32.mrb[0].mxu0
        %v2611 = vadd.f32 0.0, %v2610
        %v2612 = vpop.f32.mrb[0].mxu0
        %v2613 = vpop.f32.mrb[0].mxu0
        %v2614 = vadd.f32 0.0, %v2613
        %v2615 = vpop.f32.mrb[0].mxu0
        %2616 = vmatprep.mubr.bf16.mxu0 0
        %2617 = vmatmul.mubr.bf16.gmra.mrb[0].mxu0 %v2150
        %v2618 = vpop.f32.mrb[0].mxu0
        %v2619 = vadd.f32 0.0, %v2618
        %v2620 = vpop.f32.mrb[0].mxu0
        %v2621 = vpop.f32.mrb[0].mxu0
        %v2622 = vadd.f32 0.0, %v2621
        %v2623 = vpop.f32.mrb[0].mxu0
        %2624 = vmatprep.mubr.bf16.mxu0 0
        %2625 = vmatmul.mubr.bf16.gmra.mrb[0].mxu0 %v2151
        %v2626 = vpop.f32.mrb[0].mxu0
        %v2627 = vadd.f32 0.0, %v2626
        %v2628 = vpop.f32.mrb[0].mxu0
        %v2629 = vpop.f32.mrb[0].mxu0
        %v2630 = vadd.f32 0.0, %v2629
        %v2631 = vpop.f32.mrb[0].mxu0
        %2632 = vmatprep.mubr.bf16.mxu0 0
        %2633 = vmatmul.mubr.bf16.gmra.mrb[0].mxu0 %v2152
        %v2634 = vpop.f32.mrb[0].mxu0
        %v2635 = vadd.f32 0.0, %v2634
        %v2636 = vpop.f32.mrb[0].mxu0
        %v2637 = vpop.f32.mrb[0].mxu0
        %v2638 = vadd.f32 0.0, %v2637
        %v2639 = vpop.f32.mrb[0].mxu0
        %2640 = vmatprep.mubr.bf16.mxu0 0
        %2641 = vmatmul.mubr.bf16.gmra.mrb[0].mxu0 %v2153
        %v2642 = vpop.f32.mrb[0].mxu0
        %v2643 = vadd.f32 0.0, %v2642
        %v2644 = vpop.f32.mrb[0].mxu0
        %v2645 = vpop.f32.mrb[0].mxu0
        %v2646 = vadd.f32 0.0, %v2645
        %v2647 = vpop.f32.mrb[0].mxu0
        %2648 = vmatprep.mubr.bf16.mxu0 0
        %2649 = vmatmul.mubr.bf16.gmra.mrb[0].mxu0 %v2154
        %v2650 = vpop.f32.mrb[0].mxu0
        %v2651 = vadd.f32 0.0, %v2650
        %v2652 = vpop.f32.mrb[0].mxu0
        %v2653 = vpop.f32.mrb[0].mxu0
        %v2654 = vadd.f32 0.0, %v2653
        %v2655 = vpop.f32.mrb[0].mxu0
        %2656 = vmatprep.mubr.bf16.mxu0 0
        %2657 = vmatmul.mubr.bf16.gmra.mrb[0].mxu0 %v2155
        %v2658 = vpop.f32.mrb[0].mxu0
        %v2659 = vadd.f32 0.0, %v2658
        %v2660 = vpop.f32.mrb[0].mxu0
        %v2661 = vpop.f32.mrb[0].mxu0
        %v2662 = vadd.f32 0.0, %v2661
        %v2663 = vpop.f32.mrb[0].mxu0
        %2664 = vmatprep.mubr.bf16.mxu0 0
        %2665 = vmatmul.mubr.bf16.gmra.mrb[0].mxu0 %v2156
        %v2666 = vpop.f32.mrb[0].mxu0
        %v2667 = vadd.f32 0.0, %v2666
        %v2668 = vpop.f32.mrb[0].mxu0
        %v2669 = vpop.f32.mrb[0].mxu0
        %v2670 = vadd.f32 0.0, %v2669
        %v2671 = vpop.f32.mrb[0].mxu0
        %2672 = vmatprep.mubr.bf16.mxu0 0
        %2673 = vmatmul.mubr.bf16.gmra.mrb[0].mxu0 %v2157
        %v2674 = vpop.f32.mrb[0].mxu0
        %v2675 = vadd.f32 0.0, %v2674
        %v2676 = vpop.f32.mrb[0].mxu0
        %v2677 = vpop.f32.mrb[0].mxu0
        %v2678 = vadd.f32 0.0, %v2677
        %v2679 = vpop.f32.mrb[0].mxu0
        %2680 = vmatprep.mubr.bf16.mxu0 0
        %2681 = vmatmul.mubr.bf16.gmra.mrb[0].mxu0 %v2158
        %v2682 = vpop.f32.mrb[0].mxu0
        %v2683 = vadd.f32 0.0, %v2682
        %v2684 = vpop.f32.mrb[0].mxu0
        %v2685 = vpop.f32.mrb[0].mxu0
        %v2686 = vadd.f32 0.0, %v2685
        %v2687 = vpop.f32.mrb[0].mxu0
        %2688 = vmatprep.mubr.bf16.mxu0 0
        %2689 = vmatmul.mubr.bf16.gmra.mrb[0].mxu0 %v2159
        %v2690 = vpop.f32.mrb[0].mxu0
        %v2691 = vadd.f32 0.0, %v2690
        %v2692 = vpop.f32.mrb[0].mxu0
        %v2693 = vpop.f32.mrb[0].mxu0
        %v2694 = vadd.f32 0.0, %v2693
        %v2695 = vpop.f32.mrb[0].mxu0
        %2696 = vmatprep.mubr.bf16.mxu0 0
        %2697 = vmatmul.mubr.bf16.gmra.mrb[0].mxu0 %v2160
        %v2698 = vpop.f32.mrb[0].mxu0
        %v2699 = vadd.f32 0.0, %v2698
        %v2700 = vpop.f32.mrb[0].mxu0
        %v2701 = vpop.f32.mrb[0].mxu0
        %v2702 = vadd.f32 0.0, %v2701
        %v2703 = vpop.f32.mrb[0].mxu0
        %2704 = vmatprep.mubr.bf16.mxu0 0
        %2705 = vmatmul.mubr.bf16.gmra.mrb[0].mxu0 %v2161
        %v2706 = vpop.f32.mrb[0].mxu0
        %v2707 = vadd.f32 0.0, %v2706
        %v2708 = vpop.f32.mrb[0].mxu0
        %v2709 = vpop.f32.mrb[0].mxu0
        %v2710 = vadd.f32 0.0, %v2709
        %v2711 = vpop.f32.mrb[0].mxu0
        %2712 = vmatprep.mubr.bf16.mxu0 0
        %2713 = vmatmul.mubr.bf16.gmra.mrb[0].mxu0 %v2162
        %v2714 = vpop.f32.mrb[0].mxu0
        %v2715 = vadd.f32 0.0, %v2714
        %v2716 = vpop.f32.mrb[0].mxu0
        %v2717 = vpop.f32.mrb[0].mxu0
        %v2718 = vadd.f32 0.0, %v2717
        %v2719 = vpop.f32.mrb[0].mxu0
        %2720 = vmatprep.mubr.bf16.mxu0 0
        %2721 = vmatmul.mubr.bf16.gmra.mrb[0].mxu0 %v2163
        %v2722 = vpop.f32.mrb[0].mxu0
        %v2723 = vadd.f32 0.0, %v2722
        %v2724 = vpop.f32.mrb[0].mxu0
        %v2725 = vpop.f32.mrb[0].mxu0
        %v2726 = vadd.f32 0.0, %v2725
        %v2727 = vpop.f32.mrb[0].mxu0
        %2728 = vdwg.mxu0
        %v2745 = vunpack.c.l.b16 %v2487
        %v2746 = vunpack.c.l.b16 %v2488
        %v2747 = vunpack.c.l.b16 %v2489
        %v2748 = vunpack.c.l.b16 %v2490
        %v2749 = vunpack.c.l.b16 %v2491
        %v2750 = vunpack.c.l.b16 %v2492
        %v2751 = vunpack.c.l.b16 %v2493
        %v2752 = vunpack.c.l.b16 %v2494
        %v2753 = vunpack.c.l.b16 %v2495
        %v2754 = vunpack.c.l.b16 %v2496
        %v2755 = vunpack.c.l.b16 %v2497
        %v2756 = vunpack.c.l.b16 %v2498
        %v2757 = vunpack.c.l.b16 %v2499
        %v2758 = vunpack.c.l.b16 %v2500
        %v2759 = vunpack.c.l.b16 %v2501
        %v2760 = vunpack.c.l.b16 %v2502
        %v2761 = vpack.c.b16 %v2746, %v2745
        %v2762 = vpack.c.b16 %v2748, %v2747
        %v2763 = vpack.c.b16 %v2750, %v2749
        %v2764 = vpack.c.b16 %v2752, %v2751
        %v2765 = vpack.c.b16 %v2754, %v2753
        %v2766 = vpack.c.b16 %v2756, %v2755
        %v2767 = vpack.c.b16 %v2758, %v2757
        %v2768 = vpack.c.b16 %v2760, %v2759
        %2777 = vmatprep.subr.bf16.mxu0 0
        %2778 = vmatpush1.bf16.msra.mxu0 %v2761
        %2779 = vmatprep.subr.bf16.mxu0 0
        %2780 = vmatpush1.bf16.msra.mxu0 %v2762
        %2781 = vmatprep.subr.bf16.mxu0 0
        %2782 = vmatpush1.bf16.msra.mxu0 %v2763
        %2783 = vmatprep.subr.bf16.mxu0 0
        %2784 = vmatpush1.bf16.msra.mxu0 %v2764
        %2785 = vmatprep.subr.bf16.mxu0 0
        %2786 = vmatpush1.bf16.msra.mxu0 %v2765
        %2787 = vmatprep.subr.bf16.mxu0 0
        %2788 = vmatpush1.bf16.msra.mxu0 %v2766
        %2789 = vmatprep.subr.bf16.mxu0 0
        %2790 = vmatpush1.bf16.msra.mxu0 %v2767
        %2791 = vmatprep.subr.bf16.mxu0 0
        %2792 = vmatpush1.bf16.msra.mxu0 %v2768
        %2793 = vmatprep.subr.bf16.mxu0 0
        %2794 = vmatpush1.bf16.msra.mxu0 0
        %2795 = vmatprep.subr.bf16.mxu0 0
        %2796 = vmatpush1.bf16.msra.mxu0 0
        %2797 = vmatprep.subr.bf16.mxu0 0
        %2798 = vmatpush1.bf16.msra.mxu0 0
        %2799 = vmatprep.subr.bf16.mxu0 0
        %2800 = vmatpush1.bf16.msra.mxu0 0
        %2801 = vmatprep.subr.bf16.mxu0 0
        %2802 = vmatpush1.bf16.msra.mxu0 0
        %2803 = vmatprep.subr.bf16.mxu0 0
        %2804 = vmatpush1.bf16.msra.mxu0 0
        %2805 = vmatprep.subr.bf16.mxu0 0
        %2806 = vmatpush1.bf16.msra.mxu0 0
        %2807 = vmatprep.subr.bf16.mxu0 0
        %2808 = vmatpush1.bf16.msra.mxu0 0
        %2809 = vmatprep.mubr.bf16.mxu0 0
        %2810 = vmatmul.mubr.bf16.gmra.mrb[0].mxu0 %v2325
        %v2811 = vpop.f32.mrb[0].mxu0
        %v2812 = vadd.f32 %v2603, %v2811
        %v2813 = vpop.f32.mrb[0].mxu0
        %v2814 = vpop.f32.mrb[0].mxu0
        %v2815 = vadd.f32 %v2606, %v2814
        %v2816 = vpop.f32.mrb[0].mxu0
        %2817 = vmatprep.mubr.bf16.mxu0 0
        %2818 = vmatmul.mubr.bf16.gmra.mrb[0].mxu0 %v2326
        %v2819 = vpop.f32.mrb[0].mxu0
        %v2820 = vadd.f32 %v2611, %v2819
        %v2821 = vpop.f32.mrb[0].mxu0
        %v2822 = vpop.f32.mrb[0].mxu0
        %v2823 = vadd.f32 %v2614, %v2822
        %v2824 = vpop.f32.mrb[0].mxu0
        %2825 = vmatprep.mubr.bf16.mxu0 0
        %2826 = vmatmul.mubr.bf16.gmra.mrb[0].mxu0 %v2327
        %v2827 = vpop.f32.mrb[0].mxu0
        %v2828 = vadd.f32 %v2619, %v2827
        %v2829 = vpop.f32.mrb[0].mxu0
        %v2830 = vpop.f32.mrb[0].mxu0
        %v2831 = vadd.f32 %v2622, %v2830
        %v2832 = vpop.f32.mrb[0].mxu0
        %2833 = vmatprep.mubr.bf16.mxu0 0
        %2834 = vmatmul.mubr.bf16.gmra.mrb[0].mxu0 %v2328
        %v2835 = vpop.f32.mrb[0].mxu0
        %v2836 = vadd.f32 %v2627, %v2835
        %v2837 = vpop.f32.mrb[0].mxu0
        %v2838 = vpop.f32.mrb[0].mxu0
        %v2839 = vadd.f32 %v2630, %v2838
        %v2840 = vpop.f32.mrb[0].mxu0
        %2841 = vmatprep.mubr.bf16.mxu0 0
        %2842 = vmatmul.mubr.bf16.gmra.mrb[0].mxu0 %v2329
        %v2843 = vpop.f32.mrb[0].mxu0
        %v2844 = vadd.f32 %v2635, %v2843
        %v2845 = vpop.f32.mrb[0].mxu0
        %v2846 = vpop.f32.mrb[0].mxu0
        %v2847 = vadd.f32 %v2638, %v2846
        %v2848 = vpop.f32.mrb[0].mxu0
        %2849 = vmatprep.mubr.bf16.mxu0 0
        %2850 = vmatmul.mubr.bf16.gmra.mrb[0].mxu0 %v2330
        %v2851 = vpop.f32.mrb[0].mxu0
        %v2852 = vadd.f32 %v2643, %v2851
        %v2853 = vpop.f32.mrb[0].mxu0
        %v2854 = vpop.f32.mrb[0].mxu0
        %v2855 = vadd.f32 %v2646, %v2854
        %v2856 = vpop.f32.mrb[0].mxu0
        %2857 = vmatprep.mubr.bf16.mxu0 0
        %2858 = vmatmul.mubr.bf16.gmra.mrb[0].mxu0 %v2331
        %v2859 = vpop.f32.mrb[0].mxu0
        %v2860 = vadd.f32 %v2651, %v2859
        %v2861 = vpop.f32.mrb[0].mxu0
        %v2862 = vpop.f32.mrb[0].mxu0
        %v2863 = vadd.f32 %v2654, %v2862
        %v2864 = vpop.f32.mrb[0].mxu0
        %2865 = vmatprep.mubr.bf16.mxu0 0
        %2866 = vmatmul.mubr.bf16.gmra.mrb[0].mxu0 %v2332
        %v2867 = vpop.f32.mrb[0].mxu0
        %v2868 = vadd.f32 %v2659, %v2867
        %v2869 = vpop.f32.mrb[0].mxu0
        %v2870 = vpop.f32.mrb[0].mxu0
        %v2871 = vadd.f32 %v2662, %v2870
        %v2872 = vpop.f32.mrb[0].mxu0
        %2873 = vmatprep.mubr.bf16.mxu0 0
        %2874 = vmatmul.mubr.bf16.gmra.mrb[0].mxu0 %v2333
        %v2875 = vpop.f32.mrb[0].mxu0
        %v2876 = vadd.f32 %v2667, %v2875
        %v2877 = vpop.f32.mrb[0].mxu0
        %v2878 = vpop.f32.mrb[0].mxu0
        %v2879 = vadd.f32 %v2670, %v2878
        %v2880 = vpop.f32.mrb[0].mxu0
        %2881 = vmatprep.mubr.bf16.mxu0 0
        %2882 = vmatmul.mubr.bf16.gmra.mrb[0].mxu0 %v2334
        %v2883 = vpop.f32.mrb[0].mxu0
        %v2884 = vadd.f32 %v2675, %v2883
        %v2885 = vpop.f32.mrb[0].mxu0
        %v2886 = vpop.f32.mrb[0].mxu0
        %v2887 = vadd.f32 %v2678, %v2886
        %v2888 = vpop.f32.mrb[0].mxu0
        %2889 = vmatprep.mubr.bf16.mxu0 0
        %2890 = vmatmul.mubr.bf16.gmra.mrb[0].mxu0 %v2335
        %v2891 = vpop.f32.mrb[0].mxu0
        %v2892 = vadd.f32 %v2683, %v2891
        %v2893 = vpop.f32.mrb[0].mxu0
        %v2894 = vpop.f32.mrb[0].mxu0
        %v2895 = vadd.f32 %v2686, %v2894
        %v2896 = vpop.f32.mrb[0].mxu0
        %2897 = vmatprep.mubr.bf16.mxu0 0
        %2898 = vmatmul.mubr.bf16.gmra.mrb[0].mxu0 %v2336
        %v2899 = vpop.f32.mrb[0].mxu0
        %v2900 = vadd.f32 %v2691, %v2899
        %v2901 = vpop.f32.mrb[0].mxu0
        %v2902 = vpop.f32.mrb[0].mxu0
        %v2903 = vadd.f32 %v2694, %v2902
        %v2904 = vpop.f32.mrb[0].mxu0
        %2905 = vmatprep.mubr.bf16.mxu0 0
        %2906 = vmatmul.mubr.bf16.gmra.mrb[0].mxu0 %v2337
        %v2907 = vpop.f32.mrb[0].mxu0
        %v2908 = vadd.f32 %v2699, %v2907
        %v2909 = vpop.f32.mrb[0].mxu0
        %v2910 = vpop.f32.mrb[0].mxu0
        %v2911 = vadd.f32 %v2702, %v2910
        %v2912 = vpop.f32.mrb[0].mxu0
        %2913 = vmatprep.mubr.bf16.mxu0 0
        %2914 = vmatmul.mubr.bf16.gmra.mrb[0].mxu0 %v2338
        %v2915 = vpop.f32.mrb[0].mxu0
        %v2916 = vadd.f32 %v2707, %v2915
        %v2917 = vpop.f32.mrb[0].mxu0
        %v2918 = vpop.f32.mrb[0].mxu0
        %v2919 = vadd.f32 %v2710, %v2918
        %v2920 = vpop.f32.mrb[0].mxu0
        %2921 = vmatprep.mubr.bf16.mxu0 0
        %2922 = vmatmul.mubr.bf16.gmra.mrb[0].mxu0 %v2339
        %v2923 = vpop.f32.mrb[0].mxu0
        %v2924 = vadd.f32 %v2715, %v2923
        %v2925 = vpop.f32.mrb[0].mxu0
        %v2926 = vpop.f32.mrb[0].mxu0
        %v2927 = vadd.f32 %v2718, %v2926
        %v2928 = vpop.f32.mrb[0].mxu0
        %2929 = vmatprep.mubr.bf16.mxu0 0
        %2930 = vmatmul.mubr.bf16.gmra.mrb[0].mxu0 %v2340
        %v2931 = vpop.f32.mrb[0].mxu0
        %v2932 = vadd.f32 %v2723, %v2931
        %v2933 = vpop.f32.mrb[0].mxu0
        %v2934 = vpop.f32.mrb[0].mxu0
        %v2935 = vadd.f32 %v2726, %v2934
        %v2936 = vpop.f32.mrb[0].mxu0
        %2937 = vdwg.mxu0
        %s2938 = scalar_lea.vmem [#allocation5], 320
        %v2939 = vld [vmem:[%s2938] sm:$0xf]
        %v2940 = vld [vmem:[%s2938 + $0x4] sm:$0xf]
        %v2941 = vld [vmem:[%s2938 + $0x8] sm:$0xf]
        %v2942 = vld [vmem:[%s2938 + $0xc] sm:$0xf]
        %v2943 = vld [vmem:[%s2938 + $0x10] sm:$0xf]
        %v2944 = vld [vmem:[%s2938 + $0x14] sm:$0xf]
        %v2945 = vld [vmem:[%s2938 + $0x18] sm:$0xf]
        %v2946 = vld [vmem:[%s2938 + $0x1c] sm:$0xf]
        %v2947 = vld [vmem:[%s2938 + $0x20] sm:$0xf]
        %v2948 = vld [vmem:[%s2938 + $0x24] sm:$0xf]
        %v2949 = vld [vmem:[%s2938 + $0x28] sm:$0xf]
        %v2950 = vld [vmem:[%s2938 + $0x2c] sm:$0xf]
        %v2951 = vld [vmem:[%s2938 + $0x30] sm:$0xf]
        %v2952 = vld [vmem:[%s2938 + $0x34] sm:$0xf]
        %v2953 = vld [vmem:[%s2938 + $0x38] sm:$0xf]
        %v2954 = vld [vmem:[%s2938 + $0x3c] sm:$0xf]
        %v2971 = vunpack.c.l.b16 %v2939
        %v2972 = vunpack.c.l.b16 %v2940
        %v2973 = vunpack.c.l.b16 %v2941
        %v2974 = vunpack.c.l.b16 %v2942
        %v2975 = vunpack.c.l.b16 %v2943
        %v2976 = vunpack.c.l.b16 %v2944
        %v2977 = vunpack.c.l.b16 %v2945
        %v2978 = vunpack.c.l.b16 %v2946
        %v2979 = vunpack.c.l.b16 %v2947
        %v2980 = vunpack.c.l.b16 %v2948
        %v2981 = vunpack.c.l.b16 %v2949
        %v2982 = vunpack.c.l.b16 %v2950
        %v2983 = vunpack.c.l.b16 %v2951
        %v2984 = vunpack.c.l.b16 %v2952
        %v2985 = vunpack.c.l.b16 %v2953
        %v2986 = vunpack.c.l.b16 %v2954
        %v2987 = vpack.c.b16 %v2972, %v2971
        %v2988 = vpack.c.b16 %v2974, %v2973
        %v2989 = vpack.c.b16 %v2976, %v2975
        %v2990 = vpack.c.b16 %v2978, %v2977
        %v2991 = vpack.c.b16 %v2980, %v2979
        %v2992 = vpack.c.b16 %v2982, %v2981
        %v2993 = vpack.c.b16 %v2984, %v2983
        %v2994 = vpack.c.b16 %v2986, %v2985
        %3003 = vmatprep.subr.bf16.mxu0 0
        %3004 = vmatpush1.bf16.msra.mxu0 %v2987
        %3005 = vmatprep.subr.bf16.mxu0 0
        %3006 = vmatpush1.bf16.msra.mxu0 %v2988
        %3007 = vmatprep.subr.bf16.mxu0 0
        %3008 = vmatpush1.bf16.msra.mxu0 %v2989
        %3009 = vmatprep.subr.bf16.mxu0 0
        %3010 = vmatpush1.bf16.msra.mxu0 %v2990
        %3011 = vmatprep.subr.bf16.mxu0 0
        %3012 = vmatpush1.bf16.msra.mxu0 %v2991
        %3013 = vmatprep.subr.bf16.mxu0 0
        %3014 = vmatpush1.bf16.msra.mxu0 %v2992
        %3015 = vmatprep.subr.bf16.mxu0 0
        %3016 = vmatpush1.bf16.msra.mxu0 %v2993
        %3017 = vmatprep.subr.bf16.mxu0 0
        %3018 = vmatpush1.bf16.msra.mxu0 %v2994
        %3019 = vmatprep.subr.bf16.mxu0 0
        %3020 = vmatpush1.bf16.msra.mxu0 0
        %3021 = vmatprep.subr.bf16.mxu0 0
        %3022 = vmatpush1.bf16.msra.mxu0 0
        %3023 = vmatprep.subr.bf16.mxu0 0
        %3024 = vmatpush1.bf16.msra.mxu0 0
        %3025 = vmatprep.subr.bf16.mxu0 0
        %3026 = vmatpush1.bf16.msra.mxu0 0
        %3027 = vmatprep.subr.bf16.mxu0 0
        %3028 = vmatpush1.bf16.msra.mxu0 0
        %3029 = vmatprep.subr.bf16.mxu0 0
        %3030 = vmatpush1.bf16.msra.mxu0 0
        %3031 = vmatprep.subr.bf16.mxu0 0
        %3032 = vmatpush1.bf16.msra.mxu0 0
        %3033 = vmatprep.subr.bf16.mxu0 0
        %3034 = vmatpush1.bf16.msra.mxu0 0
        %3035 = vmatprep.mubr.bf16.mxu0 0
        %3036 = vmatmul.mubr.bf16.gmra.mrb[0].mxu0 %v2470
        %v3037 = vpop.f32.mrb[0].mxu0
        %v3038 = vadd.f32 0.0, %v3037
        %v3039 = vpop.f32.mrb[0].mxu0
        %v3040 = vpop.f32.mrb[0].mxu0
        %v3041 = vadd.f32 0.0, %v3040
        %v3042 = vpop.f32.mrb[0].mxu0
        %3043 = vmatprep.mubr.bf16.mxu0 0
        %3044 = vmatmul.mubr.bf16.gmra.mrb[0].mxu0 %v2471
        %v3045 = vpop.f32.mrb[0].mxu0
        %v3046 = vadd.f32 0.0, %v3045
        %v3047 = vpop.f32.mrb[0].mxu0
        %v3048 = vpop.f32.mrb[0].mxu0
        %v3049 = vadd.f32 0.0, %v3048
        %v3050 = vpop.f32.mrb[0].mxu0
        %3051 = vmatprep.mubr.bf16.mxu0 0
        %3052 = vmatmul.mubr.bf16.gmra.mrb[0].mxu0 %v2472
        %v3053 = vpop.f32.mrb[0].mxu0
        %v3054 = vadd.f32 0.0, %v3053
        %v3055 = vpop.f32.mrb[0].mxu0
        %v3056 = vpop.f32.mrb[0].mxu0
        %v3057 = vadd.f32 0.0, %v3056
        %v3058 = vpop.f32.mrb[0].mxu0
        %3059 = vmatprep.mubr.bf16.mxu0 0
        %3060 = vmatmul.mubr.bf16.gmra.mrb[0].mxu0 %v2473
        %v3061 = vpop.f32.mrb[0].mxu0
        %v3062 = vadd.f32 0.0, %v3061
        %v3063 = vpop.f32.mrb[0].mxu0
        %v3064 = vpop.f32.mrb[0].mxu0
        %v3065 = vadd.f32 0.0, %v3064
        %v3066 = vpop.f32.mrb[0].mxu0
        %3067 = vmatprep.mubr.bf16.mxu0 0
        %3068 = vmatmul.mubr.bf16.gmra.mrb[0].mxu0 %v2474
        %v3069 = vpop.f32.mrb[0].mxu0
        %v3070 = vadd.f32 0.0, %v3069
        %v3071 = vpop.f32.mrb[0].mxu0
        %v3072 = vpop.f32.mrb[0].mxu0
        %v3073 = vadd.f32 0.0, %v3072
        %v3074 = vpop.f32.mrb[0].mxu0
        %3075 = vmatprep.mubr.bf16.mxu0 0
        %3076 = vmatmul.mubr.bf16.gmra.mrb[0].mxu0 %v2475
        %v3077 = vpop.f32.mrb[0].mxu0
        %v3078 = vadd.f32 0.0, %v3077
        %v3079 = vpop.f32.mrb[0].mxu0
        %v3080 = vpop.f32.mrb[0].mxu0
        %v3081 = vadd.f32 0.0, %v3080
        %v3082 = vpop.f32.mrb[0].mxu0
        %3083 = vmatprep.mubr.bf16.mxu0 0
        %3084 = vmatmul.mubr.bf16.gmra.mrb[0].mxu0 %v2476
        %v3085 = vpop.f32.mrb[0].mxu0
        %v3086 = vadd.f32 0.0, %v3085
        %v3087 = vpop.f32.mrb[0].mxu0
        %v3088 = vpop.f32.mrb[0].mxu0
        %v3089 = vadd.f32 0.0, %v3088
        %v3090 = vpop.f32.mrb[0].mxu0
        %3091 = vmatprep.mubr.bf16.mxu0 0
        %3092 = vmatmul.mubr.bf16.gmra.mrb[0].mxu0 %v2477
        %v3093 = vpop.f32.mrb[0].mxu0
        %v3094 = vadd.f32 0.0, %v3093
        %v3095 = vpop.f32.mrb[0].mxu0
        %v3096 = vpop.f32.mrb[0].mxu0
        %v3097 = vadd.f32 0.0, %v3096
        %v3098 = vpop.f32.mrb[0].mxu0
        %3099 = vmatprep.mubr.bf16.mxu0 0
        %3100 = vmatmul.mubr.bf16.gmra.mrb[0].mxu0 %v2478
        %v3101 = vpop.f32.mrb[0].mxu0
        %v3102 = vadd.f32 0.0, %v3101
        %v3103 = vpop.f32.mrb[0].mxu0
        %v3104 = vpop.f32.mrb[0].mxu0
        %v3105 = vadd.f32 0.0, %v3104
        %v3106 = vpop.f32.mrb[0].mxu0
        %3107 = vmatprep.mubr.bf16.mxu0 0
        %3108 = vmatmul.mubr.bf16.gmra.mrb[0].mxu0 %v2479
        %v3109 = vpop.f32.mrb[0].mxu0
        %v3110 = vadd.f32 0.0, %v3109
        %v3111 = vpop.f32.mrb[0].mxu0
        %v3112 = vpop.f32.mrb[0].mxu0
        %v3113 = vadd.f32 0.0, %v3112
        %v3114 = vpop.f32.mrb[0].mxu0
        %3115 = vmatprep.mubr.bf16.mxu0 0
        %3116 = vmatmul.mubr.bf16.gmra.mrb[0].mxu0 %v2480
        %v3117 = vpop.f32.mrb[0].mxu0
        %v3118 = vadd.f32 0.0, %v3117
        %v3119 = vpop.f32.mrb[0].mxu0
        %v3120 = vpop.f32.mrb[0].mxu0
        %v3121 = vadd.f32 0.0, %v3120
        %v3122 = vpop.f32.mrb[0].mxu0
        %3123 = vmatprep.mubr.bf16.mxu0 0
        %3124 = vmatmul.mubr.bf16.gmra.mrb[0].mxu0 %v2481
        %v3125 = vpop.f32.mrb[0].mxu0
        %v3126 = vadd.f32 0.0, %v3125
        %v3127 = vpop.f32.mrb[0].mxu0
        %v3128 = vpop.f32.mrb[0].mxu0
        %v3129 = vadd.f32 0.0, %v3128
        %v3130 = vpop.f32.mrb[0].mxu0
        %3131 = vmatprep.mubr.bf16.mxu0 0
        %3132 = vmatmul.mubr.bf16.gmra.mrb[0].mxu0 %v2482
        %v3133 = vpop.f32.mrb[0].mxu0
        %v3134 = vadd.f32 0.0, %v3133
        %v3135 = vpop.f32.mrb[0].mxu0
        %v3136 = vpop.f32.mrb[0].mxu0
        %v3137 = vadd.f32 0.0, %v3136
        %v3138 = vpop.f32.mrb[0].mxu0
        %3139 = vmatprep.mubr.bf16.mxu0 0
        %3140 = vmatmul.mubr.bf16.gmra.mrb[0].mxu0 %v2483
        %v3141 = vpop.f32.mrb[0].mxu0
        %v3142 = vadd.f32 0.0, %v3141
        %v3143 = vpop.f32.mrb[0].mxu0
        %v3144 = vpop.f32.mrb[0].mxu0
        %v3145 = vadd.f32 0.0, %v3144
        %v3146 = vpop.f32.mrb[0].mxu0
        %3147 = vmatprep.mubr.bf16.mxu0 0
        %3148 = vmatmul.mubr.bf16.gmra.mrb[0].mxu0 %v2484
        %v3149 = vpop.f32.mrb[0].mxu0
        %v3150 = vadd.f32 0.0, %v3149
        %v3151 = vpop.f32.mrb[0].mxu0
        %v3152 = vpop.f32.mrb[0].mxu0
        %v3153 = vadd.f32 0.0, %v3152
        %v3154 = vpop.f32.mrb[0].mxu0
        %3155 = vmatprep.mubr.bf16.mxu0 0
        %3156 = vmatmul.mubr.bf16.gmra.mrb[0].mxu0 %v2485
        %v3157 = vpop.f32.mrb[0].mxu0
        %v3158 = vadd.f32 0.0, %v3157
        %v3159 = vpop.f32.mrb[0].mxu0
        %v3160 = vpop.f32.mrb[0].mxu0
        %v3161 = vadd.f32 0.0, %v3160
        %v3162 = vpop.f32.mrb[0].mxu0
        %3163 = vdwg.mxu0
        %v3164 = vadd.f32 %v2812, %v3038
        %v3165 = vadd.f32 %v2815, %v3041
        %v3166 = vadd.f32 %v2820, %v3046
        %v3167 = vadd.f32 %v2823, %v3049
        %v3168 = vadd.f32 %v2828, %v3054
        %v3169 = vadd.f32 %v2831, %v3057
        %v3170 = vadd.f32 %v2836, %v3062
        %v3171 = vadd.f32 %v2839, %v3065
        %v3172 = vadd.f32 %v2844, %v3070
        %v3173 = vadd.f32 %v2847, %v3073
        %v3174 = vadd.f32 %v2852, %v3078
        %v3175 = vadd.f32 %v2855, %v3081
        %v3176 = vadd.f32 %v2860, %v3086
        %v3177 = vadd.f32 %v2863, %v3089
        %v3178 = vadd.f32 %v2868, %v3094
        %v3179 = vadd.f32 %v2871, %v3097
        %v3180 = vadd.f32 %v2876, %v3102
        %v3181 = vadd.f32 %v2879, %v3105
        %v3182 = vadd.f32 %v2884, %v3110
        %v3183 = vadd.f32 %v2887, %v3113
        %v3184 = vadd.f32 %v2892, %v3118
        %v3185 = vadd.f32 %v2895, %v3121
        %v3186 = vadd.f32 %v2900, %v3126
        %v3187 = vadd.f32 %v2903, %v3129
        %v3188 = vadd.f32 %v2908, %v3134
        %v3189 = vadd.f32 %v2911, %v3137
        %v3190 = vadd.f32 %v2916, %v3142
        %v3191 = vadd.f32 %v2919, %v3145
        %v3192 = vadd.f32 %v2924, %v3150
        %v3193 = vadd.f32 %v2927, %v3153
        %v3194 = vadd.f32 %v2932, %v3158
        %v3195 = vadd.f32 %v2935, %v3161
        %s3196 = scalar_lea.vmem %s2, 1
        %v3197 = vld [vmem:[%s3196] sm:$0x1]
        %v3199 = vlaneseq
        %v3200 = vshrl.u32 %v3199, 7
        %v3201 = vsub.s32 0, %v3200
        %v3202 = vrot.slane %v3197, %v3201
        %v3204 = vadd.f32 %v3164, %v3202
        %v3205 = vadd.f32 %v3165, %v3202
        %v3206 = vadd.f32 %v3166, %v3202
        %v3207 = vadd.f32 %v3167, %v3202
        %v3208 = vadd.f32 %v3168, %v3202
        %v3209 = vadd.f32 %v3169, %v3202
        %v3210 = vadd.f32 %v3170, %v3202
        %v3211 = vadd.f32 %v3171, %v3202
        %v3212 = vadd.f32 %v3172, %v3202
        %v3213 = vadd.f32 %v3173, %v3202
        %v3214 = vadd.f32 %v3174, %v3202
        %v3215 = vadd.f32 %v3175, %v3202
        %v3216 = vadd.f32 %v3176, %v3202
        %v3217 = vadd.f32 %v3177, %v3202
        %v3218 = vadd.f32 %v3178, %v3202
        %v3219 = vadd.f32 %v3179, %v3202
        %v3220 = vadd.f32 %v3180, %v3202
        %v3221 = vadd.f32 %v3181, %v3202
        %v3222 = vadd.f32 %v3182, %v3202
        %v3223 = vadd.f32 %v3183, %v3202
        %v3224 = vadd.f32 %v3184, %v3202
        %v3225 = vadd.f32 %v3185, %v3202
        %v3226 = vadd.f32 %v3186, %v3202
        %v3227 = vadd.f32 %v3187, %v3202
        %v3228 = vadd.f32 %v3188, %v3202
        %v3229 = vadd.f32 %v3189, %v3202
        %v3230 = vadd.f32 %v3190, %v3202
        %v3231 = vadd.f32 %v3191, %v3202
        %v3232 = vadd.f32 %v3192, %v3202
        %v3233 = vadd.f32 %v3193, %v3202
        %v3234 = vadd.f32 %v3194, %v3202
        %v3235 = vadd.f32 %v3195, %v3202
        %v3236 = vadd.f32 %v3204, %v916
        %v3237 = vadd.f32 %v3205, %v917
        %v3238 = vadd.f32 %v3206, %v918
        %v3239 = vadd.f32 %v3207, %v919
        %v3240 = vadd.f32 %v3208, %v920
        %v3241 = vadd.f32 %v3209, %v921
        %v3242 = vadd.f32 %v3210, %v922
        %v3243 = vadd.f32 %v3211, %v923
        %v3244 = vadd.f32 %v3212, %v924
        %v3245 = vadd.f32 %v3213, %v925
        %v3246 = vadd.f32 %v3214, %v926
        %v3247 = vadd.f32 %v3215, %v927
        %v3248 = vadd.f32 %v3216, %v928
        %v3249 = vadd.f32 %v3217, %v929
        %v3250 = vadd.f32 %v3218, %v930
        %v3251 = vadd.f32 %v3219, %v931
        %v3252 = vadd.f32 %v3220, %v932
        %v3253 = vadd.f32 %v3221, %v933
        %v3254 = vadd.f32 %v3222, %v934
        %v3255 = vadd.f32 %v3223, %v935
        %v3256 = vadd.f32 %v3224, %v936
        %v3257 = vadd.f32 %v3225, %v937
        %v3258 = vadd.f32 %v3226, %v938
        %v3259 = vadd.f32 %v3227, %v939
        %v3260 = vadd.f32 %v3228, %v940
        %v3261 = vadd.f32 %v3229, %v941
        %v3262 = vadd.f32 %v3230, %v942
        %v3263 = vadd.f32 %v3231, %v943
        %v3264 = vadd.f32 %v3232, %v944
        %v3265 = vadd.f32 %v3233, %v945
        %v3266 = vadd.f32 %v3234, %v946
        %v3267 = vadd.f32 %v3235, %v947
        %v3268 = vmax.f32 %v3236, 0.0
        %v3269 = vmax.f32 %v3237, 0.0
        %v3270 = vmax.f32 %v3238, 0.0
        %v3271 = vmax.f32 %v3239, 0.0
        %v3272 = vmax.f32 %v3240, 0.0
        %v3273 = vmax.f32 %v3241, 0.0
        %v3274 = vmax.f32 %v3242, 0.0
        %v3275 = vmax.f32 %v3243, 0.0
        %v3276 = vmax.f32 %v3244, 0.0
        %v3277 = vmax.f32 %v3245, 0.0
        %v3278 = vmax.f32 %v3246, 0.0
        %v3279 = vmax.f32 %v3247, 0.0
        %v3280 = vmax.f32 %v3248, 0.0
        %v3281 = vmax.f32 %v3249, 0.0
        %v3282 = vmax.f32 %v3250, 0.0
        %v3283 = vmax.f32 %v3251, 0.0
        %v3284 = vmax.f32 %v3252, 0.0
        %v3285 = vmax.f32 %v3253, 0.0
        %v3286 = vmax.f32 %v3254, 0.0
        %v3287 = vmax.f32 %v3255, 0.0
        %v3288 = vmax.f32 %v3256, 0.0
        %v3289 = vmax.f32 %v3257, 0.0
        %v3290 = vmax.f32 %v3258, 0.0
        %v3291 = vmax.f32 %v3259, 0.0
        %v3292 = vmax.f32 %v3260, 0.0
        %v3293 = vmax.f32 %v3261, 0.0
        %v3294 = vmax.f32 %v3262, 0.0
        %v3295 = vmax.f32 %v3263, 0.0
        %v3296 = vmax.f32 %v3264, 0.0
        %v3297 = vmax.f32 %v3265, 0.0
        %v3298 = vmax.f32 %v3266, 0.0
        %v3299 = vmax.f32 %v3267, 0.0
        %v3300 = vpack.c.bf16 %v3269, %v3268
        %v3301 = vpack.c.bf16 %v3271, %v3270
        %v3302 = vpack.c.bf16 %v3273, %v3272
        %v3303 = vpack.c.bf16 %v3275, %v3274
        %v3304 = vpack.c.bf16 %v3277, %v3276
        %v3305 = vpack.c.bf16 %v3279, %v3278
        %v3306 = vpack.c.bf16 %v3281, %v3280
        %v3307 = vpack.c.bf16 %v3283, %v3282
        %v3308 = vpack.c.bf16 %v3285, %v3284
        %v3309 = vpack.c.bf16 %v3287, %v3286
        %v3310 = vpack.c.bf16 %v3289, %v3288
        %v3311 = vpack.c.bf16 %v3291, %v3290
        %v3312 = vpack.c.bf16 %v3293, %v3292
        %v3313 = vpack.c.bf16 %v3295, %v3294
        %v3314 = vpack.c.bf16 %v3297, %v3296
        %v3315 = vpack.c.bf16 %v3299, %v3298
        %v3317 = vrot.slane %v3299, 7
        %v3350 = vrot.slane %v3268, 7
        %v3351 = vrot.slane %v3269, 7
        %v3352 = vsel %vm982, %v3350, %v3351
        %v3353 = vrot.slane %v3270, 7
        %v3354 = vsel %vm982, %v3351, %v3353
        %v3355 = vrot.slane %v3271, 7
        %v3356 = vsel %vm982, %v3353, %v3355
        %v3357 = vrot.slane %v3272, 7
        %v3358 = vsel %vm982, %v3355, %v3357
        %v3359 = vrot.slane %v3273, 7
        %v3360 = vsel %vm982, %v3357, %v3359
        %v3361 = vrot.slane %v3274, 7
        %v3362 = vsel %vm982, %v3359, %v3361
        %v3363 = vrot.slane %v3275, 7
        %v3364 = vsel %vm982, %v3361, %v3363
        %v3365 = vrot.slane %v3276, 7
        %v3366 = vsel %vm982, %v3363, %v3365
        %v3367 = vrot.slane %v3277, 7
        %v3368 = vsel %vm982, %v3365, %v3367
        %v3369 = vrot.slane %v3278, 7
        %v3370 = vsel %vm982, %v3367, %v3369
        %v3371 = vrot.slane %v3279, 7
        %v3372 = vsel %vm982, %v3369, %v3371
        %v3373 = vrot.slane %v3280, 7
        %v3374 = vsel %vm982, %v3371, %v3373
        %v3375 = vrot.slane %v3281, 7
        %v3376 = vsel %vm982, %v3373, %v3375
        %v3377 = vrot.slane %v3282, 7
        %v3378 = vsel %vm982, %v3375, %v3377
        %v3379 = vrot.slane %v3283, 7
        %v3380 = vsel %vm982, %v3377, %v3379
        %v3381 = vrot.slane %v3284, 7
        %v3382 = vsel %vm982, %v3379, %v3381
        %v3383 = vrot.slane %v3285, 7
        %v3384 = vsel %vm982, %v3381, %v3383
        %v3385 = vrot.slane %v3286, 7
        %v3386 = vsel %vm982, %v3383, %v3385
        %v3387 = vrot.slane %v3287, 7
        %v3388 = vsel %vm982, %v3385, %v3387
        %v3389 = vrot.slane %v3288, 7
        %v3390 = vsel %vm982, %v3387, %v3389
        %v3391 = vrot.slane %v3289, 7
        %v3392 = vsel %vm982, %v3389, %v3391
        %v3393 = vrot.slane %v3290, 7
        %v3394 = vsel %vm982, %v3391, %v3393
        %v3395 = vrot.slane %v3291, 7
        %v3396 = vsel %vm982, %v3393, %v3395
        %v3397 = vrot.slane %v3292, 7
        %v3398 = vsel %vm982, %v3395, %v3397
        %v3399 = vrot.slane %v3293, 7
        %v3400 = vsel %vm982, %v3397, %v3399
        %v3401 = vrot.slane %v3294, 7
        %v3402 = vsel %vm982, %v3399, %v3401
        %v3403 = vrot.slane %v3295, 7
        %v3404 = vsel %vm982, %v3401, %v3403
        %v3405 = vrot.slane %v3296, 7
        %v3406 = vsel %vm982, %v3403, %v3405
        %v3407 = vrot.slane %v3297, 7
        %v3408 = vsel %vm982, %v3405, %v3407
        %v3409 = vrot.slane %v3298, 7
        %v3410 = vsel %vm982, %v3407, %v3409
        %v3411 = vsel %vm982, %v3409, %v3317
        %v3444 = vsel %vm982, %v3317, %v3350
        %v3445 = vsel %vm756, %v3444, 0.0
        %v3446 = vsel %vm757, %v3352, 0.0
        %v3447 = vsel %vm758, %v3354, 0.0
        %v3448 = vsel %vm759, %v3356, 0.0
        %v3449 = vsel %vm760, %v3358, 0.0
        %v3450 = vsel %vm761, %v3360, 0.0
        %v3451 = vsel %vm762, %v3362, 0.0
        %v3452 = vsel %vm763, %v3364, 0.0
        %v3453 = vsel %vm764, %v3366, 0.0
        %v3454 = vsel %vm765, %v3368, 0.0
        %v3455 = vsel %vm766, %v3370, 0.0
        %v3456 = vsel %vm767, %v3372, 0.0
        %v3457 = vsel %vm768, %v3374, 0.0
        %v3458 = vsel %vm769, %v3376, 0.0
        %v3459 = vsel %vm770, %v3378, 0.0
        %v3460 = vsel %vm771, %v3380, 0.0
        %v3461 = vsel %vm772, %v3382, 0.0
        %v3462 = vsel %vm773, %v3384, 0.0
        %v3463 = vsel %vm774, %v3386, 0.0
        %v3464 = vsel %vm775, %v3388, 0.0
        %v3465 = vsel %vm776, %v3390, 0.0
        %v3466 = vsel %vm777, %v3392, 0.0
        %v3467 = vsel %vm778, %v3394, 0.0
        %v3468 = vsel %vm779, %v3396, 0.0
        %v3469 = vsel %vm780, %v3398, 0.0
        %v3470 = vsel %vm781, %v3400, 0.0
        %v3471 = vsel %vm782, %v3402, 0.0
        %v3472 = vsel %vm783, %v3404, 0.0
        %v3473 = vsel %vm784, %v3406, 0.0
        %v3474 = vsel %vm785, %v3408, 0.0
        %v3475 = vsel %vm786, %v3410, 0.0
        %v3476 = vsel %vm787, %v3411, 0.0
        %v3477 = vpack.c.bf16 %v3446, %v3445
        %v3478 = vpack.c.bf16 %v3448, %v3447
        %v3479 = vpack.c.bf16 %v3450, %v3449
        %v3480 = vpack.c.bf16 %v3452, %v3451
        %v3481 = vpack.c.bf16 %v3454, %v3453
        %v3482 = vpack.c.bf16 %v3456, %v3455
        %v3483 = vpack.c.bf16 %v3458, %v3457
        %v3484 = vpack.c.bf16 %v3460, %v3459
        %v3485 = vpack.c.bf16 %v3462, %v3461
        %v3486 = vpack.c.bf16 %v3464, %v3463
        %v3487 = vpack.c.bf16 %v3466, %v3465
        %v3488 = vpack.c.bf16 %v3468, %v3467
        %v3489 = vpack.c.bf16 %v3470, %v3469
        %v3490 = vpack.c.bf16 %v3472, %v3471
        %v3491 = vpack.c.bf16 %v3474, %v3473
        %v3492 = vpack.c.bf16 %v3476, %v3475
        %v3493 = vrot.slane %v3268, 1
        %v3494 = vrot.slane %v3269, 1
        %v3495 = vsel %vm1126, %v3493, %v3494
        %v3496 = vrot.slane %v3270, 1
        %v3497 = vsel %vm1126, %v3494, %v3496
        %v3498 = vrot.slane %v3271, 1
        %v3499 = vsel %vm1126, %v3496, %v3498
        %v3500 = vrot.slane %v3272, 1
        %v3501 = vsel %vm1126, %v3498, %v3500
        %v3502 = vrot.slane %v3273, 1
        %v3503 = vsel %vm1126, %v3500, %v3502
        %v3504 = vrot.slane %v3274, 1
        %v3505 = vsel %vm1126, %v3502, %v3504
        %v3506 = vrot.slane %v3275, 1
        %v3507 = vsel %vm1126, %v3504, %v3506
        %v3508 = vrot.slane %v3276, 1
        %v3509 = vsel %vm1126, %v3506, %v3508
        %v3510 = vrot.slane %v3277, 1
        %v3511 = vsel %vm1126, %v3508, %v3510
        %v3512 = vrot.slane %v3278, 1
        %v3513 = vsel %vm1126, %v3510, %v3512
        %v3514 = vrot.slane %v3279, 1
        %v3515 = vsel %vm1126, %v3512, %v3514
        %v3516 = vrot.slane %v3280, 1
        %v3517 = vsel %vm1126, %v3514, %v3516
        %v3518 = vrot.slane %v3281, 1
        %v3519 = vsel %vm1126, %v3516, %v3518
        %v3520 = vrot.slane %v3282, 1
        %v3521 = vsel %vm1126, %v3518, %v3520
        %v3522 = vrot.slane %v3283, 1
        %v3523 = vsel %vm1126, %v3520, %v3522
        %v3524 = vrot.slane %v3284, 1
        %v3525 = vsel %vm1126, %v3522, %v3524
        %v3526 = vrot.slane %v3285, 1
        %v3527 = vsel %vm1126, %v3524, %v3526
        %v3528 = vrot.slane %v3286, 1
        %v3529 = vsel %vm1126, %v3526, %v3528
        %v3530 = vrot.slane %v3287, 1
        %v3531 = vsel %vm1126, %v3528, %v3530
        %v3532 = vrot.slane %v3288, 1
        %v3533 = vsel %vm1126, %v3530, %v3532
        %v3534 = vrot.slane %v3289, 1
        %v3535 = vsel %vm1126, %v3532, %v3534
        %v3536 = vrot.slane %v3290, 1
        %v3537 = vsel %vm1126, %v3534, %v3536
        %v3538 = vrot.slane %v3291, 1
        %v3539 = vsel %vm1126, %v3536, %v3538
        %v3540 = vrot.slane %v3292, 1
        %v3541 = vsel %vm1126, %v3538, %v3540
        %v3542 = vrot.slane %v3293, 1
        %v3543 = vsel %vm1126, %v3540, %v3542
        %v3544 = vrot.slane %v3294, 1
        %v3545 = vsel %vm1126, %v3542, %v3544
        %v3546 = vrot.slane %v3295, 1
        %v3547 = vsel %vm1126, %v3544, %v3546
        %v3548 = vrot.slane %v3296, 1
        %v3549 = vsel %vm1126, %v3546, %v3548
        %v3550 = vrot.slane %v3297, 1
        %v3551 = vsel %vm1126, %v3548, %v3550
        %v3552 = vrot.slane %v3298, 1
        %v3553 = vsel %vm1126, %v3550, %v3552
        %v3554 = vrot.slane %v3299, 1
        %v3555 = vsel %vm1126, %v3552, %v3554
        %v3589 = vsel %vm1126, %v3554, %v3493
        %v3590 = vsel %vm852, %v3495, 0.0
        %v3591 = vsel %vm853, %v3497, 0.0
        %v3592 = vsel %vm854, %v3499, 0.0
        %v3593 = vsel %vm855, %v3501, 0.0
        %v3594 = vsel %vm856, %v3503, 0.0
        %v3595 = vsel %vm857, %v3505, 0.0
        %v3596 = vsel %vm858, %v3507, 0.0
        %v3597 = vsel %vm859, %v3509, 0.0
        %v3598 = vsel %vm860, %v3511, 0.0
        %v3599 = vsel %vm861, %v3513, 0.0
        %v3600 = vsel %vm862, %v3515, 0.0
        %v3601 = vsel %vm863, %v3517, 0.0
        %v3602 = vsel %vm864, %v3519, 0.0
        %v3603 = vsel %vm865, %v3521, 0.0
        %v3604 = vsel %vm866, %v3523, 0.0
        %v3605 = vsel %vm867, %v3525, 0.0
        %v3606 = vsel %vm868, %v3527, 0.0
        %v3607 = vsel %vm869, %v3529, 0.0
        %v3608 = vsel %vm870, %v3531, 0.0
        %v3609 = vsel %vm871, %v3533, 0.0
        %v3610 = vsel %vm872, %v3535, 0.0
        %v3611 = vsel %vm873, %v3537, 0.0
        %v3612 = vsel %vm874, %v3539, 0.0
        %v3613 = vsel %vm875, %v3541, 0.0
        %v3614 = vsel %vm876, %v3543, 0.0
        %v3615 = vsel %vm877, %v3545, 0.0
        %v3616 = vsel %vm878, %v3547, 0.0
        %v3617 = vsel %vm879, %v3549, 0.0
        %v3618 = vsel %vm880, %v3551, 0.0
        %v3619 = vsel %vm881, %v3553, 0.0
        %v3620 = vsel %vm882, %v3555, 0.0
        %v3621 = vsel %vm883, %v3589, 0.0
        %v3622 = vpack.c.bf16 %v3591, %v3590
        %v3623 = vpack.c.bf16 %v3593, %v3592
        %v3624 = vpack.c.bf16 %v3595, %v3594
        %v3625 = vpack.c.bf16 %v3597, %v3596
        %v3626 = vpack.c.bf16 %v3599, %v3598
        %v3627 = vpack.c.bf16 %v3601, %v3600
        %v3628 = vpack.c.bf16 %v3603, %v3602
        %v3629 = vpack.c.bf16 %v3605, %v3604
        %v3630 = vpack.c.bf16 %v3607, %v3606
        %v3631 = vpack.c.bf16 %v3609, %v3608
        %v3632 = vpack.c.bf16 %v3611, %v3610
        %v3633 = vpack.c.bf16 %v3613, %v3612
        %v3634 = vpack.c.bf16 %v3615, %v3614
        %v3635 = vpack.c.bf16 %v3617, %v3616
        %v3636 = vpack.c.bf16 %v3619, %v3618
        %v3637 = vpack.c.bf16 %v3621, %v3620
        %s3638 = scalar_lea.vmem [#allocation5], 384
        %v3639 = vld [vmem:[%s3638] sm:$0xf]
        %v3640 = vld [vmem:[%s3638 + $0x4] sm:$0xf]
        %v3641 = vld [vmem:[%s3638 + $0x8] sm:$0xf]
        %v3642 = vld [vmem:[%s3638 + $0xc] sm:$0xf]
        %v3643 = vld [vmem:[%s3638 + $0x10] sm:$0xf]
        %v3644 = vld [vmem:[%s3638 + $0x14] sm:$0xf]
        %v3645 = vld [vmem:[%s3638 + $0x18] sm:$0xf]
        %v3646 = vld [vmem:[%s3638 + $0x1c] sm:$0xf]
        %v3647 = vld [vmem:[%s3638 + $0x20] sm:$0xf]
        %v3648 = vld [vmem:[%s3638 + $0x24] sm:$0xf]
        %v3649 = vld [vmem:[%s3638 + $0x28] sm:$0xf]
        %v3650 = vld [vmem:[%s3638 + $0x2c] sm:$0xf]
        %v3651 = vld [vmem:[%s3638 + $0x30] sm:$0xf]
        %v3652 = vld [vmem:[%s3638 + $0x34] sm:$0xf]
        %v3653 = vld [vmem:[%s3638 + $0x38] sm:$0xf]
        %v3654 = vld [vmem:[%s3638 + $0x3c] sm:$0xf]
        %s3655 = scalar_lea.vmem [#allocation5], 448
        %v3656 = vld [vmem:[%s3655] sm:$0xf]
        %v3657 = vld [vmem:[%s3655 + $0x4] sm:$0xf]
        %v3658 = vld [vmem:[%s3655 + $0x8] sm:$0xf]
        %v3659 = vld [vmem:[%s3655 + $0xc] sm:$0xf]
        %v3660 = vld [vmem:[%s3655 + $0x10] sm:$0xf]
        %v3661 = vld [vmem:[%s3655 + $0x14] sm:$0xf]
        %v3662 = vld [vmem:[%s3655 + $0x18] sm:$0xf]
        %v3663 = vld [vmem:[%s3655 + $0x1c] sm:$0xf]
        %v3664 = vld [vmem:[%s3655 + $0x20] sm:$0xf]
        %v3665 = vld [vmem:[%s3655 + $0x24] sm:$0xf]
        %v3666 = vld [vmem:[%s3655 + $0x28] sm:$0xf]
        %v3667 = vld [vmem:[%s3655 + $0x2c] sm:$0xf]
        %v3668 = vld [vmem:[%s3655 + $0x30] sm:$0xf]
        %v3669 = vld [vmem:[%s3655 + $0x34] sm:$0xf]
        %v3670 = vld [vmem:[%s3655 + $0x38] sm:$0xf]
        %v3671 = vld [vmem:[%s3655 + $0x3c] sm:$0xf]
        %v3688 = vunpack.c.l.b16 %v3656
        %v3689 = vunpack.c.l.b16 %v3657
        %v3690 = vunpack.c.l.b16 %v3658
        %v3691 = vunpack.c.l.b16 %v3659
        %v3692 = vunpack.c.l.b16 %v3660
        %v3693 = vunpack.c.l.b16 %v3661
        %v3694 = vunpack.c.l.b16 %v3662
        %v3695 = vunpack.c.l.b16 %v3663
        %v3696 = vunpack.c.l.b16 %v3664
        %v3697 = vunpack.c.l.b16 %v3665
        %v3698 = vunpack.c.l.b16 %v3666
        %v3699 = vunpack.c.l.b16 %v3667
        %v3700 = vunpack.c.l.b16 %v3668
        %v3701 = vunpack.c.l.b16 %v3669
        %v3702 = vunpack.c.l.b16 %v3670
        %v3703 = vunpack.c.l.b16 %v3671
        %v3704 = vpack.c.b16 %v3689, %v3688
        %v3705 = vpack.c.b16 %v3691, %v3690
        %v3706 = vpack.c.b16 %v3693, %v3692
        %v3707 = vpack.c.b16 %v3695, %v3694
        %v3708 = vpack.c.b16 %v3697, %v3696
        %v3709 = vpack.c.b16 %v3699, %v3698
        %v3710 = vpack.c.b16 %v3701, %v3700
        %v3711 = vpack.c.b16 %v3703, %v3702
        %3720 = vmatprep.subr.bf16.mxu0 0
        %3721 = vmatpush1.bf16.msra.mxu0 %v3704
        %3722 = vmatprep.subr.bf16.mxu0 0
        %3723 = vmatpush1.bf16.msra.mxu0 %v3705
        %3724 = vmatprep.subr.bf16.mxu0 0
        %3725 = vmatpush1.bf16.msra.mxu0 %v3706
        %3726 = vmatprep.subr.bf16.mxu0 0
        %3727 = vmatpush1.bf16.msra.mxu0 %v3707
        %3728 = vmatprep.subr.bf16.mxu0 0
        %3729 = vmatpush1.bf16.msra.mxu0 %v3708
        %3730 = vmatprep.subr.bf16.mxu0 0
        %3731 = vmatpush1.bf16.msra.mxu0 %v3709
        %3732 = vmatprep.subr.bf16.mxu0 0
        %3733 = vmatpush1.bf16.msra.mxu0 %v3710
        %3734 = vmatprep.subr.bf16.mxu0 0
        %3735 = vmatpush1.bf16.msra.mxu0 %v3711
        %3736 = vmatprep.subr.bf16.mxu0 0
        %3737 = vmatpush1.bf16.msra.mxu0 0
        %3738 = vmatprep.subr.bf16.mxu0 0
        %3739 = vmatpush1.bf16.msra.mxu0 0
        %3740 = vmatprep.subr.bf16.mxu0 0
        %3741 = vmatpush1.bf16.msra.mxu0 0
        %3742 = vmatprep.subr.bf16.mxu0 0
        %3743 = vmatpush1.bf16.msra.mxu0 0
        %3744 = vmatprep.subr.bf16.mxu0 0
        %3745 = vmatpush1.bf16.msra.mxu0 0
        %3746 = vmatprep.subr.bf16.mxu0 0
        %3747 = vmatpush1.bf16.msra.mxu0 0
        %3748 = vmatprep.subr.bf16.mxu0 0
        %3749 = vmatpush1.bf16.msra.mxu0 0
        %3750 = vmatprep.subr.bf16.mxu0 0
        %3751 = vmatpush1.bf16.msra.mxu0 0
        %3752 = vmatprep.mubr.bf16.mxu0 0
        %3753 = vmatmul.mubr.bf16.gmra.mrb[0].mxu0 %v3300
        %v3754 = vpop.f32.mrb[0].mxu0
        %v3755 = vadd.f32 0.0, %v3754
        %v3756 = vpop.f32.mrb[0].mxu0
        %v3757 = vpop.f32.mrb[0].mxu0
        %v3758 = vadd.f32 0.0, %v3757
        %v3759 = vpop.f32.mrb[0].mxu0
        %3760 = vmatprep.mubr.bf16.mxu0 0
        %3761 = vmatmul.mubr.bf16.gmra.mrb[0].mxu0 %v3301
        %v3762 = vpop.f32.mrb[0].mxu0
        %v3763 = vadd.f32 0.0, %v3762
        %v3764 = vpop.f32.mrb[0].mxu0
        %v3765 = vpop.f32.mrb[0].mxu0
        %v3766 = vadd.f32 0.0, %v3765
        %v3767 = vpop.f32.mrb[0].mxu0
        %3768 = vmatprep.mubr.bf16.mxu0 0
        %3769 = vmatmul.mubr.bf16.gmra.mrb[0].mxu0 %v3302
        %v3770 = vpop.f32.mrb[0].mxu0
        %v3771 = vadd.f32 0.0, %v3770
        %v3772 = vpop.f32.mrb[0].mxu0
        %v3773 = vpop.f32.mrb[0].mxu0
        %v3774 = vadd.f32 0.0, %v3773
        %v3775 = vpop.f32.mrb[0].mxu0
        %3776 = vmatprep.mubr.bf16.mxu0 0
        %3777 = vmatmul.mubr.bf16.gmra.mrb[0].mxu0 %v3303
        %v3778 = vpop.f32.mrb[0].mxu0
        %v3779 = vadd.f32 0.0, %v3778
        %v3780 = vpop.f32.mrb[0].mxu0
        %v3781 = vpop.f32.mrb[0].mxu0
        %v3782 = vadd.f32 0.0, %v3781
        %v3783 = vpop.f32.mrb[0].mxu0
        %3784 = vmatprep.mubr.bf16.mxu0 0
        %3785 = vmatmul.mubr.bf16.gmra.mrb[0].mxu0 %v3304
        %v3786 = vpop.f32.mrb[0].mxu0
        %v3787 = vadd.f32 0.0, %v3786
        %v3788 = vpop.f32.mrb[0].mxu0
        %v3789 = vpop.f32.mrb[0].mxu0
        %v3790 = vadd.f32 0.0, %v3789
        %v3791 = vpop.f32.mrb[0].mxu0
        %3792 = vmatprep.mubr.bf16.mxu0 0
        %3793 = vmatmul.mubr.bf16.gmra.mrb[0].mxu0 %v3305
        %v3794 = vpop.f32.mrb[0].mxu0
        %v3795 = vadd.f32 0.0, %v3794
        %v3796 = vpop.f32.mrb[0].mxu0
        %v3797 = vpop.f32.mrb[0].mxu0
        %v3798 = vadd.f32 0.0, %v3797
        %v3799 = vpop.f32.mrb[0].mxu0
        %3800 = vmatprep.mubr.bf16.mxu0 0
        %3801 = vmatmul.mubr.bf16.gmra.mrb[0].mxu0 %v3306
        %v3802 = vpop.f32.mrb[0].mxu0
        %v3803 = vadd.f32 0.0, %v3802
        %v3804 = vpop.f32.mrb[0].mxu0
        %v3805 = vpop.f32.mrb[0].mxu0
        %v3806 = vadd.f32 0.0, %v3805
        %v3807 = vpop.f32.mrb[0].mxu0
        %3808 = vmatprep.mubr.bf16.mxu0 0
        %3809 = vmatmul.mubr.bf16.gmra.mrb[0].mxu0 %v3307
        %v3810 = vpop.f32.mrb[0].mxu0
        %v3811 = vadd.f32 0.0, %v3810
        %v3812 = vpop.f32.mrb[0].mxu0
        %v3813 = vpop.f32.mrb[0].mxu0
        %v3814 = vadd.f32 0.0, %v3813
        %v3815 = vpop.f32.mrb[0].mxu0
        %3816 = vmatprep.mubr.bf16.mxu0 0
        %3817 = vmatmul.mubr.bf16.gmra.mrb[0].mxu0 %v3308
        %v3818 = vpop.f32.mrb[0].mxu0
        %v3819 = vadd.f32 0.0, %v3818
        %v3820 = vpop.f32.mrb[0].mxu0
        %v3821 = vpop.f32.mrb[0].mxu0
        %v3822 = vadd.f32 0.0, %v3821
        %v3823 = vpop.f32.mrb[0].mxu0
        %3824 = vmatprep.mubr.bf16.mxu0 0
        %3825 = vmatmul.mubr.bf16.gmra.mrb[0].mxu0 %v3309
        %v3826 = vpop.f32.mrb[0].mxu0
        %v3827 = vadd.f32 0.0, %v3826
        %v3828 = vpop.f32.mrb[0].mxu0
        %v3829 = vpop.f32.mrb[0].mxu0
        %v3830 = vadd.f32 0.0, %v3829
        %v3831 = vpop.f32.mrb[0].mxu0
        %3832 = vmatprep.mubr.bf16.mxu0 0
        %3833 = vmatmul.mubr.bf16.gmra.mrb[0].mxu0 %v3310
        %v3834 = vpop.f32.mrb[0].mxu0
        %v3835 = vadd.f32 0.0, %v3834
        %v3836 = vpop.f32.mrb[0].mxu0
        %v3837 = vpop.f32.mrb[0].mxu0
        %v3838 = vadd.f32 0.0, %v3837
        %v3839 = vpop.f32.mrb[0].mxu0
        %3840 = vmatprep.mubr.bf16.mxu0 0
        %3841 = vmatmul.mubr.bf16.gmra.mrb[0].mxu0 %v3311
        %v3842 = vpop.f32.mrb[0].mxu0
        %v3843 = vadd.f32 0.0, %v3842
        %v3844 = vpop.f32.mrb[0].mxu0
        %v3845 = vpop.f32.mrb[0].mxu0
        %v3846 = vadd.f32 0.0, %v3845
        %v3847 = vpop.f32.mrb[0].mxu0
        %3848 = vmatprep.mubr.bf16.mxu0 0
        %3849 = vmatmul.mubr.bf16.gmra.mrb[0].mxu0 %v3312
        %v3850 = vpop.f32.mrb[0].mxu0
        %v3851 = vadd.f32 0.0, %v3850
        %v3852 = vpop.f32.mrb[0].mxu0
        %v3853 = vpop.f32.mrb[0].mxu0
        %v3854 = vadd.f32 0.0, %v3853
        %v3855 = vpop.f32.mrb[0].mxu0
        %3856 = vmatprep.mubr.bf16.mxu0 0
        %3857 = vmatmul.mubr.bf16.gmra.mrb[0].mxu0 %v3313
        %v3858 = vpop.f32.mrb[0].mxu0
        %v3859 = vadd.f32 0.0, %v3858
        %v3860 = vpop.f32.mrb[0].mxu0
        %v3861 = vpop.f32.mrb[0].mxu0
        %v3862 = vadd.f32 0.0, %v3861
        %v3863 = vpop.f32.mrb[0].mxu0
        %3864 = vmatprep.mubr.bf16.mxu0 0
        %3865 = vmatmul.mubr.bf16.gmra.mrb[0].mxu0 %v3314
        %v3866 = vpop.f32.mrb[0].mxu0
        %v3867 = vadd.f32 0.0, %v3866
        %v3868 = vpop.f32.mrb[0].mxu0
        %v3869 = vpop.f32.mrb[0].mxu0
        %v3870 = vadd.f32 0.0, %v3869
        %v3871 = vpop.f32.mrb[0].mxu0
        %3872 = vmatprep.mubr.bf16.mxu0 0
        %3873 = vmatmul.mubr.bf16.gmra.mrb[0].mxu0 %v3315
        %v3874 = vpop.f32.mrb[0].mxu0
        %v3875 = vadd.f32 0.0, %v3874
        %v3876 = vpop.f32.mrb[0].mxu0
        %v3877 = vpop.f32.mrb[0].mxu0
        %v3878 = vadd.f32 0.0, %v3877
        %v3879 = vpop.f32.mrb[0].mxu0
        %3880 = vdwg.mxu0
        %v3897 = vunpack.c.l.b16 %v3639
        %v3898 = vunpack.c.l.b16 %v3640
        %v3899 = vunpack.c.l.b16 %v3641
        %v3900 = vunpack.c.l.b16 %v3642
        %v3901 = vunpack.c.l.b16 %v3643
        %v3902 = vunpack.c.l.b16 %v3644
        %v3903 = vunpack.c.l.b16 %v3645
        %v3904 = vunpack.c.l.b16 %v3646
        %v3905 = vunpack.c.l.b16 %v3647
        %v3906 = vunpack.c.l.b16 %v3648
        %v3907 = vunpack.c.l.b16 %v3649
        %v3908 = vunpack.c.l.b16 %v3650
        %v3909 = vunpack.c.l.b16 %v3651
        %v3910 = vunpack.c.l.b16 %v3652
        %v3911 = vunpack.c.l.b16 %v3653
        %v3912 = vunpack.c.l.b16 %v3654
        %v3913 = vpack.c.b16 %v3898, %v3897
        %v3914 = vpack.c.b16 %v3900, %v3899
        %v3915 = vpack.c.b16 %v3902, %v3901
        %v3916 = vpack.c.b16 %v3904, %v3903
        %v3917 = vpack.c.b16 %v3906, %v3905
        %v3918 = vpack.c.b16 %v3908, %v3907
        %v3919 = vpack.c.b16 %v3910, %v3909
        %v3920 = vpack.c.b16 %v3912, %v3911
        %3929 = vmatprep.subr.bf16.mxu0 0
        %3930 = vmatpush1.bf16.msra.mxu0 %v3913
        %3931 = vmatprep.subr.bf16.mxu0 0
        %3932 = vmatpush1.bf16.msra.mxu0 %v3914
        %3933 = vmatprep.subr.bf16.mxu0 0
        %3934 = vmatpush1.bf16.msra.mxu0 %v3915
        %3935 = vmatprep.subr.bf16.mxu0 0
        %3936 = vmatpush1.bf16.msra.mxu0 %v3916
        %3937 = vmatprep.subr.bf16.mxu0 0
        %3938 = vmatpush1.bf16.msra.mxu0 %v3917
        %3939 = vmatprep.subr.bf16.mxu0 0
        %3940 = vmatpush1.bf16.msra.mxu0 %v3918
        %3941 = vmatprep.subr.bf16.mxu0 0
        %3942 = vmatpush1.bf16.msra.mxu0 %v3919
        %3943 = vmatprep.subr.bf16.mxu0 0
        %3944 = vmatpush1.bf16.msra.mxu0 %v3920
        %3945 = vmatprep.subr.bf16.mxu0 0
        %3946 = vmatpush1.bf16.msra.mxu0 0
        %3947 = vmatprep.subr.bf16.mxu0 0
        %3948 = vmatpush1.bf16.msra.mxu0 0
        %3949 = vmatprep.subr.bf16.mxu0 0
        %3950 = vmatpush1.bf16.msra.mxu0 0
        %3951 = vmatprep.subr.bf16.mxu0 0
        %3952 = vmatpush1.bf16.msra.mxu0 0
        %3953 = vmatprep.subr.bf16.mxu0 0
        %3954 = vmatpush1.bf16.msra.mxu0 0
        %3955 = vmatprep.subr.bf16.mxu0 0
        %3956 = vmatpush1.bf16.msra.mxu0 0
        %3957 = vmatprep.subr.bf16.mxu0 0
        %3958 = vmatpush1.bf16.msra.mxu0 0
        %3959 = vmatprep.subr.bf16.mxu0 0
        %3960 = vmatpush1.bf16.msra.mxu0 0
        %3961 = vmatprep.mubr.bf16.mxu0 0
        %3962 = vmatmul.mubr.bf16.gmra.mrb[0].mxu0 %v3477
        %v3963 = vpop.f32.mrb[0].mxu0
        %v3964 = vadd.f32 %v3755, %v3963
        %v3965 = vpop.f32.mrb[0].mxu0
        %v3966 = vpop.f32.mrb[0].mxu0
        %v3967 = vadd.f32 %v3758, %v3966
        %v3968 = vpop.f32.mrb[0].mxu0
        %3969 = vmatprep.mubr.bf16.mxu0 0
        %3970 = vmatmul.mubr.bf16.gmra.mrb[0].mxu0 %v3478
        %v3971 = vpop.f32.mrb[0].mxu0
        %v3972 = vadd.f32 %v3763, %v3971
        %v3973 = vpop.f32.mrb[0].mxu0
        %v3974 = vpop.f32.mrb[0].mxu0
        %v3975 = vadd.f32 %v3766, %v3974
        %v3976 = vpop.f32.mrb[0].mxu0
        %3977 = vmatprep.mubr.bf16.mxu0 0
        %3978 = vmatmul.mubr.bf16.gmra.mrb[0].mxu0 %v3479
        %v3979 = vpop.f32.mrb[0].mxu0
        %v3980 = vadd.f32 %v3771, %v3979
        %v3981 = vpop.f32.mrb[0].mxu0
        %v3982 = vpop.f32.mrb[0].mxu0
        %v3983 = vadd.f32 %v3774, %v3982
        %v3984 = vpop.f32.mrb[0].mxu0
        %3985 = vmatprep.mubr.bf16.mxu0 0
        %3986 = vmatmul.mubr.bf16.gmra.mrb[0].mxu0 %v3480
        %v3987 = vpop.f32.mrb[0].mxu0
        %v3988 = vadd.f32 %v3779, %v3987
        %v3989 = vpop.f32.mrb[0].mxu0
        %v3990 = vpop.f32.mrb[0].mxu0
        %v3991 = vadd.f32 %v3782, %v3990
        %v3992 = vpop.f32.mrb[0].mxu0
        %3993 = vmatprep.mubr.bf16.mxu0 0
        %3994 = vmatmul.mubr.bf16.gmra.mrb[0].mxu0 %v3481
        %v3995 = vpop.f32.mrb[0].mxu0
        %v3996 = vadd.f32 %v3787, %v3995
        %v3997 = vpop.f32.mrb[0].mxu0
        %v3998 = vpop.f32.mrb[0].mxu0
        %v3999 = vadd.f32 %v3790, %v3998
        %v4000 = vpop.f32.mrb[0].mxu0
        %4001 = vmatprep.mubr.bf16.mxu0 0
        %4002 = vmatmul.mubr.bf16.gmra.mrb[0].mxu0 %v3482
        %v4003 = vpop.f32.mrb[0].mxu0
        %v4004 = vadd.f32 %v3795, %v4003
        %v4005 = vpop.f32.mrb[0].mxu0
        %v4006 = vpop.f32.mrb[0].mxu0
        %v4007 = vadd.f32 %v3798, %v4006
        %v4008 = vpop.f32.mrb[0].mxu0
        %4009 = vmatprep.mubr.bf16.mxu0 0
        %4010 = vmatmul.mubr.bf16.gmra.mrb[0].mxu0 %v3483
        %v4011 = vpop.f32.mrb[0].mxu0
        %v4012 = vadd.f32 %v3803, %v4011
        %v4013 = vpop.f32.mrb[0].mxu0
        %v4014 = vpop.f32.mrb[0].mxu0
        %v4015 = vadd.f32 %v3806, %v4014
        %v4016 = vpop.f32.mrb[0].mxu0
        %4017 = vmatprep.mubr.bf16.mxu0 0
        %4018 = vmatmul.mubr.bf16.gmra.mrb[0].mxu0 %v3484
        %v4019 = vpop.f32.mrb[0].mxu0
        %v4020 = vadd.f32 %v3811, %v4019
        %v4021 = vpop.f32.mrb[0].mxu0
        %v4022 = vpop.f32.mrb[0].mxu0
        %v4023 = vadd.f32 %v3814, %v4022
        %v4024 = vpop.f32.mrb[0].mxu0
        %4025 = vmatprep.mubr.bf16.mxu0 0
        %4026 = vmatmul.mubr.bf16.gmra.mrb[0].mxu0 %v3485
        %v4027 = vpop.f32.mrb[0].mxu0
        %v4028 = vadd.f32 %v3819, %v4027
        %v4029 = vpop.f32.mrb[0].mxu0
        %v4030 = vpop.f32.mrb[0].mxu0
        %v4031 = vadd.f32 %v3822, %v4030
        %v4032 = vpop.f32.mrb[0].mxu0
        %4033 = vmatprep.mubr.bf16.mxu0 0
        %4034 = vmatmul.mubr.bf16.gmra.mrb[0].mxu0 %v3486
        %v4035 = vpop.f32.mrb[0].mxu0
        %v4036 = vadd.f32 %v3827, %v4035
        %v4037 = vpop.f32.mrb[0].mxu0
        %v4038 = vpop.f32.mrb[0].mxu0
        %v4039 = vadd.f32 %v3830, %v4038
        %v4040 = vpop.f32.mrb[0].mxu0
        %4041 = vmatprep.mubr.bf16.mxu0 0
        %4042 = vmatmul.mubr.bf16.gmra.mrb[0].mxu0 %v3487
        %v4043 = vpop.f32.mrb[0].mxu0
        %v4044 = vadd.f32 %v3835, %v4043
        %v4045 = vpop.f32.mrb[0].mxu0
        %v4046 = vpop.f32.mrb[0].mxu0
        %v4047 = vadd.f32 %v3838, %v4046
        %v4048 = vpop.f32.mrb[0].mxu0
        %4049 = vmatprep.mubr.bf16.mxu0 0
        %4050 = vmatmul.mubr.bf16.gmra.mrb[0].mxu0 %v3488
        %v4051 = vpop.f32.mrb[0].mxu0
        %v4052 = vadd.f32 %v3843, %v4051
        %v4053 = vpop.f32.mrb[0].mxu0
        %v4054 = vpop.f32.mrb[0].mxu0
        %v4055 = vadd.f32 %v3846, %v4054
        %v4056 = vpop.f32.mrb[0].mxu0
        %4057 = vmatprep.mubr.bf16.mxu0 0
        %4058 = vmatmul.mubr.bf16.gmra.mrb[0].mxu0 %v3489
        %v4059 = vpop.f32.mrb[0].mxu0
        %v4060 = vadd.f32 %v3851, %v4059
        %v4061 = vpop.f32.mrb[0].mxu0
        %v4062 = vpop.f32.mrb[0].mxu0
        %v4063 = vadd.f32 %v3854, %v4062
        %v4064 = vpop.f32.mrb[0].mxu0
        %4065 = vmatprep.mubr.bf16.mxu0 0
        %4066 = vmatmul.mubr.bf16.gmra.mrb[0].mxu0 %v3490
        %v4067 = vpop.f32.mrb[0].mxu0
        %v4068 = vadd.f32 %v3859, %v4067
        %v4069 = vpop.f32.mrb[0].mxu0
        %v4070 = vpop.f32.mrb[0].mxu0
        %v4071 = vadd.f32 %v3862, %v4070
        %v4072 = vpop.f32.mrb[0].mxu0
        %4073 = vmatprep.mubr.bf16.mxu0 0
        %4074 = vmatmul.mubr.bf16.gmra.mrb[0].mxu0 %v3491
        %v4075 = vpop.f32.mrb[0].mxu0
        %v4076 = vadd.f32 %v3867, %v4075
        %v4077 = vpop.f32.mrb[0].mxu0
        %v4078 = vpop.f32.mrb[0].mxu0
        %v4079 = vadd.f32 %v3870, %v4078
        %v4080 = vpop.f32.mrb[0].mxu0
        %4081 = vmatprep.mubr.bf16.mxu0 0
        %4082 = vmatmul.mubr.bf16.gmra.mrb[0].mxu0 %v3492
        %v4083 = vpop.f32.mrb[0].mxu0
        %v4084 = vadd.f32 %v3875, %v4083
        %v4085 = vpop.f32.mrb[0].mxu0
        %v4086 = vpop.f32.mrb[0].mxu0
        %v4087 = vadd.f32 %v3878, %v4086
        %v4088 = vpop.f32.mrb[0].mxu0
        %4089 = vdwg.mxu0
        %s4090 = scalar_lea.vmem [#allocation5], 512
        %v4091 = vld [vmem:[%s4090] sm:$0xf]
        %v4092 = vld [vmem:[%s4090 + $0x4] sm:$0xf]
        %v4093 = vld [vmem:[%s4090 + $0x8] sm:$0xf]
        %v4094 = vld [vmem:[%s4090 + $0xc] sm:$0xf]
        %v4095 = vld [vmem:[%s4090 + $0x10] sm:$0xf]
        %v4096 = vld [vmem:[%s4090 + $0x14] sm:$0xf]
        %v4097 = vld [vmem:[%s4090 + $0x18] sm:$0xf]
        %v4098 = vld [vmem:[%s4090 + $0x1c] sm:$0xf]
        %v4099 = vld [vmem:[%s4090 + $0x20] sm:$0xf]
        %v4100 = vld [vmem:[%s4090 + $0x24] sm:$0xf]
        %v4101 = vld [vmem:[%s4090 + $0x28] sm:$0xf]
        %v4102 = vld [vmem:[%s4090 + $0x2c] sm:$0xf]
        %v4103 = vld [vmem:[%s4090 + $0x30] sm:$0xf]
        %v4104 = vld [vmem:[%s4090 + $0x34] sm:$0xf]
        %v4105 = vld [vmem:[%s4090 + $0x38] sm:$0xf]
        %v4106 = vld [vmem:[%s4090 + $0x3c] sm:$0xf]
        %v4123 = vunpack.c.l.b16 %v4091
        %v4124 = vunpack.c.l.b16 %v4092
        %v4125 = vunpack.c.l.b16 %v4093
        %v4126 = vunpack.c.l.b16 %v4094
        %v4127 = vunpack.c.l.b16 %v4095
        %v4128 = vunpack.c.l.b16 %v4096
        %v4129 = vunpack.c.l.b16 %v4097
        %v4130 = vunpack.c.l.b16 %v4098
        %v4131 = vunpack.c.l.b16 %v4099
        %v4132 = vunpack.c.l.b16 %v4100
        %v4133 = vunpack.c.l.b16 %v4101
        %v4134 = vunpack.c.l.b16 %v4102
        %v4135 = vunpack.c.l.b16 %v4103
        %v4136 = vunpack.c.l.b16 %v4104
        %v4137 = vunpack.c.l.b16 %v4105
        %v4138 = vunpack.c.l.b16 %v4106
        %v4139 = vpack.c.b16 %v4124, %v4123
        %v4140 = vpack.c.b16 %v4126, %v4125
        %v4141 = vpack.c.b16 %v4128, %v4127
        %v4142 = vpack.c.b16 %v4130, %v4129
        %v4143 = vpack.c.b16 %v4132, %v4131
        %v4144 = vpack.c.b16 %v4134, %v4133
        %v4145 = vpack.c.b16 %v4136, %v4135
        %v4146 = vpack.c.b16 %v4138, %v4137
        %4155 = vmatprep.subr.bf16.mxu0 0
        %4156 = vmatpush1.bf16.msra.mxu0 %v4139
        %4157 = vmatprep.subr.bf16.mxu0 0
        %4158 = vmatpush1.bf16.msra.mxu0 %v4140
        %4159 = vmatprep.subr.bf16.mxu0 0
        %4160 = vmatpush1.bf16.msra.mxu0 %v4141
        %4161 = vmatprep.subr.bf16.mxu0 0
        %4162 = vmatpush1.bf16.msra.mxu0 %v4142
        %4163 = vmatprep.subr.bf16.mxu0 0
        %4164 = vmatpush1.bf16.msra.mxu0 %v4143
        %4165 = vmatprep.subr.bf16.mxu0 0
        %4166 = vmatpush1.bf16.msra.mxu0 %v4144
        %4167 = vmatprep.subr.bf16.mxu0 0
        %4168 = vmatpush1.bf16.msra.mxu0 %v4145
        %4169 = vmatprep.subr.bf16.mxu0 0
        %4170 = vmatpush1.bf16.msra.mxu0 %v4146
        %4171 = vmatprep.subr.bf16.mxu0 0
        %4172 = vmatpush1.bf16.msra.mxu0 0
        %4173 = vmatprep.subr.bf16.mxu0 0
        %4174 = vmatpush1.bf16.msra.mxu0 0
        %4175 = vmatprep.subr.bf16.mxu0 0
        %4176 = vmatpush1.bf16.msra.mxu0 0
        %4177 = vmatprep.subr.bf16.mxu0 0
        %4178 = vmatpush1.bf16.msra.mxu0 0
        %4179 = vmatprep.subr.bf16.mxu0 0
        %4180 = vmatpush1.bf16.msra.mxu0 0
        %4181 = vmatprep.subr.bf16.mxu0 0
        %4182 = vmatpush1.bf16.msra.mxu0 0
        %4183 = vmatprep.subr.bf16.mxu0 0
        %4184 = vmatpush1.bf16.msra.mxu0 0
        %4185 = vmatprep.subr.bf16.mxu0 0
        %4186 = vmatpush1.bf16.msra.mxu0 0
        %4187 = vmatprep.mubr.bf16.mxu0 0
        %4188 = vmatmul.mubr.bf16.gmra.mrb[0].mxu0 %v3622
        %v4189 = vpop.f32.mrb[0].mxu0
        %v4190 = vadd.f32 0.0, %v4189
        %v4191 = vpop.f32.mrb[0].mxu0
        %v4192 = vpop.f32.mrb[0].mxu0
        %v4193 = vadd.f32 0.0, %v4192
        %v4194 = vpop.f32.mrb[0].mxu0
        %4195 = vmatprep.mubr.bf16.mxu0 0
        %4196 = vmatmul.mubr.bf16.gmra.mrb[0].mxu0 %v3623
        %v4197 = vpop.f32.mrb[0].mxu0
        %v4198 = vadd.f32 0.0, %v4197
        %v4199 = vpop.f32.mrb[0].mxu0
        %v4200 = vpop.f32.mrb[0].mxu0
        %v4201 = vadd.f32 0.0, %v4200
        %v4202 = vpop.f32.mrb[0].mxu0
        %4203 = vmatprep.mubr.bf16.mxu0 0
        %4204 = vmatmul.mubr.bf16.gmra.mrb[0].mxu0 %v3624
        %v4205 = vpop.f32.mrb[0].mxu0
        %v4206 = vadd.f32 0.0, %v4205
        %v4207 = vpop.f32.mrb[0].mxu0
        %v4208 = vpop.f32.mrb[0].mxu0
        %v4209 = vadd.f32 0.0, %v4208
        %v4210 = vpop.f32.mrb[0].mxu0
        %4211 = vmatprep.mubr.bf16.mxu0 0
        %4212 = vmatmul.mubr.bf16.gmra.mrb[0].mxu0 %v3625
        %v4213 = vpop.f32.mrb[0].mxu0
        %v4214 = vadd.f32 0.0, %v4213
        %v4215 = vpop.f32.mrb[0].mxu0
        %v4216 = vpop.f32.mrb[0].mxu0
        %v4217 = vadd.f32 0.0, %v4216
        %v4218 = vpop.f32.mrb[0].mxu0
        %4219 = vmatprep.mubr.bf16.mxu0 0
        %4220 = vmatmul.mubr.bf16.gmra.mrb[0].mxu0 %v3626
        %v4221 = vpop.f32.mrb[0].mxu0
        %v4222 = vadd.f32 0.0, %v4221
        %v4223 = vpop.f32.mrb[0].mxu0
        %v4224 = vpop.f32.mrb[0].mxu0
        %v4225 = vadd.f32 0.0, %v4224
        %v4226 = vpop.f32.mrb[0].mxu0
        %4227 = vmatprep.mubr.bf16.mxu0 0
        %4228 = vmatmul.mubr.bf16.gmra.mrb[0].mxu0 %v3627
        %v4229 = vpop.f32.mrb[0].mxu0
        %v4230 = vadd.f32 0.0, %v4229
        %v4231 = vpop.f32.mrb[0].mxu0
        %v4232 = vpop.f32.mrb[0].mxu0
        %v4233 = vadd.f32 0.0, %v4232
        %v4234 = vpop.f32.mrb[0].mxu0
        %4235 = vmatprep.mubr.bf16.mxu0 0
        %4236 = vmatmul.mubr.bf16.gmra.mrb[0].mxu0 %v3628
        %v4237 = vpop.f32.mrb[0].mxu0
        %v4238 = vadd.f32 0.0, %v4237
        %v4239 = vpop.f32.mrb[0].mxu0
        %v4240 = vpop.f32.mrb[0].mxu0
        %v4241 = vadd.f32 0.0, %v4240
        %v4242 = vpop.f32.mrb[0].mxu0
        %4243 = vmatprep.mubr.bf16.mxu0 0
        %4244 = vmatmul.mubr.bf16.gmra.mrb[0].mxu0 %v3629
        %v4245 = vpop.f32.mrb[0].mxu0
        %v4246 = vadd.f32 0.0, %v4245
        %v4247 = vpop.f32.mrb[0].mxu0
        %v4248 = vpop.f32.mrb[0].mxu0
        %v4249 = vadd.f32 0.0, %v4248
        %v4250 = vpop.f32.mrb[0].mxu0
        %4251 = vmatprep.mubr.bf16.mxu0 0
        %4252 = vmatmul.mubr.bf16.gmra.mrb[0].mxu0 %v3630
        %v4253 = vpop.f32.mrb[0].mxu0
        %v4254 = vadd.f32 0.0, %v4253
        %v4255 = vpop.f32.mrb[0].mxu0
        %v4256 = vpop.f32.mrb[0].mxu0
        %v4257 = vadd.f32 0.0, %v4256
        %v4258 = vpop.f32.mrb[0].mxu0
        %4259 = vmatprep.mubr.bf16.mxu0 0
        %4260 = vmatmul.mubr.bf16.gmra.mrb[0].mxu0 %v3631
        %v4261 = vpop.f32.mrb[0].mxu0
        %v4262 = vadd.f32 0.0, %v4261
        %v4263 = vpop.f32.mrb[0].mxu0
        %v4264 = vpop.f32.mrb[0].mxu0
        %v4265 = vadd.f32 0.0, %v4264
        %v4266 = vpop.f32.mrb[0].mxu0
        %4267 = vmatprep.mubr.bf16.mxu0 0
        %4268 = vmatmul.mubr.bf16.gmra.mrb[0].mxu0 %v3632
        %v4269 = vpop.f32.mrb[0].mxu0
        %v4270 = vadd.f32 0.0, %v4269
        %v4271 = vpop.f32.mrb[0].mxu0
        %v4272 = vpop.f32.mrb[0].mxu0
        %v4273 = vadd.f32 0.0, %v4272
        %v4274 = vpop.f32.mrb[0].mxu0
        %4275 = vmatprep.mubr.bf16.mxu0 0
        %4276 = vmatmul.mubr.bf16.gmra.mrb[0].mxu0 %v3633
        %v4277 = vpop.f32.mrb[0].mxu0
        %v4278 = vadd.f32 0.0, %v4277
        %v4279 = vpop.f32.mrb[0].mxu0
        %v4280 = vpop.f32.mrb[0].mxu0
        %v4281 = vadd.f32 0.0, %v4280
        %v4282 = vpop.f32.mrb[0].mxu0
        %4283 = vmatprep.mubr.bf16.mxu0 0
        %4284 = vmatmul.mubr.bf16.gmra.mrb[0].mxu0 %v3634
        %v4285 = vpop.f32.mrb[0].mxu0
        %v4286 = vadd.f32 0.0, %v4285
        %v4287 = vpop.f32.mrb[0].mxu0
        %v4288 = vpop.f32.mrb[0].mxu0
        %v4289 = vadd.f32 0.0, %v4288
        %v4290 = vpop.f32.mrb[0].mxu0
        %4291 = vmatprep.mubr.bf16.mxu0 0
        %4292 = vmatmul.mubr.bf16.gmra.mrb[0].mxu0 %v3635
        %v4293 = vpop.f32.mrb[0].mxu0
        %v4294 = vadd.f32 0.0, %v4293
        %v4295 = vpop.f32.mrb[0].mxu0
        %v4296 = vpop.f32.mrb[0].mxu0
        %v4297 = vadd.f32 0.0, %v4296
        %v4298 = vpop.f32.mrb[0].mxu0
        %4299 = vmatprep.mubr.bf16.mxu0 0
        %4300 = vmatmul.mubr.bf16.gmra.mrb[0].mxu0 %v3636
        %v4301 = vpop.f32.mrb[0].mxu0
        %v4302 = vadd.f32 0.0, %v4301
        %v4303 = vpop.f32.mrb[0].mxu0
        %v4304 = vpop.f32.mrb[0].mxu0
        %v4305 = vadd.f32 0.0, %v4304
        %v4306 = vpop.f32.mrb[0].mxu0
        %4307 = vmatprep.mubr.bf16.mxu0 0
        %4308 = vmatmul.mubr.bf16.gmra.mrb[0].mxu0 %v3637
        %v4309 = vpop.f32.mrb[0].mxu0
        %v4310 = vadd.f32 0.0, %v4309
        %v4311 = vpop.f32.mrb[0].mxu0
        %v4312 = vpop.f32.mrb[0].mxu0
        %v4313 = vadd.f32 0.0, %v4312
        %v4314 = vpop.f32.mrb[0].mxu0
        %4315 = vdwg.mxu0
        %v4316 = vadd.f32 %v3964, %v4190
        %v4317 = vadd.f32 %v3967, %v4193
        %v4318 = vadd.f32 %v3972, %v4198
        %v4319 = vadd.f32 %v3975, %v4201
        %v4320 = vadd.f32 %v3980, %v4206
        %v4321 = vadd.f32 %v3983, %v4209
        %v4322 = vadd.f32 %v3988, %v4214
        %v4323 = vadd.f32 %v3991, %v4217
        %v4324 = vadd.f32 %v3996, %v4222
        %v4325 = vadd.f32 %v3999, %v4225
        %v4326 = vadd.f32 %v4004, %v4230
        %v4327 = vadd.f32 %v4007, %v4233
        %v4328 = vadd.f32 %v4012, %v4238
        %v4329 = vadd.f32 %v4015, %v4241
        %v4330 = vadd.f32 %v4020, %v4246
        %v4331 = vadd.f32 %v4023, %v4249
        %v4332 = vadd.f32 %v4028, %v4254
        %v4333 = vadd.f32 %v4031, %v4257
        %v4334 = vadd.f32 %v4036, %v4262
        %v4335 = vadd.f32 %v4039, %v4265
        %v4336 = vadd.f32 %v4044, %v4270
        %v4337 = vadd.f32 %v4047, %v4273
        %v4338 = vadd.f32 %v4052, %v4278
        %v4339 = vadd.f32 %v4055, %v4281
        %v4340 = vadd.f32 %v4060, %v4286
        %v4341 = vadd.f32 %v4063, %v4289
        %v4342 = vadd.f32 %v4068, %v4294
        %v4343 = vadd.f32 %v4071, %v4297
        %v4344 = vadd.f32 %v4076, %v4302
        %v4345 = vadd.f32 %v4079, %v4305
        %v4346 = vadd.f32 %v4084, %v4310
        %v4347 = vadd.f32 %v4087, %v4313
        %s4348 = scalar_lea.vmem %s2, 2
        %v4349 = vld [vmem:[%s4348] sm:$0x1]
        %v4351 = vlaneseq
        %v4352 = vshrl.u32 %v4351, 7
        %v4353 = vsub.s32 0, %v4352
        %v4354 = vrot.slane %v4349, %v4353
        %v4356 = vadd.f32 %v4316, %v4354
        %v4357 = vadd.f32 %v4317, %v4354
        %v4358 = vadd.f32 %v4318, %v4354
        %v4359 = vadd.f32 %v4319, %v4354
        %v4360 = vadd.f32 %v4320, %v4354
        %v4361 = vadd.f32 %v4321, %v4354
        %v4362 = vadd.f32 %v4322, %v4354
        %v4363 = vadd.f32 %v4323, %v4354
        %v4364 = vadd.f32 %v4324, %v4354
        %v4365 = vadd.f32 %v4325, %v4354
        %v4366 = vadd.f32 %v4326, %v4354
        %v4367 = vadd.f32 %v4327, %v4354
        %v4368 = vadd.f32 %v4328, %v4354
        %v4369 = vadd.f32 %v4329, %v4354
        %v4370 = vadd.f32 %v4330, %v4354
        %v4371 = vadd.f32 %v4331, %v4354
        %v4372 = vadd.f32 %v4332, %v4354
        %v4373 = vadd.f32 %v4333, %v4354
        %v4374 = vadd.f32 %v4334, %v4354
        %v4375 = vadd.f32 %v4335, %v4354
        %v4376 = vadd.f32 %v4336, %v4354
        %v4377 = vadd.f32 %v4337, %v4354
        %v4378 = vadd.f32 %v4338, %v4354
        %v4379 = vadd.f32 %v4339, %v4354
        %v4380 = vadd.f32 %v4340, %v4354
        %v4381 = vadd.f32 %v4341, %v4354
        %v4382 = vadd.f32 %v4342, %v4354
        %v4383 = vadd.f32 %v4343, %v4354
        %v4384 = vadd.f32 %v4344, %v4354
        %v4385 = vadd.f32 %v4345, %v4354
        %v4386 = vadd.f32 %v4346, %v4354
        %v4387 = vadd.f32 %v4347, %v4354
        %v4388 = vmax.f32 %v4356, 0.0
        %v4389 = vmax.f32 %v4357, 0.0
        %v4390 = vmax.f32 %v4358, 0.0
        %v4391 = vmax.f32 %v4359, 0.0
        %v4392 = vmax.f32 %v4360, 0.0
        %v4393 = vmax.f32 %v4361, 0.0
        %v4394 = vmax.f32 %v4362, 0.0
        %v4395 = vmax.f32 %v4363, 0.0
        %v4396 = vmax.f32 %v4364, 0.0
        %v4397 = vmax.f32 %v4365, 0.0
        %v4398 = vmax.f32 %v4366, 0.0
        %v4399 = vmax.f32 %v4367, 0.0
        %v4400 = vmax.f32 %v4368, 0.0
        %v4401 = vmax.f32 %v4369, 0.0
        %v4402 = vmax.f32 %v4370, 0.0
        %v4403 = vmax.f32 %v4371, 0.0
        %v4404 = vmax.f32 %v4372, 0.0
        %v4405 = vmax.f32 %v4373, 0.0
        %v4406 = vmax.f32 %v4374, 0.0
        %v4407 = vmax.f32 %v4375, 0.0
        %v4408 = vmax.f32 %v4376, 0.0
        %v4409 = vmax.f32 %v4377, 0.0
        %v4410 = vmax.f32 %v4378, 0.0
        %v4411 = vmax.f32 %v4379, 0.0
        %v4412 = vmax.f32 %v4380, 0.0
        %v4413 = vmax.f32 %v4381, 0.0
        %v4414 = vmax.f32 %v4382, 0.0
        %v4415 = vmax.f32 %v4383, 0.0
        %v4416 = vmax.f32 %v4384, 0.0
        %v4417 = vmax.f32 %v4385, 0.0
        %v4418 = vmax.f32 %v4386, 0.0
        %v4419 = vmax.f32 %v4387, 0.0
        %v4420 = vpack.c.bf16 %v4389, %v4388
        %v4421 = vpack.c.bf16 %v4391, %v4390
        %v4422 = vpack.c.bf16 %v4393, %v4392
        %v4423 = vpack.c.bf16 %v4395, %v4394
        %v4424 = vpack.c.bf16 %v4397, %v4396
        %v4425 = vpack.c.bf16 %v4399, %v4398
        %v4426 = vpack.c.bf16 %v4401, %v4400
        %v4427 = vpack.c.bf16 %v4403, %v4402
        %v4428 = vpack.c.bf16 %v4405, %v4404
        %v4429 = vpack.c.bf16 %v4407, %v4406
        %v4430 = vpack.c.bf16 %v4409, %v4408
        %v4431 = vpack.c.bf16 %v4411, %v4410
        %v4432 = vpack.c.bf16 %v4413, %v4412
        %v4433 = vpack.c.bf16 %v4415, %v4414
        %v4434 = vpack.c.bf16 %v4417, %v4416
        %v4435 = vpack.c.bf16 %v4419, %v4418
        %v4437 = vrot.slane %v4419, 7
        %v4470 = vrot.slane %v4388, 7
        %v4471 = vrot.slane %v4389, 7
        %v4472 = vsel %vm982, %v4470, %v4471
        %v4473 = vrot.slane %v4390, 7
        %v4474 = vsel %vm982, %v4471, %v4473
        %v4475 = vrot.slane %v4391, 7
        %v4476 = vsel %vm982, %v4473, %v4475
        %v4477 = vrot.slane %v4392, 7
        %v4478 = vsel %vm982, %v4475, %v4477
        %v4479 = vrot.slane %v4393, 7
        %v4480 = vsel %vm982, %v4477, %v4479
        %v4481 = vrot.slane %v4394, 7
        %v4482 = vsel %vm982, %v4479, %v4481
        %v4483 = vrot.slane %v4395, 7
        %v4484 = vsel %vm982, %v4481, %v4483
        %v4485 = vrot.slane %v4396, 7
        %v4486 = vsel %vm982, %v4483, %v4485
        %v4487 = vrot.slane %v4397, 7
        %v4488 = vsel %vm982, %v4485, %v4487
        %v4489 = vrot.slane %v4398, 7
        %v4490 = vsel %vm982, %v4487, %v4489
        %v4491 = vrot.slane %v4399, 7
        %v4492 = vsel %vm982, %v4489, %v4491
        %v4493 = vrot.slane %v4400, 7
        %v4494 = vsel %vm982, %v4491, %v4493
        %v4495 = vrot.slane %v4401, 7
        %v4496 = vsel %vm982, %v4493, %v4495
        %v4497 = vrot.slane %v4402, 7
        %v4498 = vsel %vm982, %v4495, %v4497
        %v4499 = vrot.slane %v4403, 7
        %v4500 = vsel %vm982, %v4497, %v4499
        %v4501 = vrot.slane %v4404, 7
        %v4502 = vsel %vm982, %v4499, %v4501
        %v4503 = vrot.slane %v4405, 7
        %v4504 = vsel %vm982, %v4501, %v4503
        %v4505 = vrot.slane %v4406, 7
        %v4506 = vsel %vm982, %v4503, %v4505
        %v4507 = vrot.slane %v4407, 7
        %v4508 = vsel %vm982, %v4505, %v4507
        %v4509 = vrot.slane %v4408, 7
        %v4510 = vsel %vm982, %v4507, %v4509
        %v4511 = vrot.slane %v4409, 7
        %v4512 = vsel %vm982, %v4509, %v4511
        %v4513 = vrot.slane %v4410, 7
        %v4514 = vsel %vm982, %v4511, %v4513
        %v4515 = vrot.slane %v4411, 7
        %v4516 = vsel %vm982, %v4513, %v4515
        %v4517 = vrot.slane %v4412, 7
        %v4518 = vsel %vm982, %v4515, %v4517
        %v4519 = vrot.slane %v4413, 7
        %v4520 = vsel %vm982, %v4517, %v4519
        %v4521 = vrot.slane %v4414, 7
        %v4522 = vsel %vm982, %v4519, %v4521
        %v4523 = vrot.slane %v4415, 7
        %v4524 = vsel %vm982, %v4521, %v4523
        %v4525 = vrot.slane %v4416, 7
        %v4526 = vsel %vm982, %v4523, %v4525
        %v4527 = vrot.slane %v4417, 7
        %v4528 = vsel %vm982, %v4525, %v4527
        %v4529 = vrot.slane %v4418, 7
        %v4530 = vsel %vm982, %v4527, %v4529
        %v4531 = vsel %vm982, %v4529, %v4437
        %v4564 = vsel %vm982, %v4437, %v4470
        %v4565 = vsel %vm756, %v4564, 0.0
        %v4566 = vsel %vm757, %v4472, 0.0
        %v4567 = vsel %vm758, %v4474, 0.0
        %v4568 = vsel %vm759, %v4476, 0.0
        %v4569 = vsel %vm760, %v4478, 0.0
        %v4570 = vsel %vm761, %v4480, 0.0
        %v4571 = vsel %vm762, %v4482, 0.0
        %v4572 = vsel %vm763, %v4484, 0.0
        %v4573 = vsel %vm764, %v4486, 0.0
        %v4574 = vsel %vm765, %v4488, 0.0
        %v4575 = vsel %vm766, %v4490, 0.0
        %v4576 = vsel %vm767, %v4492, 0.0
        %v4577 = vsel %vm768, %v4494, 0.0
        %v4578 = vsel %vm769, %v4496, 0.0
        %v4579 = vsel %vm770, %v4498, 0.0
        %v4580 = vsel %vm771, %v4500, 0.0
        %v4581 = vsel %vm772, %v4502, 0.0
        %v4582 = vsel %vm773, %v4504, 0.0
        %v4583 = vsel %vm774, %v4506, 0.0
        %v4584 = vsel %vm775, %v4508, 0.0
        %v4585 = vsel %vm776, %v4510, 0.0
        %v4586 = vsel %vm777, %v4512, 0.0
        %v4587 = vsel %vm778, %v4514, 0.0
        %v4588 = vsel %vm779, %v4516, 0.0
        %v4589 = vsel %vm780, %v4518, 0.0
        %v4590 = vsel %vm781, %v4520, 0.0
        %v4591 = vsel %vm782, %v4522, 0.0
        %v4592 = vsel %vm783, %v4524, 0.0
        %v4593 = vsel %vm784, %v4526, 0.0
        %v4594 = vsel %vm785, %v4528, 0.0
        %v4595 = vsel %vm786, %v4530, 0.0
        %v4596 = vsel %vm787, %v4531, 0.0
        %v4597 = vpack.c.bf16 %v4566, %v4565
        %v4598 = vpack.c.bf16 %v4568, %v4567
        %v4599 = vpack.c.bf16 %v4570, %v4569
        %v4600 = vpack.c.bf16 %v4572, %v4571
        %v4601 = vpack.c.bf16 %v4574, %v4573
        %v4602 = vpack.c.bf16 %v4576, %v4575
        %v4603 = vpack.c.bf16 %v4578, %v4577
        %v4604 = vpack.c.bf16 %v4580, %v4579
        %v4605 = vpack.c.bf16 %v4582, %v4581
        %v4606 = vpack.c.bf16 %v4584, %v4583
        %v4607 = vpack.c.bf16 %v4586, %v4585
        %v4608 = vpack.c.bf16 %v4588, %v4587
        %v4609 = vpack.c.bf16 %v4590, %v4589
        %v4610 = vpack.c.bf16 %v4592, %v4591
        %v4611 = vpack.c.bf16 %v4594, %v4593
        %v4612 = vpack.c.bf16 %v4596, %v4595
        %v4613 = vrot.slane %v4388, 1
        %v4614 = vrot.slane %v4389, 1
        %v4615 = vsel %vm1126, %v4613, %v4614
        %v4616 = vrot.slane %v4390, 1
        %v4617 = vsel %vm1126, %v4614, %v4616
        %v4618 = vrot.slane %v4391, 1
        %v4619 = vsel %vm1126, %v4616, %v4618
        %v4620 = vrot.slane %v4392, 1
        %v4621 = vsel %vm1126, %v4618, %v4620
        %v4622 = vrot.slane %v4393, 1
        %v4623 = vsel %vm1126, %v4620, %v4622
        %v4624 = vrot.slane %v4394, 1
        %v4625 = vsel %vm1126, %v4622, %v4624
        %v4626 = vrot.slane %v4395, 1
        %v4627 = vsel %vm1126, %v4624, %v4626
        %v4628 = vrot.slane %v4396, 1
        %v4629 = vsel %vm1126, %v4626, %v4628
        %v4630 = vrot.slane %v4397, 1
        %v4631 = vsel %vm1126, %v4628, %v4630
        %v4632 = vrot.slane %v4398, 1
        %v4633 = vsel %vm1126, %v4630, %v4632
        %v4634 = vrot.slane %v4399, 1
        %v4635 = vsel %vm1126, %v4632, %v4634
        %v4636 = vrot.slane %v4400, 1
        %v4637 = vsel %vm1126, %v4634, %v4636
        %v4638 = vrot.slane %v4401, 1
        %v4639 = vsel %vm1126, %v4636, %v4638
        %v4640 = vrot.slane %v4402, 1
        %v4641 = vsel %vm1126, %v4638, %v4640
        %v4642 = vrot.slane %v4403, 1
        %v4643 = vsel %vm1126, %v4640, %v4642
        %v4644 = vrot.slane %v4404, 1
        %v4645 = vsel %vm1126, %v4642, %v4644
        %v4646 = vrot.slane %v4405, 1
        %v4647 = vsel %vm1126, %v4644, %v4646
        %v4648 = vrot.slane %v4406, 1
        %v4649 = vsel %vm1126, %v4646, %v4648
        %v4650 = vrot.slane %v4407, 1
        %v4651 = vsel %vm1126, %v4648, %v4650
        %v4652 = vrot.slane %v4408, 1
        %v4653 = vsel %vm1126, %v4650, %v4652
        %v4654 = vrot.slane %v4409, 1
        %v4655 = vsel %vm1126, %v4652, %v4654
        %v4656 = vrot.slane %v4410, 1
        %v4657 = vsel %vm1126, %v4654, %v4656
        %v4658 = vrot.slane %v4411, 1
        %v4659 = vsel %vm1126, %v4656, %v4658
        %v4660 = vrot.slane %v4412, 1
        %v4661 = vsel %vm1126, %v4658, %v4660
        %v4662 = vrot.slane %v4413, 1
        %v4663 = vsel %vm1126, %v4660, %v4662
        %v4664 = vrot.slane %v4414, 1
        %v4665 = vsel %vm1126, %v4662, %v4664
        %v4666 = vrot.slane %v4415, 1
        %v4667 = vsel %vm1126, %v4664, %v4666
        %v4668 = vrot.slane %v4416, 1
        %v4669 = vsel %vm1126, %v4666, %v4668
        %v4670 = vrot.slane %v4417, 1
        %v4671 = vsel %vm1126, %v4668, %v4670
        %v4672 = vrot.slane %v4418, 1
        %v4673 = vsel %vm1126, %v4670, %v4672
        %v4674 = vrot.slane %v4419, 1
        %v4675 = vsel %vm1126, %v4672, %v4674
        %v4709 = vsel %vm1126, %v4674, %v4613
        %v4710 = vsel %vm852, %v4615, 0.0
        %v4711 = vsel %vm853, %v4617, 0.0
        %v4712 = vsel %vm854, %v4619, 0.0
        %v4713 = vsel %vm855, %v4621, 0.0
        %v4714 = vsel %vm856, %v4623, 0.0
        %v4715 = vsel %vm857, %v4625, 0.0
        %v4716 = vsel %vm858, %v4627, 0.0
        %v4717 = vsel %vm859, %v4629, 0.0
        %v4718 = vsel %vm860, %v4631, 0.0
        %v4719 = vsel %vm861, %v4633, 0.0
        %v4720 = vsel %vm862, %v4635, 0.0
        %v4721 = vsel %vm863, %v4637, 0.0
        %v4722 = vsel %vm864, %v4639, 0.0
        %v4723 = vsel %vm865, %v4641, 0.0
        %v4724 = vsel %vm866, %v4643, 0.0
        %v4725 = vsel %vm867, %v4645, 0.0
        %v4726 = vsel %vm868, %v4647, 0.0
        %v4727 = vsel %vm869, %v4649, 0.0
        %v4728 = vsel %vm870, %v4651, 0.0
        %v4729 = vsel %vm871, %v4653, 0.0
        %v4730 = vsel %vm872, %v4655, 0.0
        %v4731 = vsel %vm873, %v4657, 0.0
        %v4732 = vsel %vm874, %v4659, 0.0
        %v4733 = vsel %vm875, %v4661, 0.0
        %v4734 = vsel %vm876, %v4663, 0.0
        %v4735 = vsel %vm877, %v4665, 0.0
        %v4736 = vsel %vm878, %v4667, 0.0
        %v4737 = vsel %vm879, %v4669, 0.0
        %v4738 = vsel %vm880, %v4671, 0.0
        %v4739 = vsel %vm881, %v4673, 0.0
        %v4740 = vsel %vm882, %v4675, 0.0
        %v4741 = vsel %vm883, %v4709, 0.0
        %v4742 = vpack.c.bf16 %v4711, %v4710
        %v4743 = vpack.c.bf16 %v4713, %v4712
        %v4744 = vpack.c.bf16 %v4715, %v4714
        %v4745 = vpack.c.bf16 %v4717, %v4716
        %v4746 = vpack.c.bf16 %v4719, %v4718
        %v4747 = vpack.c.bf16 %v4721, %v4720
        %v4748 = vpack.c.bf16 %v4723, %v4722
        %v4749 = vpack.c.bf16 %v4725, %v4724
        %v4750 = vpack.c.bf16 %v4727, %v4726
        %v4751 = vpack.c.bf16 %v4729, %v4728
        %v4752 = vpack.c.bf16 %v4731, %v4730
        %v4753 = vpack.c.bf16 %v4733, %v4732
        %v4754 = vpack.c.bf16 %v4735, %v4734
        %v4755 = vpack.c.bf16 %v4737, %v4736
        %v4756 = vpack.c.bf16 %v4739, %v4738
        %v4757 = vpack.c.bf16 %v4741, %v4740
        %s4758 = scalar_lea.vmem [#allocation5], 576
        %v4759 = vld [vmem:[%s4758] sm:$0xf]
        %v4760 = vld [vmem:[%s4758 + $0x4] sm:$0xf]
        %v4761 = vld [vmem:[%s4758 + $0x8] sm:$0xf]
        %v4762 = vld [vmem:[%s4758 + $0xc] sm:$0xf]
        %v4763 = vld [vmem:[%s4758 + $0x10] sm:$0xf]
        %v4764 = vld [vmem:[%s4758 + $0x14] sm:$0xf]
        %v4765 = vld [vmem:[%s4758 + $0x18] sm:$0xf]
        %v4766 = vld [vmem:[%s4758 + $0x1c] sm:$0xf]
        %v4767 = vld [vmem:[%s4758 + $0x20] sm:$0xf]
        %v4768 = vld [vmem:[%s4758 + $0x24] sm:$0xf]
        %v4769 = vld [vmem:[%s4758 + $0x28] sm:$0xf]
        %v4770 = vld [vmem:[%s4758 + $0x2c] sm:$0xf]
        %v4771 = vld [vmem:[%s4758 + $0x30] sm:$0xf]
        %v4772 = vld [vmem:[%s4758 + $0x34] sm:$0xf]
        %v4773 = vld [vmem:[%s4758 + $0x38] sm:$0xf]
        %v4774 = vld [vmem:[%s4758 + $0x3c] sm:$0xf]
        %s4775 = scalar_lea.vmem [#allocation5], 640
        %v4776 = vld [vmem:[%s4775] sm:$0xf]
        %v4777 = vld [vmem:[%s4775 + $0x4] sm:$0xf]
        %v4778 = vld [vmem:[%s4775 + $0x8] sm:$0xf]
        %v4779 = vld [vmem:[%s4775 + $0xc] sm:$0xf]
        %v4780 = vld [vmem:[%s4775 + $0x10] sm:$0xf]
        %v4781 = vld [vmem:[%s4775 + $0x14] sm:$0xf]
        %v4782 = vld [vmem:[%s4775 + $0x18] sm:$0xf]
        %v4783 = vld [vmem:[%s4775 + $0x1c] sm:$0xf]
        %v4784 = vld [vmem:[%s4775 + $0x20] sm:$0xf]
        %v4785 = vld [vmem:[%s4775 + $0x24] sm:$0xf]
        %v4786 = vld [vmem:[%s4775 + $0x28] sm:$0xf]
        %v4787 = vld [vmem:[%s4775 + $0x2c] sm:$0xf]
        %v4788 = vld [vmem:[%s4775 + $0x30] sm:$0xf]
        %v4789 = vld [vmem:[%s4775 + $0x34] sm:$0xf]
        %v4790 = vld [vmem:[%s4775 + $0x38] sm:$0xf]
        %v4791 = vld [vmem:[%s4775 + $0x3c] sm:$0xf]
        %v4808 = vunpack.c.l.b16 %v4776
        %v4809 = vunpack.c.l.b16 %v4777
        %v4810 = vunpack.c.l.b16 %v4778
        %v4811 = vunpack.c.l.b16 %v4779
        %v4812 = vunpack.c.l.b16 %v4780
        %v4813 = vunpack.c.l.b16 %v4781
        %v4814 = vunpack.c.l.b16 %v4782
        %v4815 = vunpack.c.l.b16 %v4783
        %v4816 = vunpack.c.l.b16 %v4784
        %v4817 = vunpack.c.l.b16 %v4785
        %v4818 = vunpack.c.l.b16 %v4786
        %v4819 = vunpack.c.l.b16 %v4787
        %v4820 = vunpack.c.l.b16 %v4788
        %v4821 = vunpack.c.l.b16 %v4789
        %v4822 = vunpack.c.l.b16 %v4790
        %v4823 = vunpack.c.l.b16 %v4791
        %v4824 = vpack.c.b16 %v4809, %v4808
        %v4825 = vpack.c.b16 %v4811, %v4810
        %v4826 = vpack.c.b16 %v4813, %v4812
        %v4827 = vpack.c.b16 %v4815, %v4814
        %v4828 = vpack.c.b16 %v4817, %v4816
        %v4829 = vpack.c.b16 %v4819, %v4818
        %v4830 = vpack.c.b16 %v4821, %v4820
        %v4831 = vpack.c.b16 %v4823, %v4822
        %4840 = vmatprep.subr.bf16.mxu0 0
        %4841 = vmatpush1.bf16.msra.mxu0 %v4824
        %4842 = vmatprep.subr.bf16.mxu0 0
        %4843 = vmatpush1.bf16.msra.mxu0 %v4825
        %4844 = vmatprep.subr.bf16.mxu0 0
        %4845 = vmatpush1.bf16.msra.mxu0 %v4826
        %4846 = vmatprep.subr.bf16.mxu0 0
        %4847 = vmatpush1.bf16.msra.mxu0 %v4827
        %4848 = vmatprep.subr.bf16.mxu0 0
        %4849 = vmatpush1.bf16.msra.mxu0 %v4828
        %4850 = vmatprep.subr.bf16.mxu0 0
        %4851 = vmatpush1.bf16.msra.mxu0 %v4829
        %4852 = vmatprep.subr.bf16.mxu0 0
        %4853 = vmatpush1.bf16.msra.mxu0 %v4830
        %4854 = vmatprep.subr.bf16.mxu0 0
        %4855 = vmatpush1.bf16.msra.mxu0 %v4831
        %4856 = vmatprep.subr.bf16.mxu0 0
        %4857 = vmatpush1.bf16.msra.mxu0 0
        %4858 = vmatprep.subr.bf16.mxu0 0
        %4859 = vmatpush1.bf16.msra.mxu0 0
        %4860 = vmatprep.subr.bf16.mxu0 0
        %4861 = vmatpush1.bf16.msra.mxu0 0
        %4862 = vmatprep.subr.bf16.mxu0 0
        %4863 = vmatpush1.bf16.msra.mxu0 0
        %4864 = vmatprep.subr.bf16.mxu0 0
        %4865 = vmatpush1.bf16.msra.mxu0 0
        %4866 = vmatprep.subr.bf16.mxu0 0
        %4867 = vmatpush1.bf16.msra.mxu0 0
        %4868 = vmatprep.subr.bf16.mxu0 0
        %4869 = vmatpush1.bf16.msra.mxu0 0
        %4870 = vmatprep.subr.bf16.mxu0 0
        %4871 = vmatpush1.bf16.msra.mxu0 0
        %4872 = vmatprep.mubr.bf16.mxu0 0
        %4873 = vmatmul.mubr.bf16.gmra.mrb[0].mxu0 %v4420
        %v4874 = vpop.f32.mrb[0].mxu0
        %v4875 = vadd.f32 0.0, %v4874
        %v4876 = vpop.f32.mrb[0].mxu0
        %v4877 = vpop.f32.mrb[0].mxu0
        %v4878 = vadd.f32 0.0, %v4877
        %v4879 = vpop.f32.mrb[0].mxu0
        %4880 = vmatprep.mubr.bf16.mxu0 0
        %4881 = vmatmul.mubr.bf16.gmra.mrb[0].mxu0 %v4421
        %v4882 = vpop.f32.mrb[0].mxu0
        %v4883 = vadd.f32 0.0, %v4882
        %v4884 = vpop.f32.mrb[0].mxu0
        %v4885 = vpop.f32.mrb[0].mxu0
        %v4886 = vadd.f32 0.0, %v4885
        %v4887 = vpop.f32.mrb[0].mxu0
        %4888 = vmatprep.mubr.bf16.mxu0 0
        %4889 = vmatmul.mubr.bf16.gmra.mrb[0].mxu0 %v4422
        %v4890 = vpop.f32.mrb[0].mxu0
        %v4891 = vadd.f32 0.0, %v4890
        %v4892 = vpop.f32.mrb[0].mxu0
        %v4893 = vpop.f32.mrb[0].mxu0
        %v4894 = vadd.f32 0.0, %v4893
        %v4895 = vpop.f32.mrb[0].mxu0
        %4896 = vmatprep.mubr.bf16.mxu0 0
        %4897 = vmatmul.mubr.bf16.gmra.mrb[0].mxu0 %v4423
        %v4898 = vpop.f32.mrb[0].mxu0
        %v4899 = vadd.f32 0.0, %v4898
        %v4900 = vpop.f32.mrb[0].mxu0
        %v4901 = vpop.f32.mrb[0].mxu0
        %v4902 = vadd.f32 0.0, %v4901
        %v4903 = vpop.f32.mrb[0].mxu0
        %4904 = vmatprep.mubr.bf16.mxu0 0
        %4905 = vmatmul.mubr.bf16.gmra.mrb[0].mxu0 %v4424
        %v4906 = vpop.f32.mrb[0].mxu0
        %v4907 = vadd.f32 0.0, %v4906
        %v4908 = vpop.f32.mrb[0].mxu0
        %v4909 = vpop.f32.mrb[0].mxu0
        %v4910 = vadd.f32 0.0, %v4909
        %v4911 = vpop.f32.mrb[0].mxu0
        %4912 = vmatprep.mubr.bf16.mxu0 0
        %4913 = vmatmul.mubr.bf16.gmra.mrb[0].mxu0 %v4425
        %v4914 = vpop.f32.mrb[0].mxu0
        %v4915 = vadd.f32 0.0, %v4914
        %v4916 = vpop.f32.mrb[0].mxu0
        %v4917 = vpop.f32.mrb[0].mxu0
        %v4918 = vadd.f32 0.0, %v4917
        %v4919 = vpop.f32.mrb[0].mxu0
        %4920 = vmatprep.mubr.bf16.mxu0 0
        %4921 = vmatmul.mubr.bf16.gmra.mrb[0].mxu0 %v4426
        %v4922 = vpop.f32.mrb[0].mxu0
        %v4923 = vadd.f32 0.0, %v4922
        %v4924 = vpop.f32.mrb[0].mxu0
        %v4925 = vpop.f32.mrb[0].mxu0
        %v4926 = vadd.f32 0.0, %v4925
        %v4927 = vpop.f32.mrb[0].mxu0
        %4928 = vmatprep.mubr.bf16.mxu0 0
        %4929 = vmatmul.mubr.bf16.gmra.mrb[0].mxu0 %v4427
        %v4930 = vpop.f32.mrb[0].mxu0
        %v4931 = vadd.f32 0.0, %v4930
        %v4932 = vpop.f32.mrb[0].mxu0
        %v4933 = vpop.f32.mrb[0].mxu0
        %v4934 = vadd.f32 0.0, %v4933
        %v4935 = vpop.f32.mrb[0].mxu0
        %4936 = vmatprep.mubr.bf16.mxu0 0
        %4937 = vmatmul.mubr.bf16.gmra.mrb[0].mxu0 %v4428
        %v4938 = vpop.f32.mrb[0].mxu0
        %v4939 = vadd.f32 0.0, %v4938
        %v4940 = vpop.f32.mrb[0].mxu0
        %v4941 = vpop.f32.mrb[0].mxu0
        %v4942 = vadd.f32 0.0, %v4941
        %v4943 = vpop.f32.mrb[0].mxu0
        %4944 = vmatprep.mubr.bf16.mxu0 0
        %4945 = vmatmul.mubr.bf16.gmra.mrb[0].mxu0 %v4429
        %v4946 = vpop.f32.mrb[0].mxu0
        %v4947 = vadd.f32 0.0, %v4946
        %v4948 = vpop.f32.mrb[0].mxu0
        %v4949 = vpop.f32.mrb[0].mxu0
        %v4950 = vadd.f32 0.0, %v4949
        %v4951 = vpop.f32.mrb[0].mxu0
        %4952 = vmatprep.mubr.bf16.mxu0 0
        %4953 = vmatmul.mubr.bf16.gmra.mrb[0].mxu0 %v4430
        %v4954 = vpop.f32.mrb[0].mxu0
        %v4955 = vadd.f32 0.0, %v4954
        %v4956 = vpop.f32.mrb[0].mxu0
        %v4957 = vpop.f32.mrb[0].mxu0
        %v4958 = vadd.f32 0.0, %v4957
        %v4959 = vpop.f32.mrb[0].mxu0
        %4960 = vmatprep.mubr.bf16.mxu0 0
        %4961 = vmatmul.mubr.bf16.gmra.mrb[0].mxu0 %v4431
        %v4962 = vpop.f32.mrb[0].mxu0
        %v4963 = vadd.f32 0.0, %v4962
        %v4964 = vpop.f32.mrb[0].mxu0
        %v4965 = vpop.f32.mrb[0].mxu0
        %v4966 = vadd.f32 0.0, %v4965
        %v4967 = vpop.f32.mrb[0].mxu0
        %4968 = vmatprep.mubr.bf16.mxu0 0
        %4969 = vmatmul.mubr.bf16.gmra.mrb[0].mxu0 %v4432
        %v4970 = vpop.f32.mrb[0].mxu0
        %v4971 = vadd.f32 0.0, %v4970
        %v4972 = vpop.f32.mrb[0].mxu0
        %v4973 = vpop.f32.mrb[0].mxu0
        %v4974 = vadd.f32 0.0, %v4973
        %v4975 = vpop.f32.mrb[0].mxu0
        %4976 = vmatprep.mubr.bf16.mxu0 0
        %4977 = vmatmul.mubr.bf16.gmra.mrb[0].mxu0 %v4433
        %v4978 = vpop.f32.mrb[0].mxu0
        %v4979 = vadd.f32 0.0, %v4978
        %v4980 = vpop.f32.mrb[0].mxu0
        %v4981 = vpop.f32.mrb[0].mxu0
        %v4982 = vadd.f32 0.0, %v4981
        %v4983 = vpop.f32.mrb[0].mxu0
        %4984 = vmatprep.mubr.bf16.mxu0 0
        %4985 = vmatmul.mubr.bf16.gmra.mrb[0].mxu0 %v4434
        %v4986 = vpop.f32.mrb[0].mxu0
        %v4987 = vadd.f32 0.0, %v4986
        %v4988 = vpop.f32.mrb[0].mxu0
        %v4989 = vpop.f32.mrb[0].mxu0
        %v4990 = vadd.f32 0.0, %v4989
        %v4991 = vpop.f32.mrb[0].mxu0
        %4992 = vmatprep.mubr.bf16.mxu0 0
        %4993 = vmatmul.mubr.bf16.gmra.mrb[0].mxu0 %v4435
        %v4994 = vpop.f32.mrb[0].mxu0
        %v4995 = vadd.f32 0.0, %v4994
        %v4996 = vpop.f32.mrb[0].mxu0
        %v4997 = vpop.f32.mrb[0].mxu0
        %v4998 = vadd.f32 0.0, %v4997
        %v4999 = vpop.f32.mrb[0].mxu0
        %5000 = vdwg.mxu0
        %v5017 = vunpack.c.l.b16 %v4759
        %v5018 = vunpack.c.l.b16 %v4760
        %v5019 = vunpack.c.l.b16 %v4761
        %v5020 = vunpack.c.l.b16 %v4762
        %v5021 = vunpack.c.l.b16 %v4763
        %v5022 = vunpack.c.l.b16 %v4764
        %v5023 = vunpack.c.l.b16 %v4765
        %v5024 = vunpack.c.l.b16 %v4766
        %v5025 = vunpack.c.l.b16 %v4767
        %v5026 = vunpack.c.l.b16 %v4768
        %v5027 = vunpack.c.l.b16 %v4769
        %v5028 = vunpack.c.l.b16 %v4770
        %v5029 = vunpack.c.l.b16 %v4771
        %v5030 = vunpack.c.l.b16 %v4772
        %v5031 = vunpack.c.l.b16 %v4773
        %v5032 = vunpack.c.l.b16 %v4774
        %v5033 = vpack.c.b16 %v5018, %v5017
        %v5034 = vpack.c.b16 %v5020, %v5019
        %v5035 = vpack.c.b16 %v5022, %v5021
        %v5036 = vpack.c.b16 %v5024, %v5023
        %v5037 = vpack.c.b16 %v5026, %v5025
        %v5038 = vpack.c.b16 %v5028, %v5027
        %v5039 = vpack.c.b16 %v5030, %v5029
        %v5040 = vpack.c.b16 %v5032, %v5031
        %5049 = vmatprep.subr.bf16.mxu0 0
        %5050 = vmatpush1.bf16.msra.mxu0 %v5033
        %5051 = vmatprep.subr.bf16.mxu0 0
        %5052 = vmatpush1.bf16.msra.mxu0 %v5034
        %5053 = vmatprep.subr.bf16.mxu0 0
        %5054 = vmatpush1.bf16.msra.mxu0 %v5035
        %5055 = vmatprep.subr.bf16.mxu0 0
        %5056 = vmatpush1.bf16.msra.mxu0 %v5036
        %5057 = vmatprep.subr.bf16.mxu0 0
        %5058 = vmatpush1.bf16.msra.mxu0 %v5037
        %5059 = vmatprep.subr.bf16.mxu0 0
        %5060 = vmatpush1.bf16.msra.mxu0 %v5038
        %5061 = vmatprep.subr.bf16.mxu0 0
        %5062 = vmatpush1.bf16.msra.mxu0 %v5039
        %5063 = vmatprep.subr.bf16.mxu0 0
        %5064 = vmatpush1.bf16.msra.mxu0 %v5040
        %5065 = vmatprep.subr.bf16.mxu0 0
        %5066 = vmatpush1.bf16.msra.mxu0 0
        %5067 = vmatprep.subr.bf16.mxu0 0
        %5068 = vmatpush1.bf16.msra.mxu0 0
        %5069 = vmatprep.subr.bf16.mxu0 0
        %5070 = vmatpush1.bf16.msra.mxu0 0
        %5071 = vmatprep.subr.bf16.mxu0 0
        %5072 = vmatpush1.bf16.msra.mxu0 0
        %5073 = vmatprep.subr.bf16.mxu0 0
        %5074 = vmatpush1.bf16.msra.mxu0 0
        %5075 = vmatprep.subr.bf16.mxu0 0
        %5076 = vmatpush1.bf16.msra.mxu0 0
        %5077 = vmatprep.subr.bf16.mxu0 0
        %5078 = vmatpush1.bf16.msra.mxu0 0
        %5079 = vmatprep.subr.bf16.mxu0 0
        %5080 = vmatpush1.bf16.msra.mxu0 0
        %5081 = vmatprep.mubr.bf16.mxu0 0
        %5082 = vmatmul.mubr.bf16.gmra.mrb[0].mxu0 %v4597
        %v5083 = vpop.f32.mrb[0].mxu0
        %v5084 = vadd.f32 %v4875, %v5083
        %v5085 = vpop.f32.mrb[0].mxu0
        %v5086 = vpop.f32.mrb[0].mxu0
        %v5087 = vadd.f32 %v4878, %v5086
        %v5088 = vpop.f32.mrb[0].mxu0
        %5089 = vmatprep.mubr.bf16.mxu0 0
        %5090 = vmatmul.mubr.bf16.gmra.mrb[0].mxu0 %v4598
        %v5091 = vpop.f32.mrb[0].mxu0
        %v5092 = vadd.f32 %v4883, %v5091
        %v5093 = vpop.f32.mrb[0].mxu0
        %v5094 = vpop.f32.mrb[0].mxu0
        %v5095 = vadd.f32 %v4886, %v5094
        %v5096 = vpop.f32.mrb[0].mxu0
        %5097 = vmatprep.mubr.bf16.mxu0 0
        %5098 = vmatmul.mubr.bf16.gmra.mrb[0].mxu0 %v4599
        %v5099 = vpop.f32.mrb[0].mxu0
        %v5100 = vadd.f32 %v4891, %v5099
        %v5101 = vpop.f32.mrb[0].mxu0
        %v5102 = vpop.f32.mrb[0].mxu0
        %v5103 = vadd.f32 %v4894, %v5102
        %v5104 = vpop.f32.mrb[0].mxu0
        %5105 = vmatprep.mubr.bf16.mxu0 0
        %5106 = vmatmul.mubr.bf16.gmra.mrb[0].mxu0 %v4600
        %v5107 = vpop.f32.mrb[0].mxu0
        %v5108 = vadd.f32 %v4899, %v5107
        %v5109 = vpop.f32.mrb[0].mxu0
        %v5110 = vpop.f32.mrb[0].mxu0
        %v5111 = vadd.f32 %v4902, %v5110
        %v5112 = vpop.f32.mrb[0].mxu0
        %5113 = vmatprep.mubr.bf16.mxu0 0
        %5114 = vmatmul.mubr.bf16.gmra.mrb[0].mxu0 %v4601
        %v5115 = vpop.f32.mrb[0].mxu0
        %v5116 = vadd.f32 %v4907, %v5115
        %v5117 = vpop.f32.mrb[0].mxu0
        %v5118 = vpop.f32.mrb[0].mxu0
        %v5119 = vadd.f32 %v4910, %v5118
        %v5120 = vpop.f32.mrb[0].mxu0
        %5121 = vmatprep.mubr.bf16.mxu0 0
        %5122 = vmatmul.mubr.bf16.gmra.mrb[0].mxu0 %v4602
        %v5123 = vpop.f32.mrb[0].mxu0
        %v5124 = vadd.f32 %v4915, %v5123
        %v5125 = vpop.f32.mrb[0].mxu0
        %v5126 = vpop.f32.mrb[0].mxu0
        %v5127 = vadd.f32 %v4918, %v5126
        %v5128 = vpop.f32.mrb[0].mxu0
        %5129 = vmatprep.mubr.bf16.mxu0 0
        %5130 = vmatmul.mubr.bf16.gmra.mrb[0].mxu0 %v4603
        %v5131 = vpop.f32.mrb[0].mxu0
        %v5132 = vadd.f32 %v4923, %v5131
        %v5133 = vpop.f32.mrb[0].mxu0
        %v5134 = vpop.f32.mrb[0].mxu0
        %v5135 = vadd.f32 %v4926, %v5134
        %v5136 = vpop.f32.mrb[0].mxu0
        %5137 = vmatprep.mubr.bf16.mxu0 0
        %5138 = vmatmul.mubr.bf16.gmra.mrb[0].mxu0 %v4604
        %v5139 = vpop.f32.mrb[0].mxu0
        %v5140 = vadd.f32 %v4931, %v5139
        %v5141 = vpop.f32.mrb[0].mxu0
        %v5142 = vpop.f32.mrb[0].mxu0
        %v5143 = vadd.f32 %v4934, %v5142
        %v5144 = vpop.f32.mrb[0].mxu0
        %5145 = vmatprep.mubr.bf16.mxu0 0
        %5146 = vmatmul.mubr.bf16.gmra.mrb[0].mxu0 %v4605
        %v5147 = vpop.f32.mrb[0].mxu0
        %v5148 = vadd.f32 %v4939, %v5147
        %v5149 = vpop.f32.mrb[0].mxu0
        %v5150 = vpop.f32.mrb[0].mxu0
        %v5151 = vadd.f32 %v4942, %v5150
        %v5152 = vpop.f32.mrb[0].mxu0
        %5153 = vmatprep.mubr.bf16.mxu0 0
        %5154 = vmatmul.mubr.bf16.gmra.mrb[0].mxu0 %v4606
        %v5155 = vpop.f32.mrb[0].mxu0
        %v5156 = vadd.f32 %v4947, %v5155
        %v5157 = vpop.f32.mrb[0].mxu0
        %v5158 = vpop.f32.mrb[0].mxu0
        %v5159 = vadd.f32 %v4950, %v5158
        %v5160 = vpop.f32.mrb[0].mxu0
        %5161 = vmatprep.mubr.bf16.mxu0 0
        %5162 = vmatmul.mubr.bf16.gmra.mrb[0].mxu0 %v4607
        %v5163 = vpop.f32.mrb[0].mxu0
        %v5164 = vadd.f32 %v4955, %v5163
        %v5165 = vpop.f32.mrb[0].mxu0
        %v5166 = vpop.f32.mrb[0].mxu0
        %v5167 = vadd.f32 %v4958, %v5166
        %v5168 = vpop.f32.mrb[0].mxu0
        %5169 = vmatprep.mubr.bf16.mxu0 0
        %5170 = vmatmul.mubr.bf16.gmra.mrb[0].mxu0 %v4608
        %v5171 = vpop.f32.mrb[0].mxu0
        %v5172 = vadd.f32 %v4963, %v5171
        %v5173 = vpop.f32.mrb[0].mxu0
        %v5174 = vpop.f32.mrb[0].mxu0
        %v5175 = vadd.f32 %v4966, %v5174
        %v5176 = vpop.f32.mrb[0].mxu0
        %5177 = vmatprep.mubr.bf16.mxu0 0
        %5178 = vmatmul.mubr.bf16.gmra.mrb[0].mxu0 %v4609
        %v5179 = vpop.f32.mrb[0].mxu0
        %v5180 = vadd.f32 %v4971, %v5179
        %v5181 = vpop.f32.mrb[0].mxu0
        %v5182 = vpop.f32.mrb[0].mxu0
        %v5183 = vadd.f32 %v4974, %v5182
        %v5184 = vpop.f32.mrb[0].mxu0
        %5185 = vmatprep.mubr.bf16.mxu0 0
        %5186 = vmatmul.mubr.bf16.gmra.mrb[0].mxu0 %v4610
        %v5187 = vpop.f32.mrb[0].mxu0
        %v5188 = vadd.f32 %v4979, %v5187
        %v5189 = vpop.f32.mrb[0].mxu0
        %v5190 = vpop.f32.mrb[0].mxu0
        %v5191 = vadd.f32 %v4982, %v5190
        %v5192 = vpop.f32.mrb[0].mxu0
        %5193 = vmatprep.mubr.bf16.mxu0 0
        %5194 = vmatmul.mubr.bf16.gmra.mrb[0].mxu0 %v4611
        %v5195 = vpop.f32.mrb[0].mxu0
        %v5196 = vadd.f32 %v4987, %v5195
        %v5197 = vpop.f32.mrb[0].mxu0
        %v5198 = vpop.f32.mrb[0].mxu0
        %v5199 = vadd.f32 %v4990, %v5198
        %v5200 = vpop.f32.mrb[0].mxu0
        %5201 = vmatprep.mubr.bf16.mxu0 0
        %5202 = vmatmul.mubr.bf16.gmra.mrb[0].mxu0 %v4612
        %v5203 = vpop.f32.mrb[0].mxu0
        %v5204 = vadd.f32 %v4995, %v5203
        %v5205 = vpop.f32.mrb[0].mxu0
        %v5206 = vpop.f32.mrb[0].mxu0
        %v5207 = vadd.f32 %v4998, %v5206
        %v5208 = vpop.f32.mrb[0].mxu0
        %5209 = vdwg.mxu0
        %s5210 = scalar_lea.vmem [#allocation5], 704
        %v5211 = vld [vmem:[%s5210] sm:$0xf]
        %v5212 = vld [vmem:[%s5210 + $0x4] sm:$0xf]
        %v5213 = vld [vmem:[%s5210 + $0x8] sm:$0xf]
        %v5214 = vld [vmem:[%s5210 + $0xc] sm:$0xf]
        %v5215 = vld [vmem:[%s5210 + $0x10] sm:$0xf]
        %v5216 = vld [vmem:[%s5210 + $0x14] sm:$0xf]
        %v5217 = vld [vmem:[%s5210 + $0x18] sm:$0xf]
        %v5218 = vld [vmem:[%s5210 + $0x1c] sm:$0xf]
        %v5219 = vld [vmem:[%s5210 + $0x20] sm:$0xf]
        %v5220 = vld [vmem:[%s5210 + $0x24] sm:$0xf]
        %v5221 = vld [vmem:[%s5210 + $0x28] sm:$0xf]
        %v5222 = vld [vmem:[%s5210 + $0x2c] sm:$0xf]
        %v5223 = vld [vmem:[%s5210 + $0x30] sm:$0xf]
        %v5224 = vld [vmem:[%s5210 + $0x34] sm:$0xf]
        %v5225 = vld [vmem:[%s5210 + $0x38] sm:$0xf]
        %v5226 = vld [vmem:[%s5210 + $0x3c] sm:$0xf]
        %v5243 = vunpack.c.l.b16 %v5211
        %v5244 = vunpack.c.l.b16 %v5212
        %v5245 = vunpack.c.l.b16 %v5213
        %v5246 = vunpack.c.l.b16 %v5214
        %v5247 = vunpack.c.l.b16 %v5215
        %v5248 = vunpack.c.l.b16 %v5216
        %v5249 = vunpack.c.l.b16 %v5217
        %v5250 = vunpack.c.l.b16 %v5218
        %v5251 = vunpack.c.l.b16 %v5219
        %v5252 = vunpack.c.l.b16 %v5220
        %v5253 = vunpack.c.l.b16 %v5221
        %v5254 = vunpack.c.l.b16 %v5222
        %v5255 = vunpack.c.l.b16 %v5223
        %v5256 = vunpack.c.l.b16 %v5224
        %v5257 = vunpack.c.l.b16 %v5225
        %v5258 = vunpack.c.l.b16 %v5226
        %v5259 = vpack.c.b16 %v5244, %v5243
        %v5260 = vpack.c.b16 %v5246, %v5245
        %v5261 = vpack.c.b16 %v5248, %v5247
        %v5262 = vpack.c.b16 %v5250, %v5249
        %v5263 = vpack.c.b16 %v5252, %v5251
        %v5264 = vpack.c.b16 %v5254, %v5253
        %v5265 = vpack.c.b16 %v5256, %v5255
        %v5266 = vpack.c.b16 %v5258, %v5257
        %5275 = vmatprep.subr.bf16.mxu0 0
        %5276 = vmatpush1.bf16.msra.mxu0 %v5259
        %5277 = vmatprep.subr.bf16.mxu0 0
        %5278 = vmatpush1.bf16.msra.mxu0 %v5260
        %5279 = vmatprep.subr.bf16.mxu0 0
        %5280 = vmatpush1.bf16.msra.mxu0 %v5261
        %5281 = vmatprep.subr.bf16.mxu0 0
        %5282 = vmatpush1.bf16.msra.mxu0 %v5262
        %5283 = vmatprep.subr.bf16.mxu0 0
        %5284 = vmatpush1.bf16.msra.mxu0 %v5263
        %5285 = vmatprep.subr.bf16.mxu0 0
        %5286 = vmatpush1.bf16.msra.mxu0 %v5264
        %5287 = vmatprep.subr.bf16.mxu0 0
        %5288 = vmatpush1.bf16.msra.mxu0 %v5265
        %5289 = vmatprep.subr.bf16.mxu0 0
        %5290 = vmatpush1.bf16.msra.mxu0 %v5266
        %5291 = vmatprep.subr.bf16.mxu0 0
        %5292 = vmatpush1.bf16.msra.mxu0 0
        %5293 = vmatprep.subr.bf16.mxu0 0
        %5294 = vmatpush1.bf16.msra.mxu0 0
        %5295 = vmatprep.subr.bf16.mxu0 0
        %5296 = vmatpush1.bf16.msra.mxu0 0
        %5297 = vmatprep.subr.bf16.mxu0 0
        %5298 = vmatpush1.bf16.msra.mxu0 0
        %5299 = vmatprep.subr.bf16.mxu0 0
        %5300 = vmatpush1.bf16.msra.mxu0 0
        %5301 = vmatprep.subr.bf16.mxu0 0
        %5302 = vmatpush1.bf16.msra.mxu0 0
        %5303 = vmatprep.subr.bf16.mxu0 0
        %5304 = vmatpush1.bf16.msra.mxu0 0
        %5305 = vmatprep.subr.bf16.mxu0 0
        %5306 = vmatpush1.bf16.msra.mxu0 0
        %5307 = vmatprep.mubr.bf16.mxu0 0
        %5308 = vmatmul.mubr.bf16.gmra.mrb[0].mxu0 %v4742
        %v5309 = vpop.f32.mrb[0].mxu0
        %v5310 = vadd.f32 0.0, %v5309
        %v5311 = vpop.f32.mrb[0].mxu0
        %v5312 = vpop.f32.mrb[0].mxu0
        %v5313 = vadd.f32 0.0, %v5312
        %v5314 = vpop.f32.mrb[0].mxu0
        %5315 = vmatprep.mubr.bf16.mxu0 0
        %5316 = vmatmul.mubr.bf16.gmra.mrb[0].mxu0 %v4743
        %v5317 = vpop.f32.mrb[0].mxu0
        %v5318 = vadd.f32 0.0, %v5317
        %v5319 = vpop.f32.mrb[0].mxu0
        %v5320 = vpop.f32.mrb[0].mxu0
        %v5321 = vadd.f32 0.0, %v5320
        %v5322 = vpop.f32.mrb[0].mxu0
        %5323 = vmatprep.mubr.bf16.mxu0 0
        %5324 = vmatmul.mubr.bf16.gmra.mrb[0].mxu0 %v4744
        %v5325 = vpop.f32.mrb[0].mxu0
        %v5326 = vadd.f32 0.0, %v5325
        %v5327 = vpop.f32.mrb[0].mxu0
        %v5328 = vpop.f32.mrb[0].mxu0
        %v5329 = vadd.f32 0.0, %v5328
        %v5330 = vpop.f32.mrb[0].mxu0
        %5331 = vmatprep.mubr.bf16.mxu0 0
        %5332 = vmatmul.mubr.bf16.gmra.mrb[0].mxu0 %v4745
        %v5333 = vpop.f32.mrb[0].mxu0
        %v5334 = vadd.f32 0.0, %v5333
        %v5335 = vpop.f32.mrb[0].mxu0
        %v5336 = vpop.f32.mrb[0].mxu0
        %v5337 = vadd.f32 0.0, %v5336
        %v5338 = vpop.f32.mrb[0].mxu0
        %5339 = vmatprep.mubr.bf16.mxu0 0
        %5340 = vmatmul.mubr.bf16.gmra.mrb[0].mxu0 %v4746
        %v5341 = vpop.f32.mrb[0].mxu0
        %v5342 = vadd.f32 0.0, %v5341
        %v5343 = vpop.f32.mrb[0].mxu0
        %v5344 = vpop.f32.mrb[0].mxu0
        %v5345 = vadd.f32 0.0, %v5344
        %v5346 = vpop.f32.mrb[0].mxu0
        %5347 = vmatprep.mubr.bf16.mxu0 0
        %5348 = vmatmul.mubr.bf16.gmra.mrb[0].mxu0 %v4747
        %v5349 = vpop.f32.mrb[0].mxu0
        %v5350 = vadd.f32 0.0, %v5349
        %v5351 = vpop.f32.mrb[0].mxu0
        %v5352 = vpop.f32.mrb[0].mxu0
        %v5353 = vadd.f32 0.0, %v5352
        %v5354 = vpop.f32.mrb[0].mxu0
        %5355 = vmatprep.mubr.bf16.mxu0 0
        %5356 = vmatmul.mubr.bf16.gmra.mrb[0].mxu0 %v4748
        %v5357 = vpop.f32.mrb[0].mxu0
        %v5358 = vadd.f32 0.0, %v5357
        %v5359 = vpop.f32.mrb[0].mxu0
        %v5360 = vpop.f32.mrb[0].mxu0
        %v5361 = vadd.f32 0.0, %v5360
        %v5362 = vpop.f32.mrb[0].mxu0
        %5363 = vmatprep.mubr.bf16.mxu0 0
        %5364 = vmatmul.mubr.bf16.gmra.mrb[0].mxu0 %v4749
        %v5365 = vpop.f32.mrb[0].mxu0
        %v5366 = vadd.f32 0.0, %v5365
        %v5367 = vpop.f32.mrb[0].mxu0
        %v5368 = vpop.f32.mrb[0].mxu0
        %v5369 = vadd.f32 0.0, %v5368
        %v5370 = vpop.f32.mrb[0].mxu0
        %5371 = vmatprep.mubr.bf16.mxu0 0
        %5372 = vmatmul.mubr.bf16.gmra.mrb[0].mxu0 %v4750
        %v5373 = vpop.f32.mrb[0].mxu0
        %v5374 = vadd.f32 0.0, %v5373
        %v5375 = vpop.f32.mrb[0].mxu0
        %v5376 = vpop.f32.mrb[0].mxu0
        %v5377 = vadd.f32 0.0, %v5376
        %v5378 = vpop.f32.mrb[0].mxu0
        %5379 = vmatprep.mubr.bf16.mxu0 0
        %5380 = vmatmul.mubr.bf16.gmra.mrb[0].mxu0 %v4751
        %v5381 = vpop.f32.mrb[0].mxu0
        %v5382 = vadd.f32 0.0, %v5381
        %v5383 = vpop.f32.mrb[0].mxu0
        %v5384 = vpop.f32.mrb[0].mxu0
        %v5385 = vadd.f32 0.0, %v5384
        %v5386 = vpop.f32.mrb[0].mxu0
        %5387 = vmatprep.mubr.bf16.mxu0 0
        %5388 = vmatmul.mubr.bf16.gmra.mrb[0].mxu0 %v4752
        %v5389 = vpop.f32.mrb[0].mxu0
        %v5390 = vadd.f32 0.0, %v5389
        %v5391 = vpop.f32.mrb[0].mxu0
        %v5392 = vpop.f32.mrb[0].mxu0
        %v5393 = vadd.f32 0.0, %v5392
        %v5394 = vpop.f32.mrb[0].mxu0
        %5395 = vmatprep.mubr.bf16.mxu0 0
        %5396 = vmatmul.mubr.bf16.gmra.mrb[0].mxu0 %v4753
        %v5397 = vpop.f32.mrb[0].mxu0
        %v5398 = vadd.f32 0.0, %v5397
        %v5399 = vpop.f32.mrb[0].mxu0
        %v5400 = vpop.f32.mrb[0].mxu0
        %v5401 = vadd.f32 0.0, %v5400
        %v5402 = vpop.f32.mrb[0].mxu0
        %5403 = vmatprep.mubr.bf16.mxu0 0
        %5404 = vmatmul.mubr.bf16.gmra.mrb[0].mxu0 %v4754
        %v5405 = vpop.f32.mrb[0].mxu0
        %v5406 = vadd.f32 0.0, %v5405
        %v5407 = vpop.f32.mrb[0].mxu0
        %v5408 = vpop.f32.mrb[0].mxu0
        %v5409 = vadd.f32 0.0, %v5408
        %v5410 = vpop.f32.mrb[0].mxu0
        %5411 = vmatprep.mubr.bf16.mxu0 0
        %5412 = vmatmul.mubr.bf16.gmra.mrb[0].mxu0 %v4755
        %v5413 = vpop.f32.mrb[0].mxu0
        %v5414 = vadd.f32 0.0, %v5413
        %v5415 = vpop.f32.mrb[0].mxu0
        %v5416 = vpop.f32.mrb[0].mxu0
        %v5417 = vadd.f32 0.0, %v5416
        %v5418 = vpop.f32.mrb[0].mxu0
        %5419 = vmatprep.mubr.bf16.mxu0 0
        %5420 = vmatmul.mubr.bf16.gmra.mrb[0].mxu0 %v4756
        %v5421 = vpop.f32.mrb[0].mxu0
        %v5422 = vadd.f32 0.0, %v5421
        %v5423 = vpop.f32.mrb[0].mxu0
        %v5424 = vpop.f32.mrb[0].mxu0
        %v5425 = vadd.f32 0.0, %v5424
        %v5426 = vpop.f32.mrb[0].mxu0
        %5427 = vmatprep.mubr.bf16.mxu0 0
        %5428 = vmatmul.mubr.bf16.gmra.mrb[0].mxu0 %v4757
        %v5429 = vpop.f32.mrb[0].mxu0
        %v5430 = vadd.f32 0.0, %v5429
        %v5431 = vpop.f32.mrb[0].mxu0
        %v5432 = vpop.f32.mrb[0].mxu0
        %v5433 = vadd.f32 0.0, %v5432
        %v5434 = vpop.f32.mrb[0].mxu0
        %5435 = vdwg.mxu0
        %v5436 = vadd.f32 %v5084, %v5310
        %v5437 = vadd.f32 %v5087, %v5313
        %v5438 = vadd.f32 %v5092, %v5318
        %v5439 = vadd.f32 %v5095, %v5321
        %v5440 = vadd.f32 %v5100, %v5326
        %v5441 = vadd.f32 %v5103, %v5329
        %v5442 = vadd.f32 %v5108, %v5334
        %v5443 = vadd.f32 %v5111, %v5337
        %v5444 = vadd.f32 %v5116, %v5342
        %v5445 = vadd.f32 %v5119, %v5345
        %v5446 = vadd.f32 %v5124, %v5350
        %v5447 = vadd.f32 %v5127, %v5353
        %v5448 = vadd.f32 %v5132, %v5358
        %v5449 = vadd.f32 %v5135, %v5361
        %v5450 = vadd.f32 %v5140, %v5366
        %v5451 = vadd.f32 %v5143, %v5369
        %v5452 = vadd.f32 %v5148, %v5374
        %v5453 = vadd.f32 %v5151, %v5377
        %v5454 = vadd.f32 %v5156, %v5382
        %v5455 = vadd.f32 %v5159, %v5385
        %v5456 = vadd.f32 %v5164, %v5390
        %v5457 = vadd.f32 %v5167, %v5393
        %v5458 = vadd.f32 %v5172, %v5398
        %v5459 = vadd.f32 %v5175, %v5401
        %v5460 = vadd.f32 %v5180, %v5406
        %v5461 = vadd.f32 %v5183, %v5409
        %v5462 = vadd.f32 %v5188, %v5414
        %v5463 = vadd.f32 %v5191, %v5417
        %v5464 = vadd.f32 %v5196, %v5422
        %v5465 = vadd.f32 %v5199, %v5425
        %v5466 = vadd.f32 %v5204, %v5430
        %v5467 = vadd.f32 %v5207, %v5433
        %s5468 = scalar_lea.vmem %s2, 3
        %v5469 = vld [vmem:[%s5468] sm:$0x1]
        %v5471 = vlaneseq
        %v5472 = vshrl.u32 %v5471, 7
        %v5473 = vsub.s32 0, %v5472
        %v5474 = vrot.slane %v5469, %v5473
        %v5476 = vadd.f32 %v5436, %v5474
        %v5477 = vadd.f32 %v5437, %v5474
        %v5478 = vadd.f32 %v5438, %v5474
        %v5479 = vadd.f32 %v5439, %v5474
        %v5480 = vadd.f32 %v5440, %v5474
        %v5481 = vadd.f32 %v5441, %v5474
        %v5482 = vadd.f32 %v5442, %v5474
        %v5483 = vadd.f32 %v5443, %v5474
        %v5484 = vadd.f32 %v5444, %v5474
        %v5485 = vadd.f32 %v5445, %v5474
        %v5486 = vadd.f32 %v5446, %v5474
        %v5487 = vadd.f32 %v5447, %v5474
        %v5488 = vadd.f32 %v5448, %v5474
        %v5489 = vadd.f32 %v5449, %v5474
        %v5490 = vadd.f32 %v5450, %v5474
        %v5491 = vadd.f32 %v5451, %v5474
        %v5492 = vadd.f32 %v5452, %v5474
        %v5493 = vadd.f32 %v5453, %v5474
        %v5494 = vadd.f32 %v5454, %v5474
        %v5495 = vadd.f32 %v5455, %v5474
        %v5496 = vadd.f32 %v5456, %v5474
        %v5497 = vadd.f32 %v5457, %v5474
        %v5498 = vadd.f32 %v5458, %v5474
        %v5499 = vadd.f32 %v5459, %v5474
        %v5500 = vadd.f32 %v5460, %v5474
        %v5501 = vadd.f32 %v5461, %v5474
        %v5502 = vadd.f32 %v5462, %v5474
        %v5503 = vadd.f32 %v5463, %v5474
        %v5504 = vadd.f32 %v5464, %v5474
        %v5505 = vadd.f32 %v5465, %v5474
        %v5506 = vadd.f32 %v5466, %v5474
        %v5507 = vadd.f32 %v5467, %v5474
        %v5508 = vadd.f32 %v5476, %v3268
        %v5509 = vadd.f32 %v5477, %v3269
        %v5510 = vadd.f32 %v5478, %v3270
        %v5511 = vadd.f32 %v5479, %v3271
        %v5512 = vadd.f32 %v5480, %v3272
        %v5513 = vadd.f32 %v5481, %v3273
        %v5514 = vadd.f32 %v5482, %v3274
        %v5515 = vadd.f32 %v5483, %v3275
        %v5516 = vadd.f32 %v5484, %v3276
        %v5517 = vadd.f32 %v5485, %v3277
        %v5518 = vadd.f32 %v5486, %v3278
        %v5519 = vadd.f32 %v5487, %v3279
        %v5520 = vadd.f32 %v5488, %v3280
        %v5521 = vadd.f32 %v5489, %v3281
        %v5522 = vadd.f32 %v5490, %v3282
        %v5523 = vadd.f32 %v5491, %v3283
        %v5524 = vadd.f32 %v5492, %v3284
        %v5525 = vadd.f32 %v5493, %v3285
        %v5526 = vadd.f32 %v5494, %v3286
        %v5527 = vadd.f32 %v5495, %v3287
        %v5528 = vadd.f32 %v5496, %v3288
        %v5529 = vadd.f32 %v5497, %v3289
        %v5530 = vadd.f32 %v5498, %v3290
        %v5531 = vadd.f32 %v5499, %v3291
        %v5532 = vadd.f32 %v5500, %v3292
        %v5533 = vadd.f32 %v5501, %v3293
        %v5534 = vadd.f32 %v5502, %v3294
        %v5535 = vadd.f32 %v5503, %v3295
        %v5536 = vadd.f32 %v5504, %v3296
        %v5537 = vadd.f32 %v5505, %v3297
        %v5538 = vadd.f32 %v5506, %v3298
        %v5539 = vadd.f32 %v5507, %v3299
        %v5540 = vmax.f32 %v5508, 0.0
        %v5541 = vmax.f32 %v5509, 0.0
        %v5542 = vmax.f32 %v5510, 0.0
        %v5543 = vmax.f32 %v5511, 0.0
        %v5544 = vmax.f32 %v5512, 0.0
        %v5545 = vmax.f32 %v5513, 0.0
        %v5546 = vmax.f32 %v5514, 0.0
        %v5547 = vmax.f32 %v5515, 0.0
        %v5548 = vmax.f32 %v5516, 0.0
        %v5549 = vmax.f32 %v5517, 0.0
        %v5550 = vmax.f32 %v5518, 0.0
        %v5551 = vmax.f32 %v5519, 0.0
        %v5552 = vmax.f32 %v5520, 0.0
        %v5553 = vmax.f32 %v5521, 0.0
        %v5554 = vmax.f32 %v5522, 0.0
        %v5555 = vmax.f32 %v5523, 0.0
        %v5556 = vmax.f32 %v5524, 0.0
        %v5557 = vmax.f32 %v5525, 0.0
        %v5558 = vmax.f32 %v5526, 0.0
        %v5559 = vmax.f32 %v5527, 0.0
        %v5560 = vmax.f32 %v5528, 0.0
        %v5561 = vmax.f32 %v5529, 0.0
        %v5562 = vmax.f32 %v5530, 0.0
        %v5563 = vmax.f32 %v5531, 0.0
        %v5564 = vmax.f32 %v5532, 0.0
        %v5565 = vmax.f32 %v5533, 0.0
        %v5566 = vmax.f32 %v5534, 0.0
        %v5567 = vmax.f32 %v5535, 0.0
        %v5568 = vmax.f32 %v5536, 0.0
        %v5569 = vmax.f32 %v5537, 0.0
        %v5570 = vmax.f32 %v5538, 0.0
        %v5571 = vmax.f32 %v5539, 0.0
        %v5572 = vadd.f32 %v5540, %v5541
        %v5573 = vrot.slane %v5572, 4
        %v5574 = vadd.f32 %v5572, %v5573
        %v5575 = vrot.slane %v5574, 2
        %v5576 = vadd.f32 %v5574, %v5575
        %v5577 = vrot.slane %v5576, 1
        %v5578 = vadd.f32 %v5576, %v5577
        %v5579 = vadd.f32 %v5542, %v5543
        %v5580 = vrot.slane %v5579, 4
        %v5581 = vadd.f32 %v5579, %v5580
        %v5582 = vrot.slane %v5581, 2
        %v5583 = vadd.f32 %v5581, %v5582
        %v5584 = vrot.slane %v5583, 1
        %v5585 = vadd.f32 %v5583, %v5584
        %v5586 = vadd.f32 %v5544, %v5545
        %v5587 = vrot.slane %v5586, 4
        %v5588 = vadd.f32 %v5586, %v5587
        %v5589 = vrot.slane %v5588, 2
        %v5590 = vadd.f32 %v5588, %v5589
        %v5591 = vrot.slane %v5590, 1
        %v5592 = vadd.f32 %v5590, %v5591
        %v5593 = vadd.f32 %v5546, %v5547
        %v5594 = vrot.slane %v5593, 4
        %v5595 = vadd.f32 %v5593, %v5594
        %v5596 = vrot.slane %v5595, 2
        %v5597 = vadd.f32 %v5595, %v5596
        %v5598 = vrot.slane %v5597, 1
        %v5599 = vadd.f32 %v5597, %v5598
        %v5600 = vadd.f32 %v5548, %v5549
        %v5601 = vrot.slane %v5600, 4
        %v5602 = vadd.f32 %v5600, %v5601
        %v5603 = vrot.slane %v5602, 2
        %v5604 = vadd.f32 %v5602, %v5603
        %v5605 = vrot.slane %v5604, 1
        %v5606 = vadd.f32 %v5604, %v5605
        %v5607 = vadd.f32 %v5550, %v5551
        %v5608 = vrot.slane %v5607, 4
        %v5609 = vadd.f32 %v5607, %v5608
        %v5610 = vrot.slane %v5609, 2
        %v5611 = vadd.f32 %v5609, %v5610
        %v5612 = vrot.slane %v5611, 1
        %v5613 = vadd.f32 %v5611, %v5612
        %v5614 = vadd.f32 %v5552, %v5553
        %v5615 = vrot.slane %v5614, 4
        %v5616 = vadd.f32 %v5614, %v5615
        %v5617 = vrot.slane %v5616, 2
        %v5618 = vadd.f32 %v5616, %v5617
        %v5619 = vrot.slane %v5618, 1
        %v5620 = vadd.f32 %v5618, %v5619
        %v5621 = vadd.f32 %v5554, %v5555
        %v5622 = vrot.slane %v5621, 4
        %v5623 = vadd.f32 %v5621, %v5622
        %v5624 = vrot.slane %v5623, 2
        %v5625 = vadd.f32 %v5623, %v5624
        %v5626 = vrot.slane %v5625, 1
        %v5627 = vadd.f32 %v5625, %v5626
        %v5628 = vadd.f32 %v5556, %v5557
        %v5629 = vrot.slane %v5628, 4
        %v5630 = vadd.f32 %v5628, %v5629
        %v5631 = vrot.slane %v5630, 2
        %v5632 = vadd.f32 %v5630, %v5631
        %v5633 = vrot.slane %v5632, 1
        %v5634 = vadd.f32 %v5632, %v5633
        %v5635 = vadd.f32 %v5558, %v5559
        %v5636 = vrot.slane %v5635, 4
        %v5637 = vadd.f32 %v5635, %v5636
        %v5638 = vrot.slane %v5637, 2
        %v5639 = vadd.f32 %v5637, %v5638
        %v5640 = vrot.slane %v5639, 1
        %v5641 = vadd.f32 %v5639, %v5640
        %v5642 = vadd.f32 %v5560, %v5561
        %v5643 = vrot.slane %v5642, 4
        %v5644 = vadd.f32 %v5642, %v5643
        %v5645 = vrot.slane %v5644, 2
        %v5646 = vadd.f32 %v5644, %v5645
        %v5647 = vrot.slane %v5646, 1
        %v5648 = vadd.f32 %v5646, %v5647
        %v5649 = vadd.f32 %v5562, %v5563
        %v5650 = vrot.slane %v5649, 4
        %v5651 = vadd.f32 %v5649, %v5650
        %v5652 = vrot.slane %v5651, 2
        %v5653 = vadd.f32 %v5651, %v5652
        %v5654 = vrot.slane %v5653, 1
        %v5655 = vadd.f32 %v5653, %v5654
        %v5656 = vadd.f32 %v5564, %v5565
        %v5657 = vrot.slane %v5656, 4
        %v5658 = vadd.f32 %v5656, %v5657
        %v5659 = vrot.slane %v5658, 2
        %v5660 = vadd.f32 %v5658, %v5659
        %v5661 = vrot.slane %v5660, 1
        %v5662 = vadd.f32 %v5660, %v5661
        %v5663 = vadd.f32 %v5566, %v5567
        %v5664 = vrot.slane %v5663, 4
        %v5665 = vadd.f32 %v5663, %v5664
        %v5666 = vrot.slane %v5665, 2
        %v5667 = vadd.f32 %v5665, %v5666
        %v5668 = vrot.slane %v5667, 1
        %v5669 = vadd.f32 %v5667, %v5668
        %v5670 = vadd.f32 %v5568, %v5569
        %v5671 = vrot.slane %v5670, 4
        %v5672 = vadd.f32 %v5670, %v5671
        %v5673 = vrot.slane %v5672, 2
        %v5674 = vadd.f32 %v5672, %v5673
        %v5675 = vrot.slane %v5674, 1
        %v5676 = vadd.f32 %v5674, %v5675
        %v5677 = vadd.f32 %v5570, %v5571
        %v5678 = vrot.slane %v5677, 4
        %v5679 = vadd.f32 %v5677, %v5678
        %v5680 = vrot.slane %v5679, 2
        %v5681 = vadd.f32 %v5679, %v5680
        %v5682 = vrot.slane %v5681, 1
        %v5683 = vadd.f32 %v5681, %v5682
        %v5684 = vpack.c.bf16 %v5578, %v5578
        %v5685 = vpack.c.bf16 %v5585, %v5585
        %v5686 = vpack.c.bf16 %v5592, %v5592
        %v5687 = vpack.c.bf16 %v5599, %v5599
        %v5688 = vpack.c.bf16 %v5606, %v5606
        %v5689 = vpack.c.bf16 %v5613, %v5613
        %v5690 = vpack.c.bf16 %v5620, %v5620
        %v5691 = vpack.c.bf16 %v5627, %v5627
        %v5692 = vpack.c.bf16 %v5634, %v5634
        %v5693 = vpack.c.bf16 %v5641, %v5641
        %v5694 = vpack.c.bf16 %v5648, %v5648
        %v5695 = vpack.c.bf16 %v5655, %v5655
        %v5696 = vpack.c.bf16 %v5662, %v5662
        %v5697 = vpack.c.bf16 %v5669, %v5669
        %v5698 = vpack.c.bf16 %v5676, %v5676
        %v5699 = vpack.c.bf16 %v5683, %v5683
        %v5700 = vld [vmem:[#allocation7] sm:$0xf]
        %v5701 = vld [vmem:[#allocation7 + $0x4] sm:$0xf]
        %v5702 = vld [vmem:[#allocation7 + $0x8] sm:$0xf]
        %v5703 = vld [vmem:[#allocation7 + $0xc] sm:$0xf]
        %v5704 = vld [vmem:[#allocation7 + $0x10] sm:$0xf]
        %v5705 = vld [vmem:[#allocation7 + $0x14] sm:$0xf]
        %v5706 = vld [vmem:[#allocation7 + $0x18] sm:$0xf]
        %v5707 = vld [vmem:[#allocation7 + $0x1c] sm:$0xf]
        %v5708 = vld [vmem:[#allocation7 + $0x20] sm:$0xf]
        %v5709 = vld [vmem:[#allocation7 + $0x24] sm:$0xf]
        %v5710 = vld [vmem:[#allocation7 + $0x28] sm:$0xf]
        %v5711 = vld [vmem:[#allocation7 + $0x2c] sm:$0xf]
        %v5712 = vld [vmem:[#allocation7 + $0x30] sm:$0xf]
        %v5713 = vld [vmem:[#allocation7 + $0x34] sm:$0xf]
        %v5714 = vld [vmem:[#allocation7 + $0x38] sm:$0xf]
        %v5715 = vld [vmem:[#allocation7 + $0x3c] sm:$0xf]
        %v5716 = vld [vmem:[%s4] sm:$0x1]
        %v5718 = vlaneseq
        %v5719 = vshrl.u32 %v5718, 7
        %v5720 = vsub.s32 0, %v5719
        %v5721 = vrot.slane %v5716, %v5720
        %v5739 = vunpack.c.l.b16 %v5684
        %v5740 = vunpack.c.l.b16 %v5685
        %v5741 = vunpack.c.l.b16 %v5686
        %v5742 = vunpack.c.l.b16 %v5687
        %v5743 = vunpack.c.l.b16 %v5688
        %v5744 = vunpack.c.l.b16 %v5689
        %v5745 = vunpack.c.l.b16 %v5690
        %v5746 = vunpack.c.l.b16 %v5691
        %v5747 = vunpack.c.l.b16 %v5692
        %v5748 = vunpack.c.l.b16 %v5693
        %v5749 = vunpack.c.l.b16 %v5694
        %v5750 = vunpack.c.l.b16 %v5695
        %v5751 = vunpack.c.l.b16 %v5696
        %v5752 = vunpack.c.l.b16 %v5697
        %v5753 = vunpack.c.l.b16 %v5698
        %v5754 = vunpack.c.l.b16 %v5699
        %vm5755 = vcmask 1041409
        %v5756 = vsel %vm5755, %v5740, %v5739
        %vm5757 = vcmask 1042434
        %v5758 = vsel %vm5757, %v5741, %v5756
        %vm5759 = vcmask 1043459
        %v5760 = vsel %vm5759, %v5742, %v5758
        %vm5761 = vcmask 1044484
        %v5762 = vsel %vm5761, %v5743, %v5760
        %vm5763 = vcmask 1045509
        %v5764 = vsel %vm5763, %v5744, %v5762
        %vm5765 = vcmask 1046534
        %v5766 = vsel %vm5765, %v5745, %v5764
        %vm5767 = vcmask 1047559
        %v5768 = vsel %vm5767, %v5746, %v5766
        %v5769 = vsel %vm5755, %v5748, %v5747
        %v5770 = vsel %vm5757, %v5749, %v5769
        %v5771 = vsel %vm5759, %v5750, %v5770
        %v5772 = vsel %vm5761, %v5751, %v5771
        %v5773 = vsel %vm5763, %v5752, %v5772
        %v5774 = vsel %vm5765, %v5753, %v5773
        %v5775 = vsel %vm5767, %v5754, %v5774
        %v5776 = vpack.c.b16 %v5775, %v5768
        %v5794 = vunpack.c.l.b16 %v5700
        %v5795 = vunpack.c.l.b16 %v5701
        %v5796 = vunpack.c.l.b16 %v5702
        %v5797 = vunpack.c.l.b16 %v5703
        %v5798 = vunpack.c.l.b16 %v5704
        %v5799 = vunpack.c.l.b16 %v5705
        %v5800 = vunpack.c.l.b16 %v5706
        %v5801 = vunpack.c.l.b16 %v5707
        %v5802 = vunpack.c.l.b16 %v5708
        %v5803 = vunpack.c.l.b16 %v5709
        %v5804 = vunpack.c.l.b16 %v5710
        %v5805 = vunpack.c.l.b16 %v5711
        %v5806 = vunpack.c.l.b16 %v5712
        %v5807 = vunpack.c.l.b16 %v5713
        %v5808 = vunpack.c.l.b16 %v5714
        %v5809 = vunpack.c.l.b16 %v5715
        %v5810 = vpack.c.b16 %v5795, %v5794
        %v5811 = vpack.c.b16 %v5797, %v5796
        %v5812 = vpack.c.b16 %v5799, %v5798
        %v5813 = vpack.c.b16 %v5801, %v5800
        %v5814 = vpack.c.b16 %v5803, %v5802
        %v5815 = vpack.c.b16 %v5805, %v5804
        %v5816 = vpack.c.b16 %v5807, %v5806
        %v5817 = vpack.c.b16 %v5809, %v5808
        %5826 = vmatprep.subr.bf16.mxu0 0
        %5827 = vmatpush1.bf16.msra.mxu0 %v5810
        %5828 = vmatprep.subr.bf16.mxu0 0
        %5829 = vmatpush1.bf16.msra.mxu0 %v5811
        %5830 = vmatprep.subr.bf16.mxu0 0
        %5831 = vmatpush1.bf16.msra.mxu0 %v5812
        %5832 = vmatprep.subr.bf16.mxu0 0
        %5833 = vmatpush1.bf16.msra.mxu0 %v5813
        %5834 = vmatprep.subr.bf16.mxu0 0
        %5835 = vmatpush1.bf16.msra.mxu0 %v5814
        %5836 = vmatprep.subr.bf16.mxu0 0
        %5837 = vmatpush1.bf16.msra.mxu0 %v5815
        %5838 = vmatprep.subr.bf16.mxu0 0
        %5839 = vmatpush1.bf16.msra.mxu0 %v5816
        %5840 = vmatprep.subr.bf16.mxu0 0
        %5841 = vmatpush1.bf16.msra.mxu0 %v5817
        %5842 = vmatprep.subr.bf16.mxu0 0
        %5843 = vmatpush1.bf16.msra.mxu0 0
        %5844 = vmatprep.subr.bf16.mxu0 0
        %5845 = vmatpush1.bf16.msra.mxu0 0
        %5846 = vmatprep.subr.bf16.mxu0 0
        %5847 = vmatpush1.bf16.msra.mxu0 0
        %5848 = vmatprep.subr.bf16.mxu0 0
        %5849 = vmatpush1.bf16.msra.mxu0 0
        %5850 = vmatprep.subr.bf16.mxu0 0
        %5851 = vmatpush1.bf16.msra.mxu0 0
        %5852 = vmatprep.subr.bf16.mxu0 0
        %5853 = vmatpush1.bf16.msra.mxu0 0
        %5854 = vmatprep.subr.bf16.mxu0 0
        %5855 = vmatpush1.bf16.msra.mxu0 0
        %5856 = vmatprep.subr.bf16.mxu0 0
        %5857 = vmatpush1.bf16.msra.mxu0 0
        %5858 = vmatprep.mubr.bf16.mxu0 0
        %5859 = vmatmul.mubr.bf16.gmra.mrb[0].mxu0 %v5776
        %v5860 = vpop.f32.mrb[0].mxu0
        %v5861 = vadd.f32 %v5721, %v5860
        %v5862 = vpop.f32.mrb[0].mxu0
        %v5863 = vpop.f32.mrb[0].mxu0
        %v5864 = vadd.f32 %v5721, %v5863
        %v5865 = vpop.f32.mrb[0].mxu0
        %5866 = vdwg.mxu0
        %5867 = vst [vmem:[%s271] sm:$0xff] %v5861
        %5868 = vst [vmem:[%s271 + $0x8] sm:$0xff] %v5864
        %s5869 = sand.u32 %s141, 1
        %s5870 = scalar_lea.sflag [#allocation4], %s5869
        %s5871 = sand.u32 %s141, 1
        %s5872 = smul.addr %s5871, 16
        %s5873 = scalar_lea.vmem [#allocation8], %s5872
        // Predicated region
        $region53: #{tpu_custom_call.1} parent=39 // pred_check
          %p5874 = pneg %p151
        $region54: #{tpu_custom_call.1} parent=39 // pred_check_branch
          %5876 = sbr.rel (%p5874) target = $region56
        $region55: #{tpu_custom_call.1} parent=39 // pred_region
          %s5877 = smul.u32 2, %s23
          %s5879 = ssub.s32 256, 256
          %5880 = vsyncadd %s5870, %s5879
          %s5881 = smul.addr %s5877, 128
          %s5882 = scalar_lea.hbm %s5, %s5881
          %s5883 = sshll.u32 %s5873, 4
          %s5884 = int_to_ptr.vmem [resolvable:$true] %s5883
          %5889 = dma.vmem_to_hbm [thread:$0]  %s5884, 256, %s5882, %s5870, 128, 128, 8
        $region56: #{tpu_custom_call.1} parent=39 // pred_fallthru
          _
      $region40: #{tpu_custom_call.1} parent=5 // pred_fallthru
        _
      %p5890 = scmp.le.s32.totalorder 2, %s18
      // Predicated region
      $region57: #{tpu_custom_call.1} parent=5 // pred_check
        %p5891 = pneg %p5890
      $region58: #{tpu_custom_call.1} parent=5 // pred_check_branch
        %5893 = sbr.rel (%p5891) target = $region60
      $region59: #{tpu_custom_call.1} parent=5 // pred_region
        %s5894 = ssub.s32 %s18, 2
        // Predicated region
        $region61: #{tpu_custom_call.1} parent=59 // pred_check
          %p5895 = pneg %p157
        $region62: #{tpu_custom_call.1} parent=59 // pred_check_branch
          %5897 = sbr.rel (%p5895) target = $region64
        $region63: #{tpu_custom_call.1} parent=59 // pred_region
          %s5898 = sand.u32 %s142, 1
          %s5899 = scalar_lea.sflag [#allocation4], %s5898
          %s5900 = sand.u32 %s142, 1
          %s5901 = smul.addr %s5900, 16
          %s5902 = scalar_lea.vmem [#allocation8], %s5901
          %5903 = dma.done %s5899, 256
        $region64: #{tpu_custom_call.1} parent=59 // pred_fallthru
          _
      $region60: #{tpu_custom_call.1} parent=5 // pred_fallthru
        _
    $region6: #{tpu_custom_call.1} parent=1 // loop_footer
      %s22 = sadd.s32 1, %s18
    $region7: #{tpu_custom_call.1} parent=1 // loop_footer_branch
      %17 = sbr.rel target = $region3
    $region8: #{tpu_custom_call.1} parent=1 // loop_exit
      _
    %5904 = vsyncpa [#allocation3], 1
    %s5905 = scalar_lea.sflag [#allocation3], 1
    %5906 = vsyncpa %s5905, 1
    %5907 = vsyncpa [#allocation6], 1
    %5908 = vsyncpa [#allocation4], 1
    %s5909 = scalar_lea.sflag [#allocation4], 1
    %5910 = vsyncpa %s5909, 1

</llo_original>
